<compile_context>
chip_gen: v5e
topology: v5e:2x2
jax: 0.10.0
libtpu: 0.0.40
codegen_flags: <defaults>
</compile_context>

<pallas_src>
import math
import jax
import jax.numpy as jnp
from jax.experimental import pallas as pl
from jax.experimental.pallas import tpu as pltpu


# ----------------------------- parameter setup (glue) -----------------------

def _haar_cayley_weight_1d(low_channels, dtype=jnp.float32):
    """__initialize_weight__ for method='cayley', init='haar', stride=(2,)."""
    p = -math.sqrt(2.0) / (2.0 - math.sqrt(2.0))
    w = jnp.array([[0.0, p], [0.0, 0.0]], dtype=dtype)
    return jnp.tile(w[None], (low_channels, 1, 1))          # (low, 2, 2)


def _cayley_kernel_matrix(weight):
    """Cayley transform (I + A)^-1 (I - A) with A = W - W^T (batched)."""
    A = weight - jnp.swapaxes(weight, -1, -2)
    I = jnp.eye(A.shape[-1], dtype=A.dtype)
    return jnp.linalg.solve(I + A, I - A)                    # (low, 2, 2)


# ----------------------------- tiling helpers -------------------------------

def _sublane(itemsize):
    return max(8, 32 // itemsize)          # 8 rows f32, 16 bf16, 32 int8


def _round_up(n, m):
    return ((n + m - 1) // m) * m


def _largest_aligned_divisor(n, base, cap):
    """Largest d <= cap with d % base == 0 and n % d == 0 (0 if none)."""
    best = 0
    d = base
    limit = min(n, cap)
    while d <= limit:
        if n % d == 0:
            best = d
        d += base
    return best


def _aligned_divisors(n, base, cap):
    """All d <= cap with d % base == 0 and n % d == 0."""
    out = []
    d = base
    limit = min(n, cap)
    while d <= limit:
        if n % d == 0:
            out.append(d)
        d += base
    return out


def _vmem_budget_bytes():
    """Generation-aware budget for the total double-buffered block footprint."""
    try:
        cap = pltpu.get_tpu_info().vmem_capacity_bytes
    except Exception:                       # pragma: no cover - CPU / unknown gen
        cap = 64 << 20                      # assume the smallest (v7x) VMEM
    # ~40% of physical VMEM, never more than ~28 MiB (leaves compiler headroom
    # on v7x's 64 MiB and keeps v5e/v6e tiles comfortably pipelined).
    return min(cap * 2 // 5, 28 << 20)


def _choose_tiles(R, L, itemsize, budget_bytes):
    """Pick (R_t, L_t) for pre-padded R (mult. of sublanes) and L (mult. of 128).

    Double-buffered bytes per grid step:
        2 * (x0 + x1 + out) = 8 * R_t * L_t * itemsize
      + 2 * R_t * 128 * 4   (f32 K table, lane-padded to 128)
    """
    sub = _sublane(itemsize)
    k_row_bytes = 2 * 128 * 4
    # Lane tile first: as wide as possible while leaving room for >= sub rows.
    lane_cap = max(128, budget_bytes // (8 * sub * itemsize))
    L_t = _largest_aligned_divisor(L, 128, min(L, lane_cap)) or 128
    # Row tile under the remaining budget (K bytes included).
    row_cap = max(sub, budget_bytes // (8 * L_t * itemsize + k_row_bytes))
    R_t = _largest_aligned_divisor(R, sub, min(R, row_cap)) or sub
    # v7x megacore: prefer an even total block count so both TensorCores get
    # the same number of "parallel" blocks.  Only shrink along an axis where an
    # aligned divisor exists; tiny problems that only fit one block are left.
    if ((R // R_t) * (L // L_t)) % 2 == 1:
        even_rows = [d for d in _aligned_divisors(R, sub, R_t) if (R // d) % 2 == 0]
        even_lanes = [d for d in _aligned_divisors(L, 128, L_t) if (L // d) % 2 == 0]
        if even_rows:
            R_t = max(even_rows)
        elif even_lanes:
            L_t = max(even_lanes)
    return R_t, L_t


# ----------------------------- Pallas kernel --------------------------------

def _upsample1d_kernel(k_ref, x0_ref, x1_ref, o_ref):
    # k_ref:  (R_t, 4) f32      per-row [K00, K01, K10, K11]
    # x0_ref: (R_t, L_t)        even input channel of each group (dense block)
    # x1_ref: (R_t, L_t)        odd  input channel of each group (dense block)
    # o_ref:  (R_t, 2*L_t)      lane-dense interleaved output tile
    k = k_ref[...]
    x0 = x0_ref[...].astype(jnp.float32)
    x1 = x1_ref[...].astype(jnp.float32)
    # out[r, 2l + 0] = K00 * x0 + K10 * x1
    # out[r, 2l + 1] = K01 * x0 + K11 * x1
    y0 = x0 * k[:, 0:1] + x1 * k[:, 2:3]
    y1 = x0 * k[:, 1:2] + x1 * k[:, 3:4]
    rt, lt = y0.shape
    # In-kernel lane interleave (XLU; the VPU/EUP have plenty of slack on this
    # HBM-bound kernel) -> single lane-dense store.
    o_ref[...] = jnp.stack([y0, y1], axis=-1).reshape(rt, 2 * lt).astype(o_ref.dtype)


def invertible_upsampling_1d(x, kernel_matrix):
    """x: (N, C, L) with C = 2*low.  Returns (N, low, 2*L)."""
    N, C, L = x.shape
    low = kernel_matrix.shape[0]
    assert C == 2 * low

    R = N * low
    itemsize = jnp.dtype(x.dtype).itemsize
    sub = _sublane(itemsize)

    # Pad to hardware alignment (only costs an HBM pass for unaligned shapes).
    L_pad = _round_up(L, 128)
    R_pad = _round_up(R, sub)
    if L_pad != L:
        x = jnp.pad(x, ((0, 0), (0, 0), (0, L_pad - L)))
    # Free reshape (row-major): row r = n*low + g holds [x[n,2g,:], x[n,2g+1,:]].
    x_flat = x.reshape(R, 2 * L_pad)
    if R_pad != R:
        x_flat = jnp.pad(x_flat, ((0, R_pad - R), (0, 0)))

    # Per-row K table in f32 (tiny, fetched once per row block).
    k_rows = jnp.tile(kernel_matrix.reshape(low, 4).astype(jnp.float32), (N, 1))
    if R_pad != R:
        k_rows = jnp.pad(k_rows, ((0, R_pad - R), (0, 0)))

    budget = _vmem_budget_bytes()
    R_t, L_t = _choose_tiles(R_pad, L_pad, itemsize, budget)
    grid = (R_pad // R_t, L_pad // L_t)
    lane_blocks = L_pad // L_t            # block offset of the x1 half

    # Explicit VMEM limit sized from the actual double-buffered blocks.
    step_bytes = 8 * R_t * L_t * itemsize + 2 * R_t * 128 * 4
    vmem_limit = int(max(16 << 20, step_bytes + (4 << 20)))

    out_flat = pl.pallas_call(
        _upsample1d_kernel,
        out_shape=jax.ShapeDtypeStruct((R_pad, 2 * L_pad), x.dtype),
        grid_spec=pltpu.PrefetchScalarGridSpec(
            num_scalar_prefetch=0,
            grid=grid,
            in_specs=[
                pl.BlockSpec((R_t, 4), lambda i, j: (i, 0)),                  # K (f32)
                pl.BlockSpec((R_t, L_t), lambda i, j: (i, j)),                # x0 half
                pl.BlockSpec((R_t, L_t), lambda i, j: (i, j + lane_blocks)),  # x1 half
            ],
            out_specs=pl.BlockSpec((R_t, 2 * L_t), lambda i, j: (i, j)),
        ),
        compiler_params=pltpu.CompilerParams(
            dimension_semantics=("parallel", "parallel"),
            vmem_limit_bytes=vmem_limit),
    )(k_rows, x_flat, x_flat)

    out = out_flat
    if R_pad != R or L_pad != L:
        out = out_flat[:R, :2 * L]
    return out.reshape(N, low, 2 * L)     # free reshape


# ----------------------------- pure-JAX reference ---------------------------

def _reference_forward(x, kernel_matrix):
    N, C, L = x.shape
    low = kernel_matrix.shape[0]
    x_r = x.reshape(N, low, 2, L)
    y = jnp.einsum('ngil,gik->nglk', x_r, kernel_matrix)     # (N, low, L, 2)
    return y.reshape(N, low, 2 * L)


# ----------------------------- main ------------------------------------------

if __name__ == "__main__":
    key = jax.random.PRNGKey(0)

    in_channels = 4          # high channel number (conv_transpose input channels)
    low = in_channels // 2   # out_channels = low_channel_number
    N, L = 2, 16

    x = jax.random.normal(key, (N, in_channels, L), dtype=jnp.float32)

    weight = _haar_cayley_weight_1d(low)           # (low, 2, 2) "haar"/cayley init
    kernel_matrix = _cayley_kernel_matrix(weight)  # orthogonal (low, 2, 2)

    out = invertible_upsampling_1d(x, kernel_matrix)
    out = jax.block_until_ready(out)

    ref = _reference_forward(x, kernel_matrix)
    assert out.shape == (N, low, 2 * L), out.shape
    assert jnp.allclose(out, ref, atol=1e-5, rtol=1e-5), "mismatch vs reference"

    print("KERNEL_OK")
</pallas_src>

<mosaic_0001>
module attributes {stable_mosaic.version = 11 : i64} {
  func.func @_upsample1d_kernel(%arg0: i32, %arg1: i32, %arg2: memref<8x4xf32, #tpu.memory_space<vmem>>, %arg3: memref<8x128xf32, #tpu.memory_space<vmem>>, %arg4: memref<8x128xf32, #tpu.memory_space<vmem>>, %arg5: memref<8x256xf32, #tpu.memory_space<vmem>>) attributes {dimension_semantics = [#tpu.dimension_semantics<parallel>, #tpu.dimension_semantics<parallel>], iteration_bounds = array<i64: 1, 1>, scalar_prefetch = 0 : i64, scratch_operands = 0 : i64, tpu.core_type = #tpu.core_type<tc>, window_params = [{transform_indices = @transform_0, window_bounds = array<i64: 8, 4>}, {transform_indices = @transform_1, window_bounds = array<i64: 8, 128>}, {transform_indices = @transform_2, window_bounds = array<i64: 8, 128>}, {transform_indices = @transform_3, window_bounds = array<i64: 8, 256>}]} {
    %c0 = arith.constant 0 : index
    %c0_0 = arith.constant 0 : index
    %0 = vector.load %arg2[%c0, %c0_0] : memref<8x4xf32, #tpu.memory_space<vmem>>, vector<8x4xf32>
    %c0_1 = arith.constant 0 : index
    %c0_2 = arith.constant 0 : index
    %1 = vector.load %arg3[%c0_1, %c0_2] : memref<8x128xf32, #tpu.memory_space<vmem>>, vector<8x128xf32>
    %c0_3 = arith.constant 0 : index
    %c0_4 = arith.constant 0 : index
    %2 = vector.load %arg4[%c0_3, %c0_4] : memref<8x128xf32, #tpu.memory_space<vmem>>, vector<8x128xf32>
    %3 = vector.extract_strided_slice %0 {offsets = [0, 0], sizes = [8, 1], strides = [1, 1]} : vector<8x4xf32> to vector<8x1xf32>
    %4 = vector.broadcast %3 : vector<8x1xf32> to vector<8x128xf32>
    %5 = arith.mulf %1, %4 : vector<8x128xf32>
    %6 = vector.extract_strided_slice %0 {offsets = [0, 2], sizes = [8, 1], strides = [1, 1]} : vector<8x4xf32> to vector<8x1xf32>
    %7 = vector.broadcast %6 : vector<8x1xf32> to vector<8x128xf32>
    %8 = arith.mulf %2, %7 : vector<8x128xf32>
    %9 = arith.addf %5, %8 : vector<8x128xf32>
    %10 = vector.extract_strided_slice %0 {offsets = [0, 1], sizes = [8, 1], strides = [1, 1]} : vector<8x4xf32> to vector<8x1xf32>
    %11 = vector.broadcast %10 : vector<8x1xf32> to vector<8x128xf32>
    %12 = arith.mulf %1, %11 : vector<8x128xf32>
    %13 = vector.extract_strided_slice %0 {offsets = [0, 3], sizes = [8, 1], strides = [1, 1]} : vector<8x4xf32> to vector<8x1xf32>
    %14 = vector.broadcast %13 : vector<8x1xf32> to vector<8x128xf32>
    %15 = arith.mulf %2, %14 : vector<8x128xf32>
    %16 = arith.addf %12, %15 : vector<8x128xf32>
    %17 = vector.shape_cast %9 : vector<8x128xf32> to vector<8x128x1xf32>
    %18 = vector.shape_cast %16 : vector<8x128xf32> to vector<8x128x1xf32>
    %19 = tpu.concatenate %17, %18 in 2 : vector<8x128x1xf32>, vector<8x128x1xf32> -> vector<8x128x2xf32>
    %20 = vector.shape_cast %19 : vector<8x128x2xf32> to vector<8x256xf32>
    %c0_5 = arith.constant 0 : index
    %c0_6 = arith.constant 0 : index
    %21 = vector.load %arg5[%c0_5, %c0_6] : memref<8x256xf32, #tpu.memory_space<vmem>>, vector<8x256xf32>
    tpu.vector_store %arg5[%c0_5, %c0_6], %20 {strides = array<i32>} : memref<8x256xf32, #tpu.memory_space<vmem>>, vector<8x256xf32>,
    return
  }
  func.func @transform_0(%arg0: i32, %arg1: i32) -> (i32, i32) {
    %c0_i32 = arith.constant 0 : i32
    %c0_i32_0 = arith.constant 0 : i32
    return %arg0, %c0_i32 : i32, i32
  }
  func.func @transform_1(%arg0: i32, %arg1: i32) -> (i32, i32) {
    %c0_i32 = arith.constant 0 : i32
    return %arg0, %arg1 : i32, i32
  }
  func.func @transform_2(%arg0: i32, %arg1: i32) -> (i32, i32) {
    %c1_i32 = arith.constant 1 : i32
    %0 = arith.addi %arg1, %c1_i32 : i32
    %c0_i32 = arith.constant 0 : i32
    return %arg0, %0 : i32, i32
  }
  func.func @transform_3(%arg0: i32, %arg1: i32) -> (i32, i32) {
    %c0_i32 = arith.constant 0 : i32
    return %arg0, %arg1 : i32, i32
  }
}

</mosaic_0001>

<llo_original>
// kernel: tpu_custom_call.1
$region0: #{tpu_custom_call.1}
  #allocation0 [shape = 'u32[]', space=smem, size = 0x4, offset = 0x4, fixed_abs, tag = 'smem constant byte address 0x4 - core index']
  #allocation1 [shape = 'u32[72,128]{1,0:T(1,128)}', space=vmem, size = 0x9000, scoped, tag = 'internal scratch']
  %s0 = inlined_call_operand.vmem [shape: f32[8,4], index: 0, kind: input, shape index: {}]
  %s1 = inlined_call_operand.hbm [shape: f32[8,256], index: 1, kind: input, shape index: {}]
  %s2 = inlined_call_operand.hbm [shape: f32[8,256], index: 2, kind: input, shape index: {}]
  %s3 = inlined_call_operand.hbm [shape: f32[8,256], index: 3, kind: output, shape index: {}]
  %s4 = sld [smem:[#allocation0]]
  $region30: #{tpu_custom_call.1} parent=0
    _
  %s6 = ssub.s32 1, %s4
  %s7 = scalar_select 0, %s6, %s4
  $region1: #{tpu_custom_call.1} parent=0
    #allocation2 [shape = 'u8[4096]{0}', space=vmem, size = 0x1000, scoped, tag = 'input window, operand 1, single buffered']
    #allocation3 [shape = 's32[1]{0}', space=sflag, size = 0x4, scoped, tag = 'scoped memory for tpu_custom_call.1']
    #allocation4 [shape = 's32[1]{0}', space=sflag, size = 0x4, scoped, tag = 'scoped memory for tpu_custom_call.1']
    #allocation5 [shape = 'u8[4096]{0}', space=vmem, size = 0x1000, scoped, tag = 'input window, operand 2, single buffered']
    #allocation6 [shape = 's32[1]{0}', space=sflag, size = 0x4, scoped, tag = 'scoped memory for tpu_custom_call.1']
    #allocation7 [shape = 'u8[8192]{0}', space=vmem, size = 0x2000, scoped, tag = 'output window, operand 0, single buffered']
    %8 = vsyncpa [#allocation3], 0
    %9 = vsyncpa [#allocation6], 0
    %10 = vsyncpa [#allocation4], 0
    // Predicated region
    $region2: #{tpu_custom_call.1} parent=1 // pred_check
      _
    $region3: #{tpu_custom_call.1} parent=1 // pred_check_branch
      %12 = sbr.rel (0) target = $region5
    $region4: #{tpu_custom_call.1} parent=1 // pred_region
      _
    $region5: #{tpu_custom_call.1} parent=1 // pred_fallthru
      _
    // Predicated region
    $region6: #{tpu_custom_call.1} parent=1 // pred_check
      _
    $region7: #{tpu_custom_call.1} parent=1 // pred_check_branch
      %14 = sbr.rel (0) target = $region9
    $region8: #{tpu_custom_call.1} parent=1 // pred_region
      %16 = vsyncadd [#allocation3], 0
      %s18 = sshll.u32 %s1, 4
      %s19 = int_to_ptr.hbm [resolvable:$true] %s18
      %s20 = sshll.u32 [#allocation2], 4
      %s21 = int_to_ptr.vmem [resolvable:$true] %s20
      %23 = dma.hbm_to_vmem [thread:$0]  %s19, 128, %s21, [#allocation3]
    $region9: #{tpu_custom_call.1} parent=1 // pred_fallthru
      _
    // Predicated region
    $region10: #{tpu_custom_call.1} parent=1 // pred_check
      _
    $region11: #{tpu_custom_call.1} parent=1 // pred_check_branch
      %25 = sbr.rel (0) target = $region13
    $region12: #{tpu_custom_call.1} parent=1 // pred_region
      %s26 = sadd.s32 0, 1
      %28 = vsyncadd [#allocation6], 0
      %s29 = smul.addr %s26, 8
      %s30 = scalar_lea.hbm %s2, %s29
      %s32 = sshll.u32 %s30, 4
      %s33 = int_to_ptr.hbm [resolvable:$true] %s32
      %s34 = sshll.u32 [#allocation5], 4
      %s35 = int_to_ptr.vmem [resolvable:$true] %s34
      %37 = dma.hbm_to_vmem [thread:$0]  %s33, 128, %s35, [#allocation6]
    $region13: #{tpu_custom_call.1} parent=1 // pred_fallthru
      _
    // Predicated region
    $region14: #{tpu_custom_call.1} parent=1 // pred_check
      _
    $region15: #{tpu_custom_call.1} parent=1 // pred_check_branch
      %39 = sbr.rel (0) target = $region17
    $region16: #{tpu_custom_call.1} parent=1 // pred_region
      %41 = dma.done [#allocation3], 128
    $region17: #{tpu_custom_call.1} parent=1 // pred_fallthru
      _
    // Predicated region
    $region18: #{tpu_custom_call.1} parent=1 // pred_check
      _
    $region19: #{tpu_custom_call.1} parent=1 // pred_check_branch
      %43 = sbr.rel (0) target = $region21
    $region20: #{tpu_custom_call.1} parent=1 // pred_region
      %45 = dma.done [#allocation6], 128
    $region21: #{tpu_custom_call.1} parent=1 // pred_fallthru
      _
    %s46 = sadd.s32 0, 1
    %v47 = vld [vmem:[%s0] sm:$0xff]
    %v48 = vld [vmem:[#allocation2] sm:$0xff]
    %v49 = vld [vmem:[#allocation5] sm:$0xff]
    %51 = vset.pattern.permute.xlu0 0
    %52 = vperm.xlu0 %51, %v47
    %v53 = vpop.permute.xlu0 %52
    %v55 = vmul.f32 %v48, %v53
    %56 = vset.pattern.permute.xlu0 2
    %57 = vperm.xlu0 %56, %v47
    %v58 = vpop.permute.xlu0 %57
    %v60 = vmul.f32 %v49, %v58
    %v61 = vadd.f32 %v55, %v60
    %62 = vset.pattern.permute.xlu0 1
    %63 = vperm.xlu0 %62, %v47
    %v64 = vpop.permute.xlu0 %63
    %v66 = vmul.f32 %v48, %v64
    %67 = vset.pattern.permute.xlu0 3
    %68 = vperm.xlu0 %67, %v47
    %v69 = vpop.permute.xlu0 %68
    %v71 = vmul.f32 %v49, %v69
    %v72 = vadd.f32 %v66, %v71
    %v73 = vperm.slane %v61, 0
    %v74 = vlaneseq
    %v75 = vshrl.u32 %v74, 7
    %77 = vset.pattern.permute.xlu0 %v75
    %78 = vperm.xlu0 %77, %v73
    %v79 = vpop.permute.xlu0 %78
    %v80 = vlaneseq
    %v81 = vshrl.u32 %v80, 7
    %v82 = vadd.s32 %v81, 8
    %83 = vset.pattern.permute.xlu0 %v82
    %84 = vperm.xlu0 %83, %v73
    %v85 = vpop.permute.xlu0 %84
    %v86 = vlaneseq
    %v87 = vshrl.u32 %v86, 7
    %v88 = vadd.s32 %v87, 16
    %89 = vset.pattern.permute.xlu0 %v88
    %90 = vperm.xlu0 %89, %v73
    %v91 = vpop.permute.xlu0 %90
    %v92 = vlaneseq
    %v93 = vshrl.u32 %v92, 7
    %v94 = vadd.s32 %v93, 24
    %95 = vset.pattern.permute.xlu0 %v94
    %96 = vperm.xlu0 %95, %v73
    %v97 = vpop.permute.xlu0 %96
    %v98 = vlaneseq
    %v99 = vshrl.u32 %v98, 7
    %v100 = vadd.s32 %v99, 32
    %101 = vset.pattern.permute.xlu0 %v100
    %102 = vperm.xlu0 %101, %v73
    %v103 = vpop.permute.xlu0 %102
    %v104 = vlaneseq
    %v105 = vshrl.u32 %v104, 7
    %v106 = vadd.s32 %v105, 40
    %107 = vset.pattern.permute.xlu0 %v106
    %108 = vperm.xlu0 %107, %v73
    %v109 = vpop.permute.xlu0 %108
    %v110 = vlaneseq
    %v111 = vshrl.u32 %v110, 7
    %v112 = vadd.s32 %v111, 48
    %113 = vset.pattern.permute.xlu0 %v112
    %114 = vperm.xlu0 %113, %v73
    %v115 = vpop.permute.xlu0 %114
    %v116 = vlaneseq
    %v117 = vshrl.u32 %v116, 7
    %v118 = vadd.s32 %v117, 56
    %119 = vset.pattern.permute.xlu0 %v118
    %120 = vperm.xlu0 %119, %v73
    %v121 = vpop.permute.xlu0 %120
    %v122 = vlaneseq
    %v123 = vshrl.u32 %v122, 7
    %v124 = vadd.s32 %v123, 64
    %125 = vset.pattern.permute.xlu0 %v124
    %126 = vperm.xlu0 %125, %v73
    %v127 = vpop.permute.xlu0 %126
    %v128 = vlaneseq
    %v129 = vshrl.u32 %v128, 7
    %v130 = vadd.s32 %v129, 72
    %131 = vset.pattern.permute.xlu0 %v130
    %132 = vperm.xlu0 %131, %v73
    %v133 = vpop.permute.xlu0 %132
    %v134 = vlaneseq
    %v135 = vshrl.u32 %v134, 7
    %v136 = vadd.s32 %v135, 80
    %137 = vset.pattern.permute.xlu0 %v136
    %138 = vperm.xlu0 %137, %v73
    %v139 = vpop.permute.xlu0 %138
    %v140 = vlaneseq
    %v141 = vshrl.u32 %v140, 7
    %v142 = vadd.s32 %v141, 88
    %143 = vset.pattern.permute.xlu0 %v142
    %144 = vperm.xlu0 %143, %v73
    %v145 = vpop.permute.xlu0 %144
    %v146 = vlaneseq
    %v147 = vshrl.u32 %v146, 7
    %v148 = vadd.s32 %v147, 96
    %149 = vset.pattern.permute.xlu0 %v148
    %150 = vperm.xlu0 %149, %v73
    %v151 = vpop.permute.xlu0 %150
    %v152 = vlaneseq
    %v153 = vshrl.u32 %v152, 7
    %v154 = vadd.s32 %v153, 104
    %155 = vset.pattern.permute.xlu0 %v154
    %156 = vperm.xlu0 %155, %v73
    %v157 = vpop.permute.xlu0 %156
    %v158 = vlaneseq
    %v159 = vshrl.u32 %v158, 7
    %v160 = vadd.s32 %v159, 112
    %161 = vset.pattern.permute.xlu0 %v160
    %162 = vperm.xlu0 %161, %v73
    %v163 = vpop.permute.xlu0 %162
    %v164 = vlaneseq
    %v165 = vshrl.u32 %v164, 7
    %v166 = vadd.s32 %v165, 120
    %167 = vset.pattern.permute.xlu0 %v166
    %168 = vperm.xlu0 %167, %v73
    %v169 = vpop.permute.xlu0 %168
    %v170 = vperm.slane %v61, 1
    %v171 = vlaneseq
    %v172 = vshrl.u32 %v171, 7
    %174 = vset.pattern.permute.xlu0 %v172
    %175 = vperm.xlu0 %174, %v170
    %v176 = vpop.permute.xlu0 %175
    %v177 = vlaneseq
    %v178 = vshrl.u32 %v177, 7
    %v179 = vadd.s32 %v178, 8
    %180 = vset.pattern.permute.xlu0 %v179
    %181 = vperm.xlu0 %180, %v170
    %v182 = vpop.permute.xlu0 %181
    %v183 = vlaneseq
    %v184 = vshrl.u32 %v183, 7
    %v185 = vadd.s32 %v184, 16
    %186 = vset.pattern.permute.xlu0 %v185
    %187 = vperm.xlu0 %186, %v170
    %v188 = vpop.permute.xlu0 %187
    %v189 = vlaneseq
    %v190 = vshrl.u32 %v189, 7
    %v191 = vadd.s32 %v190, 24
    %192 = vset.pattern.permute.xlu0 %v191
    %193 = vperm.xlu0 %192, %v170
    %v194 = vpop.permute.xlu0 %193
    %v195 = vlaneseq
    %v196 = vshrl.u32 %v195, 7
    %v197 = vadd.s32 %v196, 32
    %198 = vset.pattern.permute.xlu0 %v197
    %199 = vperm.xlu0 %198, %v170
    %v200 = vpop.permute.xlu0 %199
    %v201 = vlaneseq
    %v202 = vshrl.u32 %v201, 7
    %v203 = vadd.s32 %v202, 40
    %204 = vset.pattern.permute.xlu0 %v203
    %205 = vperm.xlu0 %204, %v170
    %v206 = vpop.permute.xlu0 %205
    %v207 = vlaneseq
    %v208 = vshrl.u32 %v207, 7
    %v209 = vadd.s32 %v208, 48
    %210 = vset.pattern.permute.xlu0 %v209
    %211 = vperm.xlu0 %210, %v170
    %v212 = vpop.permute.xlu0 %211
    %v213 = vlaneseq
    %v214 = vshrl.u32 %v213, 7
    %v215 = vadd.s32 %v214, 56
    %216 = vset.pattern.permute.xlu0 %v215
    %217 = vperm.xlu0 %216, %v170
    %v218 = vpop.permute.xlu0 %217
    %v219 = vlaneseq
    %v220 = vshrl.u32 %v219, 7
    %v221 = vadd.s32 %v220, 64
    %222 = vset.pattern.permute.xlu0 %v221
    %223 = vperm.xlu0 %222, %v170
    %v224 = vpop.permute.xlu0 %223
    %v225 = vlaneseq
    %v226 = vshrl.u32 %v225, 7
    %v227 = vadd.s32 %v226, 72
    %228 = vset.pattern.permute.xlu0 %v227
    %229 = vperm.xlu0 %228, %v170
    %v230 = vpop.permute.xlu0 %229
    %v231 = vlaneseq
    %v232 = vshrl.u32 %v231, 7
    %v233 = vadd.s32 %v232, 80
    %234 = vset.pattern.permute.xlu0 %v233
    %235 = vperm.xlu0 %234, %v170
    %v236 = vpop.permute.xlu0 %235
    %v237 = vlaneseq
    %v238 = vshrl.u32 %v237, 7
    %v239 = vadd.s32 %v238, 88
    %240 = vset.pattern.permute.xlu0 %v239
    %241 = vperm.xlu0 %240, %v170
    %v242 = vpop.permute.xlu0 %241
    %v243 = vlaneseq
    %v244 = vshrl.u32 %v243, 7
    %v245 = vadd.s32 %v244, 96
    %246 = vset.pattern.permute.xlu0 %v245
    %247 = vperm.xlu0 %246, %v170
    %v248 = vpop.permute.xlu0 %247
    %v249 = vlaneseq
    %v250 = vshrl.u32 %v249, 7
    %v251 = vadd.s32 %v250, 104
    %252 = vset.pattern.permute.xlu0 %v251
    %253 = vperm.xlu0 %252, %v170
    %v254 = vpop.permute.xlu0 %253
    %v255 = vlaneseq
    %v256 = vshrl.u32 %v255, 7
    %v257 = vadd.s32 %v256, 112
    %258 = vset.pattern.permute.xlu0 %v257
    %259 = vperm.xlu0 %258, %v170
    %v260 = vpop.permute.xlu0 %259
    %v261 = vlaneseq
    %v262 = vshrl.u32 %v261, 7
    %v263 = vadd.s32 %v262, 120
    %264 = vset.pattern.permute.xlu0 %v263
    %265 = vperm.xlu0 %264, %v170
    %v266 = vpop.permute.xlu0 %265
    %v267 = vperm.slane %v61, 2
    %v268 = vlaneseq
    %v269 = vshrl.u32 %v268, 7
    %271 = vset.pattern.permute.xlu0 %v269
    %272 = vperm.xlu0 %271, %v267
    %v273 = vpop.permute.xlu0 %272
    %v274 = vlaneseq
    %v275 = vshrl.u32 %v274, 7
    %v276 = vadd.s32 %v275, 8
    %277 = vset.pattern.permute.xlu0 %v276
    %278 = vperm.xlu0 %277, %v267
    %v279 = vpop.permute.xlu0 %278
    %v280 = vlaneseq
    %v281 = vshrl.u32 %v280, 7
    %v282 = vadd.s32 %v281, 16
    %283 = vset.pattern.permute.xlu0 %v282
    %284 = vperm.xlu0 %283, %v267
    %v285 = vpop.permute.xlu0 %284
    %v286 = vlaneseq
    %v287 = vshrl.u32 %v286, 7
    %v288 = vadd.s32 %v287, 24
    %289 = vset.pattern.permute.xlu0 %v288
    %290 = vperm.xlu0 %289, %v267
    %v291 = vpop.permute.xlu0 %290
    %v292 = vlaneseq
    %v293 = vshrl.u32 %v292, 7
    %v294 = vadd.s32 %v293, 32
    %295 = vset.pattern.permute.xlu0 %v294
    %296 = vperm.xlu0 %295, %v267
    %v297 = vpop.permute.xlu0 %296
    %v298 = vlaneseq
    %v299 = vshrl.u32 %v298, 7
    %v300 = vadd.s32 %v299, 40
    %301 = vset.pattern.permute.xlu0 %v300
    %302 = vperm.xlu0 %301, %v267
    %v303 = vpop.permute.xlu0 %302
    %v304 = vlaneseq
    %v305 = vshrl.u32 %v304, 7
    %v306 = vadd.s32 %v305, 48
    %307 = vset.pattern.permute.xlu0 %v306
    %308 = vperm.xlu0 %307, %v267
    %v309 = vpop.permute.xlu0 %308
    %v310 = vlaneseq
    %v311 = vshrl.u32 %v310, 7
    %v312 = vadd.s32 %v311, 56
    %313 = vset.pattern.permute.xlu0 %v312
    %314 = vperm.xlu0 %313, %v267
    %v315 = vpop.permute.xlu0 %314
    %v316 = vlaneseq
    %v317 = vshrl.u32 %v316, 7
    %v318 = vadd.s32 %v317, 64
    %319 = vset.pattern.permute.xlu0 %v318
    %320 = vperm.xlu0 %319, %v267
    %v321 = vpop.permute.xlu0 %320
    %v322 = vlaneseq
    %v323 = vshrl.u32 %v322, 7
    %v324 = vadd.s32 %v323, 72
    %325 = vset.pattern.permute.xlu0 %v324
    %326 = vperm.xlu0 %325, %v267
    %v327 = vpop.permute.xlu0 %326
    %v328 = vlaneseq
    %v329 = vshrl.u32 %v328, 7
    %v330 = vadd.s32 %v329, 80
    %331 = vset.pattern.permute.xlu0 %v330
    %332 = vperm.xlu0 %331, %v267
    %v333 = vpop.permute.xlu0 %332
    %v334 = vlaneseq
    %v335 = vshrl.u32 %v334, 7
    %v336 = vadd.s32 %v335, 88
    %337 = vset.pattern.permute.xlu0 %v336
    %338 = vperm.xlu0 %337, %v267
    %v339 = vpop.permute.xlu0 %338
    %v340 = vlaneseq
    %v341 = vshrl.u32 %v340, 7
    %v342 = vadd.s32 %v341, 96
    %343 = vset.pattern.permute.xlu0 %v342
    %344 = vperm.xlu0 %343, %v267
    %v345 = vpop.permute.xlu0 %344
    %v346 = vlaneseq
    %v347 = vshrl.u32 %v346, 7
    %v348 = vadd.s32 %v347, 104
    %349 = vset.pattern.permute.xlu0 %v348
    %350 = vperm.xlu0 %349, %v267
    %v351 = vpop.permute.xlu0 %350
    %v352 = vlaneseq
    %v353 = vshrl.u32 %v352, 7
    %v354 = vadd.s32 %v353, 112
    %355 = vset.pattern.permute.xlu0 %v354
    %356 = vperm.xlu0 %355, %v267
    %v357 = vpop.permute.xlu0 %356
    %v358 = vlaneseq
    %v359 = vshrl.u32 %v358, 7
    %v360 = vadd.s32 %v359, 120
    %361 = vset.pattern.permute.xlu0 %v360
    %362 = vperm.xlu0 %361, %v267
    %v363 = vpop.permute.xlu0 %362
    %v364 = vperm.slane %v61, 3
    %v365 = vlaneseq
    %v366 = vshrl.u32 %v365, 7
    %368 = vset.pattern.permute.xlu0 %v366
    %369 = vperm.xlu0 %368, %v364
    %v370 = vpop.permute.xlu0 %369
    %v371 = vlaneseq
    %v372 = vshrl.u32 %v371, 7
    %v373 = vadd.s32 %v372, 8
    %374 = vset.pattern.permute.xlu0 %v373
    %375 = vperm.xlu0 %374, %v364
    %v376 = vpop.permute.xlu0 %375
    %v377 = vlaneseq
    %v378 = vshrl.u32 %v377, 7
    %v379 = vadd.s32 %v378, 16
    %380 = vset.pattern.permute.xlu0 %v379
    %381 = vperm.xlu0 %380, %v364
    %v382 = vpop.permute.xlu0 %381
    %v383 = vlaneseq
    %v384 = vshrl.u32 %v383, 7
    %v385 = vadd.s32 %v384, 24
    %386 = vset.pattern.permute.xlu0 %v385
    %387 = vperm.xlu0 %386, %v364
    %v388 = vpop.permute.xlu0 %387
    %v389 = vlaneseq
    %v390 = vshrl.u32 %v389, 7
    %v391 = vadd.s32 %v390, 32
    %392 = vset.pattern.permute.xlu0 %v391
    %393 = vperm.xlu0 %392, %v364
    %v394 = vpop.permute.xlu0 %393
    %v395 = vlaneseq
    %v396 = vshrl.u32 %v395, 7
    %v397 = vadd.s32 %v396, 40
    %398 = vset.pattern.permute.xlu0 %v397
    %399 = vperm.xlu0 %398, %v364
    %v400 = vpop.permute.xlu0 %399
    %v401 = vlaneseq
    %v402 = vshrl.u32 %v401, 7
    %v403 = vadd.s32 %v402, 48
    %404 = vset.pattern.permute.xlu0 %v403
    %405 = vperm.xlu0 %404, %v364
    %v406 = vpop.permute.xlu0 %405
    %v407 = vlaneseq
    %v408 = vshrl.u32 %v407, 7
    %v409 = vadd.s32 %v408, 56
    %410 = vset.pattern.permute.xlu0 %v409
    %411 = vperm.xlu0 %410, %v364
    %v412 = vpop.permute.xlu0 %411
    %v413 = vlaneseq
    %v414 = vshrl.u32 %v413, 7
    %v415 = vadd.s32 %v414, 64
    %416 = vset.pattern.permute.xlu0 %v415
    %417 = vperm.xlu0 %416, %v364
    %v418 = vpop.permute.xlu0 %417
    %v419 = vlaneseq
    %v420 = vshrl.u32 %v419, 7
    %v421 = vadd.s32 %v420, 72
    %422 = vset.pattern.permute.xlu0 %v421
    %423 = vperm.xlu0 %422, %v364
    %v424 = vpop.permute.xlu0 %423
    %v425 = vlaneseq
    %v426 = vshrl.u32 %v425, 7
    %v427 = vadd.s32 %v426, 80
    %428 = vset.pattern.permute.xlu0 %v427
    %429 = vperm.xlu0 %428, %v364
    %v430 = vpop.permute.xlu0 %429
    %v431 = vlaneseq
    %v432 = vshrl.u32 %v431, 7
    %v433 = vadd.s32 %v432, 88
    %434 = vset.pattern.permute.xlu0 %v433
    %435 = vperm.xlu0 %434, %v364
    %v436 = vpop.permute.xlu0 %435
    %v437 = vlaneseq
    %v438 = vshrl.u32 %v437, 7
    %v439 = vadd.s32 %v438, 96
    %440 = vset.pattern.permute.xlu0 %v439
    %441 = vperm.xlu0 %440, %v364
    %v442 = vpop.permute.xlu0 %441
    %v443 = vlaneseq
    %v444 = vshrl.u32 %v443, 7
    %v445 = vadd.s32 %v444, 104
    %446 = vset.pattern.permute.xlu0 %v445
    %447 = vperm.xlu0 %446, %v364
    %v448 = vpop.permute.xlu0 %447
    %v449 = vlaneseq
    %v450 = vshrl.u32 %v449, 7
    %v451 = vadd.s32 %v450, 112
    %452 = vset.pattern.permute.xlu0 %v451
    %453 = vperm.xlu0 %452, %v364
    %v454 = vpop.permute.xlu0 %453
    %v455 = vlaneseq
    %v456 = vshrl.u32 %v455, 7
    %v457 = vadd.s32 %v456, 120
    %458 = vset.pattern.permute.xlu0 %v457
    %459 = vperm.xlu0 %458, %v364
    %v460 = vpop.permute.xlu0 %459
    %v461 = vperm.slane %v61, 4
    %v462 = vlaneseq
    %v463 = vshrl.u32 %v462, 7
    %465 = vset.pattern.permute.xlu0 %v463
    %466 = vperm.xlu0 %465, %v461
    %v467 = vpop.permute.xlu0 %466
    %v468 = vlaneseq
    %v469 = vshrl.u32 %v468, 7
    %v470 = vadd.s32 %v469, 8
    %471 = vset.pattern.permute.xlu0 %v470
    %472 = vperm.xlu0 %471, %v461
    %v473 = vpop.permute.xlu0 %472
    %v474 = vlaneseq
    %v475 = vshrl.u32 %v474, 7
    %v476 = vadd.s32 %v475, 16
    %477 = vset.pattern.permute.xlu0 %v476
    %478 = vperm.xlu0 %477, %v461
    %v479 = vpop.permute.xlu0 %478
    %v480 = vlaneseq
    %v481 = vshrl.u32 %v480, 7
    %v482 = vadd.s32 %v481, 24
    %483 = vset.pattern.permute.xlu0 %v482
    %484 = vperm.xlu0 %483, %v461
    %v485 = vpop.permute.xlu0 %484
    %v486 = vlaneseq
    %v487 = vshrl.u32 %v486, 7
    %v488 = vadd.s32 %v487, 32
    %489 = vset.pattern.permute.xlu0 %v488
    %490 = vperm.xlu0 %489, %v461
    %v491 = vpop.permute.xlu0 %490
    %v492 = vlaneseq
    %v493 = vshrl.u32 %v492, 7
    %v494 = vadd.s32 %v493, 40
    %495 = vset.pattern.permute.xlu0 %v494
    %496 = vperm.xlu0 %495, %v461
    %v497 = vpop.permute.xlu0 %496
    %v498 = vlaneseq
    %v499 = vshrl.u32 %v498, 7
    %v500 = vadd.s32 %v499, 48
    %501 = vset.pattern.permute.xlu0 %v500
    %502 = vperm.xlu0 %501, %v461
    %v503 = vpop.permute.xlu0 %502
    %v504 = vlaneseq
    %v505 = vshrl.u32 %v504, 7
    %v506 = vadd.s32 %v505, 56
    %507 = vset.pattern.permute.xlu0 %v506
    %508 = vperm.xlu0 %507, %v461
    %v509 = vpop.permute.xlu0 %508
    %v510 = vlaneseq
    %v511 = vshrl.u32 %v510, 7
    %v512 = vadd.s32 %v511, 64
    %513 = vset.pattern.permute.xlu0 %v512
    %514 = vperm.xlu0 %513, %v461
    %v515 = vpop.permute.xlu0 %514
    %v516 = vlaneseq
    %v517 = vshrl.u32 %v516, 7
    %v518 = vadd.s32 %v517, 72
    %519 = vset.pattern.permute.xlu0 %v518
    %520 = vperm.xlu0 %519, %v461
    %v521 = vpop.permute.xlu0 %520
    %v522 = vlaneseq
    %v523 = vshrl.u32 %v522, 7
    %v524 = vadd.s32 %v523, 80
    %525 = vset.pattern.permute.xlu0 %v524
    %526 = vperm.xlu0 %525, %v461
    %v527 = vpop.permute.xlu0 %526
    %v528 = vlaneseq
    %v529 = vshrl.u32 %v528, 7
    %v530 = vadd.s32 %v529, 88
    %531 = vset.pattern.permute.xlu0 %v530
    %532 = vperm.xlu0 %531, %v461
    %v533 = vpop.permute.xlu0 %532
    %v534 = vlaneseq
    %v535 = vshrl.u32 %v534, 7
    %v536 = vadd.s32 %v535, 96
    %537 = vset.pattern.permute.xlu0 %v536
    %538 = vperm.xlu0 %537, %v461
    %v539 = vpop.permute.xlu0 %538
    %v540 = vlaneseq
    %v541 = vshrl.u32 %v540, 7
    %v542 = vadd.s32 %v541, 104
    %543 = vset.pattern.permute.xlu0 %v542
    %544 = vperm.xlu0 %543, %v461
    %v545 = vpop.permute.xlu0 %544
    %v546 = vlaneseq
    %v547 = vshrl.u32 %v546, 7
    %v548 = vadd.s32 %v547, 112
    %549 = vset.pattern.permute.xlu0 %v548
    %550 = vperm.xlu0 %549, %v461
    %v551 = vpop.permute.xlu0 %550
    %v552 = vlaneseq
    %v553 = vshrl.u32 %v552, 7
    %v554 = vadd.s32 %v553, 120
    %555 = vset.pattern.permute.xlu0 %v554
    %556 = vperm.xlu0 %555, %v461
    %v557 = vpop.permute.xlu0 %556
    %v558 = vperm.slane %v61, 5
    %v559 = vlaneseq
    %v560 = vshrl.u32 %v559, 7
    %562 = vset.pattern.permute.xlu0 %v560
    %563 = vperm.xlu0 %562, %v558
    %v564 = vpop.permute.xlu0 %563
    %v565 = vlaneseq
    %v566 = vshrl.u32 %v565, 7
    %v567 = vadd.s32 %v566, 8
    %568 = vset.pattern.permute.xlu0 %v567
    %569 = vperm.xlu0 %568, %v558
    %v570 = vpop.permute.xlu0 %569
    %v571 = vlaneseq
    %v572 = vshrl.u32 %v571, 7
    %v573 = vadd.s32 %v572, 16
    %574 = vset.pattern.permute.xlu0 %v573
    %575 = vperm.xlu0 %574, %v558
    %v576 = vpop.permute.xlu0 %575
    %v577 = vlaneseq
    %v578 = vshrl.u32 %v577, 7
    %v579 = vadd.s32 %v578, 24
    %580 = vset.pattern.permute.xlu0 %v579
    %581 = vperm.xlu0 %580, %v558
    %v582 = vpop.permute.xlu0 %581
    %v583 = vlaneseq
    %v584 = vshrl.u32 %v583, 7
    %v585 = vadd.s32 %v584, 32
    %586 = vset.pattern.permute.xlu0 %v585
    %587 = vperm.xlu0 %586, %v558
    %v588 = vpop.permute.xlu0 %587
    %v589 = vlaneseq
    %v590 = vshrl.u32 %v589, 7
    %v591 = vadd.s32 %v590, 40
    %592 = vset.pattern.permute.xlu0 %v591
    %593 = vperm.xlu0 %592, %v558
    %v594 = vpop.permute.xlu0 %593
    %v595 = vlaneseq
    %v596 = vshrl.u32 %v595, 7
    %v597 = vadd.s32 %v596, 48
    %598 = vset.pattern.permute.xlu0 %v597
    %599 = vperm.xlu0 %598, %v558
    %v600 = vpop.permute.xlu0 %599
    %v601 = vlaneseq
    %v602 = vshrl.u32 %v601, 7
    %v603 = vadd.s32 %v602, 56
    %604 = vset.pattern.permute.xlu0 %v603
    %605 = vperm.xlu0 %604, %v558
    %v606 = vpop.permute.xlu0 %605
    %v607 = vlaneseq
    %v608 = vshrl.u32 %v607, 7
    %v609 = vadd.s32 %v608, 64
    %610 = vset.pattern.permute.xlu0 %v609
    %611 = vperm.xlu0 %610, %v558
    %v612 = vpop.permute.xlu0 %611
    %v613 = vlaneseq
    %v614 = vshrl.u32 %v613, 7
    %v615 = vadd.s32 %v614, 72
    %616 = vset.pattern.permute.xlu0 %v615
    %617 = vperm.xlu0 %616, %v558
    %v618 = vpop.permute.xlu0 %617
    %v619 = vlaneseq
    %v620 = vshrl.u32 %v619, 7
    %v621 = vadd.s32 %v620, 80
    %622 = vset.pattern.permute.xlu0 %v621
    %623 = vperm.xlu0 %622, %v558
    %v624 = vpop.permute.xlu0 %623
    %v625 = vlaneseq
    %v626 = vshrl.u32 %v625, 7
    %v627 = vadd.s32 %v626, 88
    %628 = vset.pattern.permute.xlu0 %v627
    %629 = vperm.xlu0 %628, %v558
    %v630 = vpop.permute.xlu0 %629
    %v631 = vlaneseq
    %v632 = vshrl.u32 %v631, 7
    %v633 = vadd.s32 %v632, 96
    %634 = vset.pattern.permute.xlu0 %v633
    %635 = vperm.xlu0 %634, %v558
    %v636 = vpop.permute.xlu0 %635
    %v637 = vlaneseq
    %v638 = vshrl.u32 %v637, 7
    %v639 = vadd.s32 %v638, 104
    %640 = vset.pattern.permute.xlu0 %v639
    %641 = vperm.xlu0 %640, %v558
    %v642 = vpop.permute.xlu0 %641
    %v643 = vlaneseq
    %v644 = vshrl.u32 %v643, 7
    %v645 = vadd.s32 %v644, 112
    %646 = vset.pattern.permute.xlu0 %v645
    %647 = vperm.xlu0 %646, %v558
    %v648 = vpop.permute.xlu0 %647
    %v649 = vlaneseq
    %v650 = vshrl.u32 %v649, 7
    %v651 = vadd.s32 %v650, 120
    %652 = vset.pattern.permute.xlu0 %v651
    %653 = vperm.xlu0 %652, %v558
    %v654 = vpop.permute.xlu0 %653
    %v655 = vperm.slane %v61, 6
    %v656 = vlaneseq
    %v657 = vshrl.u32 %v656, 7
    %659 = vset.pattern.permute.xlu0 %v657
    %660 = vperm.xlu0 %659, %v655
    %v661 = vpop.permute.xlu0 %660
    %v662 = vlaneseq
    %v663 = vshrl.u32 %v662, 7
    %v664 = vadd.s32 %v663, 8
    %665 = vset.pattern.permute.xlu0 %v664
    %666 = vperm.xlu0 %665, %v655
    %v667 = vpop.permute.xlu0 %666
    %v668 = vlaneseq
    %v669 = vshrl.u32 %v668, 7
    %v670 = vadd.s32 %v669, 16
    %671 = vset.pattern.permute.xlu0 %v670
    %672 = vperm.xlu0 %671, %v655
    %v673 = vpop.permute.xlu0 %672
    %v674 = vlaneseq
    %v675 = vshrl.u32 %v674, 7
    %v676 = vadd.s32 %v675, 24
    %677 = vset.pattern.permute.xlu0 %v676
    %678 = vperm.xlu0 %677, %v655
    %v679 = vpop.permute.xlu0 %678
    %v680 = vlaneseq
    %v681 = vshrl.u32 %v680, 7
    %v682 = vadd.s32 %v681, 32
    %683 = vset.pattern.permute.xlu0 %v682
    %684 = vperm.xlu0 %683, %v655
    %v685 = vpop.permute.xlu0 %684
    %v686 = vlaneseq
    %v687 = vshrl.u32 %v686, 7
    %v688 = vadd.s32 %v687, 40
    %689 = vset.pattern.permute.xlu0 %v688
    %690 = vperm.xlu0 %689, %v655
    %v691 = vpop.permute.xlu0 %690
    %v692 = vlaneseq
    %v693 = vshrl.u32 %v692, 7
    %v694 = vadd.s32 %v693, 48
    %695 = vset.pattern.permute.xlu0 %v694
    %696 = vperm.xlu0 %695, %v655
    %v697 = vpop.permute.xlu0 %696
    %v698 = vlaneseq
    %v699 = vshrl.u32 %v698, 7
    %v700 = vadd.s32 %v699, 56
    %701 = vset.pattern.permute.xlu0 %v700
    %702 = vperm.xlu0 %701, %v655
    %v703 = vpop.permute.xlu0 %702
    %v704 = vlaneseq
    %v705 = vshrl.u32 %v704, 7
    %v706 = vadd.s32 %v705, 64
    %707 = vset.pattern.permute.xlu0 %v706
    %708 = vperm.xlu0 %707, %v655
    %v709 = vpop.permute.xlu0 %708
    %v710 = vlaneseq
    %v711 = vshrl.u32 %v710, 7
    %v712 = vadd.s32 %v711, 72
    %713 = vset.pattern.permute.xlu0 %v712
    %714 = vperm.xlu0 %713, %v655
    %v715 = vpop.permute.xlu0 %714
    %v716 = vlaneseq
    %v717 = vshrl.u32 %v716, 7
    %v718 = vadd.s32 %v717, 80
    %719 = vset.pattern.permute.xlu0 %v718
    %720 = vperm.xlu0 %719, %v655
    %v721 = vpop.permute.xlu0 %720
    %v722 = vlaneseq
    %v723 = vshrl.u32 %v722, 7
    %v724 = vadd.s32 %v723, 88
    %725 = vset.pattern.permute.xlu0 %v724
    %726 = vperm.xlu0 %725, %v655
    %v727 = vpop.permute.xlu0 %726
    %v728 = vlaneseq
    %v729 = vshrl.u32 %v728, 7
    %v730 = vadd.s32 %v729, 96
    %731 = vset.pattern.permute.xlu0 %v730
    %732 = vperm.xlu0 %731, %v655
    %v733 = vpop.permute.xlu0 %732
    %v734 = vlaneseq
    %v735 = vshrl.u32 %v734, 7
    %v736 = vadd.s32 %v735, 104
    %737 = vset.pattern.permute.xlu0 %v736
    %738 = vperm.xlu0 %737, %v655
    %v739 = vpop.permute.xlu0 %738
    %v740 = vlaneseq
    %v741 = vshrl.u32 %v740, 7
    %v742 = vadd.s32 %v741, 112
    %743 = vset.pattern.permute.xlu0 %v742
    %744 = vperm.xlu0 %743, %v655
    %v745 = vpop.permute.xlu0 %744
    %v746 = vlaneseq
    %v747 = vshrl.u32 %v746, 7
    %v748 = vadd.s32 %v747, 120
    %749 = vset.pattern.permute.xlu0 %v748
    %750 = vperm.xlu0 %749, %v655
    %v751 = vpop.permute.xlu0 %750
    %v752 = vperm.slane %v61, 7
    %v753 = vlaneseq
    %v754 = vshrl.u32 %v753, 7
    %756 = vset.pattern.permute.xlu0 %v754
    %757 = vperm.xlu0 %756, %v752
    %v758 = vpop.permute.xlu0 %757
    %v759 = vlaneseq
    %v760 = vshrl.u32 %v759, 7
    %v761 = vadd.s32 %v760, 8
    %762 = vset.pattern.permute.xlu0 %v761
    %763 = vperm.xlu0 %762, %v752
    %v764 = vpop.permute.xlu0 %763
    %v765 = vlaneseq
    %v766 = vshrl.u32 %v765, 7
    %v767 = vadd.s32 %v766, 16
    %768 = vset.pattern.permute.xlu0 %v767
    %769 = vperm.xlu0 %768, %v752
    %v770 = vpop.permute.xlu0 %769
    %v771 = vlaneseq
    %v772 = vshrl.u32 %v771, 7
    %v773 = vadd.s32 %v772, 24
    %774 = vset.pattern.permute.xlu0 %v773
    %775 = vperm.xlu0 %774, %v752
    %v776 = vpop.permute.xlu0 %775
    %v777 = vlaneseq
    %v778 = vshrl.u32 %v777, 7
    %v779 = vadd.s32 %v778, 32
    %780 = vset.pattern.permute.xlu0 %v779
    %781 = vperm.xlu0 %780, %v752
    %v782 = vpop.permute.xlu0 %781
    %v783 = vlaneseq
    %v784 = vshrl.u32 %v783, 7
    %v785 = vadd.s32 %v784, 40
    %786 = vset.pattern.permute.xlu0 %v785
    %787 = vperm.xlu0 %786, %v752
    %v788 = vpop.permute.xlu0 %787
    %v789 = vlaneseq
    %v790 = vshrl.u32 %v789, 7
    %v791 = vadd.s32 %v790, 48
    %792 = vset.pattern.permute.xlu0 %v791
    %793 = vperm.xlu0 %792, %v752
    %v794 = vpop.permute.xlu0 %793
    %v795 = vlaneseq
    %v796 = vshrl.u32 %v795, 7
    %v797 = vadd.s32 %v796, 56
    %798 = vset.pattern.permute.xlu0 %v797
    %799 = vperm.xlu0 %798, %v752
    %v800 = vpop.permute.xlu0 %799
    %v801 = vlaneseq
    %v802 = vshrl.u32 %v801, 7
    %v803 = vadd.s32 %v802, 64
    %804 = vset.pattern.permute.xlu0 %v803
    %805 = vperm.xlu0 %804, %v752
    %v806 = vpop.permute.xlu0 %805
    %v807 = vlaneseq
    %v808 = vshrl.u32 %v807, 7
    %v809 = vadd.s32 %v808, 72
    %810 = vset.pattern.permute.xlu0 %v809
    %811 = vperm.xlu0 %810, %v752
    %v812 = vpop.permute.xlu0 %811
    %v813 = vlaneseq
    %v814 = vshrl.u32 %v813, 7
    %v815 = vadd.s32 %v814, 80
    %816 = vset.pattern.permute.xlu0 %v815
    %817 = vperm.xlu0 %816, %v752
    %v818 = vpop.permute.xlu0 %817
    %v819 = vlaneseq
    %v820 = vshrl.u32 %v819, 7
    %v821 = vadd.s32 %v820, 88
    %822 = vset.pattern.permute.xlu0 %v821
    %823 = vperm.xlu0 %822, %v752
    %v824 = vpop.permute.xlu0 %823
    %v825 = vlaneseq
    %v826 = vshrl.u32 %v825, 7
    %v827 = vadd.s32 %v826, 96
    %828 = vset.pattern.permute.xlu0 %v827
    %829 = vperm.xlu0 %828, %v752
    %v830 = vpop.permute.xlu0 %829
    %v831 = vlaneseq
    %v832 = vshrl.u32 %v831, 7
    %v833 = vadd.s32 %v832, 104
    %834 = vset.pattern.permute.xlu0 %v833
    %835 = vperm.xlu0 %834, %v752
    %v836 = vpop.permute.xlu0 %835
    %v837 = vlaneseq
    %v838 = vshrl.u32 %v837, 7
    %v839 = vadd.s32 %v838, 112
    %840 = vset.pattern.permute.xlu0 %v839
    %841 = vperm.xlu0 %840, %v752
    %v842 = vpop.permute.xlu0 %841
    %v843 = vlaneseq
    %v844 = vshrl.u32 %v843, 7
    %v845 = vadd.s32 %v844, 120
    %846 = vset.pattern.permute.xlu0 %v845
    %847 = vperm.xlu0 %846, %v752
    %v848 = vpop.permute.xlu0 %847
    %v849 = vperm.slane %v72, 0
    %v850 = vlaneseq
    %v851 = vshrl.u32 %v850, 7
    %853 = vset.pattern.permute.xlu0 %v851
    %854 = vperm.xlu0 %853, %v849
    %v855 = vpop.permute.xlu0 %854
    %v856 = vlaneseq
    %v857 = vshrl.u32 %v856, 7
    %v858 = vadd.s32 %v857, 8
    %859 = vset.pattern.permute.xlu0 %v858
    %860 = vperm.xlu0 %859, %v849
    %v861 = vpop.permute.xlu0 %860
    %v862 = vlaneseq
    %v863 = vshrl.u32 %v862, 7
    %v864 = vadd.s32 %v863, 16
    %865 = vset.pattern.permute.xlu0 %v864
    %866 = vperm.xlu0 %865, %v849
    %v867 = vpop.permute.xlu0 %866
    %v868 = vlaneseq
    %v869 = vshrl.u32 %v868, 7
    %v870 = vadd.s32 %v869, 24
    %871 = vset.pattern.permute.xlu0 %v870
    %872 = vperm.xlu0 %871, %v849
    %v873 = vpop.permute.xlu0 %872
    %v874 = vlaneseq
    %v875 = vshrl.u32 %v874, 7
    %v876 = vadd.s32 %v875, 32
    %877 = vset.pattern.permute.xlu0 %v876
    %878 = vperm.xlu0 %877, %v849
    %v879 = vpop.permute.xlu0 %878
    %v880 = vlaneseq
    %v881 = vshrl.u32 %v880, 7
    %v882 = vadd.s32 %v881, 40
    %883 = vset.pattern.permute.xlu0 %v882
    %884 = vperm.xlu0 %883, %v849
    %v885 = vpop.permute.xlu0 %884
    %v886 = vlaneseq
    %v887 = vshrl.u32 %v886, 7
    %v888 = vadd.s32 %v887, 48
    %889 = vset.pattern.permute.xlu0 %v888
    %890 = vperm.xlu0 %889, %v849
    %v891 = vpop.permute.xlu0 %890
    %v892 = vlaneseq
    %v893 = vshrl.u32 %v892, 7
    %v894 = vadd.s32 %v893, 56
    %895 = vset.pattern.permute.xlu0 %v894
    %896 = vperm.xlu0 %895, %v849
    %v897 = vpop.permute.xlu0 %896
    %v898 = vlaneseq
    %v899 = vshrl.u32 %v898, 7
    %v900 = vadd.s32 %v899, 64
    %901 = vset.pattern.permute.xlu0 %v900
    %902 = vperm.xlu0 %901, %v849
    %v903 = vpop.permute.xlu0 %902
    %v904 = vlaneseq
    %v905 = vshrl.u32 %v904, 7
    %v906 = vadd.s32 %v905, 72
    %907 = vset.pattern.permute.xlu0 %v906
    %908 = vperm.xlu0 %907, %v849
    %v909 = vpop.permute.xlu0 %908
    %v910 = vlaneseq
    %v911 = vshrl.u32 %v910, 7
    %v912 = vadd.s32 %v911, 80
    %913 = vset.pattern.permute.xlu0 %v912
    %914 = vperm.xlu0 %913, %v849
    %v915 = vpop.permute.xlu0 %914
    %v916 = vlaneseq
    %v917 = vshrl.u32 %v916, 7
    %v918 = vadd.s32 %v917, 88
    %919 = vset.pattern.permute.xlu0 %v918
    %920 = vperm.xlu0 %919, %v849
    %v921 = vpop.permute.xlu0 %920
    %v922 = vlaneseq
    %v923 = vshrl.u32 %v922, 7
    %v924 = vadd.s32 %v923, 96
    %925 = vset.pattern.permute.xlu0 %v924
    %926 = vperm.xlu0 %925, %v849
    %v927 = vpop.permute.xlu0 %926
    %v928 = vlaneseq
    %v929 = vshrl.u32 %v928, 7
    %v930 = vadd.s32 %v929, 104
    %931 = vset.pattern.permute.xlu0 %v930
    %932 = vperm.xlu0 %931, %v849
    %v933 = vpop.permute.xlu0 %932
    %v934 = vlaneseq
    %v935 = vshrl.u32 %v934, 7
    %v936 = vadd.s32 %v935, 112
    %937 = vset.pattern.permute.xlu0 %v936
    %938 = vperm.xlu0 %937, %v849
    %v939 = vpop.permute.xlu0 %938
    %v940 = vlaneseq
    %v941 = vshrl.u32 %v940, 7
    %v942 = vadd.s32 %v941, 120
    %943 = vset.pattern.permute.xlu0 %v942
    %944 = vperm.xlu0 %943, %v849
    %v945 = vpop.permute.xlu0 %944
    %v946 = vperm.slane %v72, 1
    %v947 = vlaneseq
    %v948 = vshrl.u32 %v947, 7
    %950 = vset.pattern.permute.xlu0 %v948
    %951 = vperm.xlu0 %950, %v946
    %v952 = vpop.permute.xlu0 %951
    %v953 = vlaneseq
    %v954 = vshrl.u32 %v953, 7
    %v955 = vadd.s32 %v954, 8
    %956 = vset.pattern.permute.xlu0 %v955
    %957 = vperm.xlu0 %956, %v946
    %v958 = vpop.permute.xlu0 %957
    %v959 = vlaneseq
    %v960 = vshrl.u32 %v959, 7
    %v961 = vadd.s32 %v960, 16
    %962 = vset.pattern.permute.xlu0 %v961
    %963 = vperm.xlu0 %962, %v946
    %v964 = vpop.permute.xlu0 %963
    %v965 = vlaneseq
    %v966 = vshrl.u32 %v965, 7
    %v967 = vadd.s32 %v966, 24
    %968 = vset.pattern.permute.xlu0 %v967
    %969 = vperm.xlu0 %968, %v946
    %v970 = vpop.permute.xlu0 %969
    %v971 = vlaneseq
    %v972 = vshrl.u32 %v971, 7
    %v973 = vadd.s32 %v972, 32
    %974 = vset.pattern.permute.xlu0 %v973
    %975 = vperm.xlu0 %974, %v946
    %v976 = vpop.permute.xlu0 %975
    %v977 = vlaneseq
    %v978 = vshrl.u32 %v977, 7
    %v979 = vadd.s32 %v978, 40
    %980 = vset.pattern.permute.xlu0 %v979
    %981 = vperm.xlu0 %980, %v946
    %v982 = vpop.permute.xlu0 %981
    %v983 = vlaneseq
    %v984 = vshrl.u32 %v983, 7
    %v985 = vadd.s32 %v984, 48
    %986 = vset.pattern.permute.xlu0 %v985
    %987 = vperm.xlu0 %986, %v946
    %v988 = vpop.permute.xlu0 %987
    %v989 = vlaneseq
    %v990 = vshrl.u32 %v989, 7
    %v991 = vadd.s32 %v990, 56
    %992 = vset.pattern.permute.xlu0 %v991
    %993 = vperm.xlu0 %992, %v946
    %v994 = vpop.permute.xlu0 %993
    %v995 = vlaneseq
    %v996 = vshrl.u32 %v995, 7
    %v997 = vadd.s32 %v996, 64
    %998 = vset.pattern.permute.xlu0 %v997
    %999 = vperm.xlu0 %998, %v946
    %v1000 = vpop.permute.xlu0 %999
    %v1001 = vlaneseq
    %v1002 = vshrl.u32 %v1001, 7
    %v1003 = vadd.s32 %v1002, 72
    %1004 = vset.pattern.permute.xlu0 %v1003
    %1005 = vperm.xlu0 %1004, %v946
    %v1006 = vpop.permute.xlu0 %1005
    %v1007 = vlaneseq
    %v1008 = vshrl.u32 %v1007, 7
    %v1009 = vadd.s32 %v1008, 80
    %1010 = vset.pattern.permute.xlu0 %v1009
    %1011 = vperm.xlu0 %1010, %v946
    %v1012 = vpop.permute.xlu0 %1011
    %v1013 = vlaneseq
    %v1014 = vshrl.u32 %v1013, 7
    %v1015 = vadd.s32 %v1014, 88
    %1016 = vset.pattern.permute.xlu0 %v1015
    %1017 = vperm.xlu0 %1016, %v946
    %v1018 = vpop.permute.xlu0 %1017
    %v1019 = vlaneseq
    %v1020 = vshrl.u32 %v1019, 7
    %v1021 = vadd.s32 %v1020, 96
    %1022 = vset.pattern.permute.xlu0 %v1021
    %1023 = vperm.xlu0 %1022, %v946
    %v1024 = vpop.permute.xlu0 %1023
    %v1025 = vlaneseq
    %v1026 = vshrl.u32 %v1025, 7
    %v1027 = vadd.s32 %v1026, 104
    %1028 = vset.pattern.permute.xlu0 %v1027
    %1029 = vperm.xlu0 %1028, %v946
    %v1030 = vpop.permute.xlu0 %1029
    %v1031 = vlaneseq
    %v1032 = vshrl.u32 %v1031, 7
    %v1033 = vadd.s32 %v1032, 112
    %1034 = vset.pattern.permute.xlu0 %v1033
    %1035 = vperm.xlu0 %1034, %v946
    %v1036 = vpop.permute.xlu0 %1035
    %v1037 = vlaneseq
    %v1038 = vshrl.u32 %v1037, 7
    %v1039 = vadd.s32 %v1038, 120
    %1040 = vset.pattern.permute.xlu0 %v1039
    %1041 = vperm.xlu0 %1040, %v946
    %v1042 = vpop.permute.xlu0 %1041
    %v1043 = vperm.slane %v72, 2
    %v1044 = vlaneseq
    %v1045 = vshrl.u32 %v1044, 7
    %1047 = vset.pattern.permute.xlu0 %v1045
    %1048 = vperm.xlu0 %1047, %v1043
    %v1049 = vpop.permute.xlu0 %1048
    %v1050 = vlaneseq
    %v1051 = vshrl.u32 %v1050, 7
    %v1052 = vadd.s32 %v1051, 8
    %1053 = vset.pattern.permute.xlu0 %v1052
    %1054 = vperm.xlu0 %1053, %v1043
    %v1055 = vpop.permute.xlu0 %1054
    %v1056 = vlaneseq
    %v1057 = vshrl.u32 %v1056, 7
    %v1058 = vadd.s32 %v1057, 16
    %1059 = vset.pattern.permute.xlu0 %v1058
    %1060 = vperm.xlu0 %1059, %v1043
    %v1061 = vpop.permute.xlu0 %1060
    %v1062 = vlaneseq
    %v1063 = vshrl.u32 %v1062, 7
    %v1064 = vadd.s32 %v1063, 24
    %1065 = vset.pattern.permute.xlu0 %v1064
    %1066 = vperm.xlu0 %1065, %v1043
    %v1067 = vpop.permute.xlu0 %1066
    %v1068 = vlaneseq
    %v1069 = vshrl.u32 %v1068, 7
    %v1070 = vadd.s32 %v1069, 32
    %1071 = vset.pattern.permute.xlu0 %v1070
    %1072 = vperm.xlu0 %1071, %v1043
    %v1073 = vpop.permute.xlu0 %1072
    %v1074 = vlaneseq
    %v1075 = vshrl.u32 %v1074, 7
    %v1076 = vadd.s32 %v1075, 40
    %1077 = vset.pattern.permute.xlu0 %v1076
    %1078 = vperm.xlu0 %1077, %v1043
    %v1079 = vpop.permute.xlu0 %1078
    %v1080 = vlaneseq
    %v1081 = vshrl.u32 %v1080, 7
    %v1082 = vadd.s32 %v1081, 48
    %1083 = vset.pattern.permute.xlu0 %v1082
    %1084 = vperm.xlu0 %1083, %v1043
    %v1085 = vpop.permute.xlu0 %1084
    %v1086 = vlaneseq
    %v1087 = vshrl.u32 %v1086, 7
    %v1088 = vadd.s32 %v1087, 56
    %1089 = vset.pattern.permute.xlu0 %v1088
    %1090 = vperm.xlu0 %1089, %v1043
    %v1091 = vpop.permute.xlu0 %1090
    %v1092 = vlaneseq
    %v1093 = vshrl.u32 %v1092, 7
    %v1094 = vadd.s32 %v1093, 64
    %1095 = vset.pattern.permute.xlu0 %v1094
    %1096 = vperm.xlu0 %1095, %v1043
    %v1097 = vpop.permute.xlu0 %1096
    %v1098 = vlaneseq
    %v1099 = vshrl.u32 %v1098, 7
    %v1100 = vadd.s32 %v1099, 72
    %1101 = vset.pattern.permute.xlu0 %v1100
    %1102 = vperm.xlu0 %1101, %v1043
    %v1103 = vpop.permute.xlu0 %1102
    %v1104 = vlaneseq
    %v1105 = vshrl.u32 %v1104, 7
    %v1106 = vadd.s32 %v1105, 80
    %1107 = vset.pattern.permute.xlu0 %v1106
    %1108 = vperm.xlu0 %1107, %v1043
    %v1109 = vpop.permute.xlu0 %1108
    %v1110 = vlaneseq
    %v1111 = vshrl.u32 %v1110, 7
    %v1112 = vadd.s32 %v1111, 88
    %1113 = vset.pattern.permute.xlu0 %v1112
    %1114 = vperm.xlu0 %1113, %v1043
    %v1115 = vpop.permute.xlu0 %1114
    %v1116 = vlaneseq
    %v1117 = vshrl.u32 %v1116, 7
    %v1118 = vadd.s32 %v1117, 96
    %1119 = vset.pattern.permute.xlu0 %v1118
    %1120 = vperm.xlu0 %1119, %v1043
    %v1121 = vpop.permute.xlu0 %1120
    %v1122 = vlaneseq
    %v1123 = vshrl.u32 %v1122, 7
    %v1124 = vadd.s32 %v1123, 104
    %1125 = vset.pattern.permute.xlu0 %v1124
    %1126 = vperm.xlu0 %1125, %v1043
    %v1127 = vpop.permute.xlu0 %1126
    %v1128 = vlaneseq
    %v1129 = vshrl.u32 %v1128, 7
    %v1130 = vadd.s32 %v1129, 112
    %1131 = vset.pattern.permute.xlu0 %v1130
    %1132 = vperm.xlu0 %1131, %v1043
    %v1133 = vpop.permute.xlu0 %1132
    %v1134 = vlaneseq
    %v1135 = vshrl.u32 %v1134, 7
    %v1136 = vadd.s32 %v1135, 120
    %1137 = vset.pattern.permute.xlu0 %v1136
    %1138 = vperm.xlu0 %1137, %v1043
    %v1139 = vpop.permute.xlu0 %1138
    %v1140 = vperm.slane %v72, 3
    %v1141 = vlaneseq
    %v1142 = vshrl.u32 %v1141, 7
    %1144 = vset.pattern.permute.xlu0 %v1142
    %1145 = vperm.xlu0 %1144, %v1140
    %v1146 = vpop.permute.xlu0 %1145
    %v1147 = vlaneseq
    %v1148 = vshrl.u32 %v1147, 7
    %v1149 = vadd.s32 %v1148, 8
    %1150 = vset.pattern.permute.xlu0 %v1149
    %1151 = vperm.xlu0 %1150, %v1140
    %v1152 = vpop.permute.xlu0 %1151
    %v1153 = vlaneseq
    %v1154 = vshrl.u32 %v1153, 7
    %v1155 = vadd.s32 %v1154, 16
    %1156 = vset.pattern.permute.xlu0 %v1155
    %1157 = vperm.xlu0 %1156, %v1140
    %v1158 = vpop.permute.xlu0 %1157
    %v1159 = vlaneseq
    %v1160 = vshrl.u32 %v1159, 7
    %v1161 = vadd.s32 %v1160, 24
    %1162 = vset.pattern.permute.xlu0 %v1161
    %1163 = vperm.xlu0 %1162, %v1140
    %v1164 = vpop.permute.xlu0 %1163
    %v1165 = vlaneseq
    %v1166 = vshrl.u32 %v1165, 7
    %v1167 = vadd.s32 %v1166, 32
    %1168 = vset.pattern.permute.xlu0 %v1167
    %1169 = vperm.xlu0 %1168, %v1140
    %v1170 = vpop.permute.xlu0 %1169
    %v1171 = vlaneseq
    %v1172 = vshrl.u32 %v1171, 7
    %v1173 = vadd.s32 %v1172, 40
    %1174 = vset.pattern.permute.xlu0 %v1173
    %1175 = vperm.xlu0 %1174, %v1140
    %v1176 = vpop.permute.xlu0 %1175
    %v1177 = vlaneseq
    %v1178 = vshrl.u32 %v1177, 7
    %v1179 = vadd.s32 %v1178, 48
    %1180 = vset.pattern.permute.xlu0 %v1179
    %1181 = vperm.xlu0 %1180, %v1140
    %v1182 = vpop.permute.xlu0 %1181
    %v1183 = vlaneseq
    %v1184 = vshrl.u32 %v1183, 7
    %v1185 = vadd.s32 %v1184, 56
    %1186 = vset.pattern.permute.xlu0 %v1185
    %1187 = vperm.xlu0 %1186, %v1140
    %v1188 = vpop.permute.xlu0 %1187
    %v1189 = vlaneseq
    %v1190 = vshrl.u32 %v1189, 7
    %v1191 = vadd.s32 %v1190, 64
    %1192 = vset.pattern.permute.xlu0 %v1191
    %1193 = vperm.xlu0 %1192, %v1140
    %v1194 = vpop.permute.xlu0 %1193
    %v1195 = vlaneseq
    %v1196 = vshrl.u32 %v1195, 7
    %v1197 = vadd.s32 %v1196, 72
    %1198 = vset.pattern.permute.xlu0 %v1197
    %1199 = vperm.xlu0 %1198, %v1140
    %v1200 = vpop.permute.xlu0 %1199
    %v1201 = vlaneseq
    %v1202 = vshrl.u32 %v1201, 7
    %v1203 = vadd.s32 %v1202, 80
    %1204 = vset.pattern.permute.xlu0 %v1203
    %1205 = vperm.xlu0 %1204, %v1140
    %v1206 = vpop.permute.xlu0 %1205
    %v1207 = vlaneseq
    %v1208 = vshrl.u32 %v1207, 7
    %v1209 = vadd.s32 %v1208, 88
    %1210 = vset.pattern.permute.xlu0 %v1209
    %1211 = vperm.xlu0 %1210, %v1140
    %v1212 = vpop.permute.xlu0 %1211
    %v1213 = vlaneseq
    %v1214 = vshrl.u32 %v1213, 7
    %v1215 = vadd.s32 %v1214, 96
    %1216 = vset.pattern.permute.xlu0 %v1215
    %1217 = vperm.xlu0 %1216, %v1140
    %v1218 = vpop.permute.xlu0 %1217
    %v1219 = vlaneseq
    %v1220 = vshrl.u32 %v1219, 7
    %v1221 = vadd.s32 %v1220, 104
    %1222 = vset.pattern.permute.xlu0 %v1221
    %1223 = vperm.xlu0 %1222, %v1140
    %v1224 = vpop.permute.xlu0 %1223
    %v1225 = vlaneseq
    %v1226 = vshrl.u32 %v1225, 7
    %v1227 = vadd.s32 %v1226, 112
    %1228 = vset.pattern.permute.xlu0 %v1227
    %1229 = vperm.xlu0 %1228, %v1140
    %v1230 = vpop.permute.xlu0 %1229
    %v1231 = vlaneseq
    %v1232 = vshrl.u32 %v1231, 7
    %v1233 = vadd.s32 %v1232, 120
    %1234 = vset.pattern.permute.xlu0 %v1233
    %1235 = vperm.xlu0 %1234, %v1140
    %v1236 = vpop.permute.xlu0 %1235
    %v1237 = vperm.slane %v72, 4
    %v1238 = vlaneseq
    %v1239 = vshrl.u32 %v1238, 7
    %1241 = vset.pattern.permute.xlu0 %v1239
    %1242 = vperm.xlu0 %1241, %v1237
    %v1243 = vpop.permute.xlu0 %1242
    %v1244 = vlaneseq
    %v1245 = vshrl.u32 %v1244, 7
    %v1246 = vadd.s32 %v1245, 8
    %1247 = vset.pattern.permute.xlu0 %v1246
    %1248 = vperm.xlu0 %1247, %v1237
    %v1249 = vpop.permute.xlu0 %1248
    %v1250 = vlaneseq
    %v1251 = vshrl.u32 %v1250, 7
    %v1252 = vadd.s32 %v1251, 16
    %1253 = vset.pattern.permute.xlu0 %v1252
    %1254 = vperm.xlu0 %1253, %v1237
    %v1255 = vpop.permute.xlu0 %1254
    %v1256 = vlaneseq
    %v1257 = vshrl.u32 %v1256, 7
    %v1258 = vadd.s32 %v1257, 24
    %1259 = vset.pattern.permute.xlu0 %v1258
    %1260 = vperm.xlu0 %1259, %v1237
    %v1261 = vpop.permute.xlu0 %1260
    %v1262 = vlaneseq
    %v1263 = vshrl.u32 %v1262, 7
    %v1264 = vadd.s32 %v1263, 32
    %1265 = vset.pattern.permute.xlu0 %v1264
    %1266 = vperm.xlu0 %1265, %v1237
    %v1267 = vpop.permute.xlu0 %1266
    %v1268 = vlaneseq
    %v1269 = vshrl.u32 %v1268, 7
    %v1270 = vadd.s32 %v1269, 40
    %1271 = vset.pattern.permute.xlu0 %v1270
    %1272 = vperm.xlu0 %1271, %v1237
    %v1273 = vpop.permute.xlu0 %1272
    %v1274 = vlaneseq
    %v1275 = vshrl.u32 %v1274, 7
    %v1276 = vadd.s32 %v1275, 48
    %1277 = vset.pattern.permute.xlu0 %v1276
    %1278 = vperm.xlu0 %1277, %v1237
    %v1279 = vpop.permute.xlu0 %1278
    %v1280 = vlaneseq
    %v1281 = vshrl.u32 %v1280, 7
    %v1282 = vadd.s32 %v1281, 56
    %1283 = vset.pattern.permute.xlu0 %v1282
    %1284 = vperm.xlu0 %1283, %v1237
    %v1285 = vpop.permute.xlu0 %1284
    %v1286 = vlaneseq
    %v1287 = vshrl.u32 %v1286, 7
    %v1288 = vadd.s32 %v1287, 64
    %1289 = vset.pattern.permute.xlu0 %v1288
    %1290 = vperm.xlu0 %1289, %v1237
    %v1291 = vpop.permute.xlu0 %1290
    %v1292 = vlaneseq
    %v1293 = vshrl.u32 %v1292, 7
    %v1294 = vadd.s32 %v1293, 72
    %1295 = vset.pattern.permute.xlu0 %v1294
    %1296 = vperm.xlu0 %1295, %v1237
    %v1297 = vpop.permute.xlu0 %1296
    %v1298 = vlaneseq
    %v1299 = vshrl.u32 %v1298, 7
    %v1300 = vadd.s32 %v1299, 80
    %1301 = vset.pattern.permute.xlu0 %v1300
    %1302 = vperm.xlu0 %1301, %v1237
    %v1303 = vpop.permute.xlu0 %1302
    %v1304 = vlaneseq
    %v1305 = vshrl.u32 %v1304, 7
    %v1306 = vadd.s32 %v1305, 88
    %1307 = vset.pattern.permute.xlu0 %v1306
    %1308 = vperm.xlu0 %1307, %v1237
    %v1309 = vpop.permute.xlu0 %1308
    %v1310 = vlaneseq
    %v1311 = vshrl.u32 %v1310, 7
    %v1312 = vadd.s32 %v1311, 96
    %1313 = vset.pattern.permute.xlu0 %v1312
    %1314 = vperm.xlu0 %1313, %v1237
    %v1315 = vpop.permute.xlu0 %1314
    %v1316 = vlaneseq
    %v1317 = vshrl.u32 %v1316, 7
    %v1318 = vadd.s32 %v1317, 104
    %1319 = vset.pattern.permute.xlu0 %v1318
    %1320 = vperm.xlu0 %1319, %v1237
    %v1321 = vpop.permute.xlu0 %1320
    %v1322 = vlaneseq
    %v1323 = vshrl.u32 %v1322, 7
    %v1324 = vadd.s32 %v1323, 112
    %1325 = vset.pattern.permute.xlu0 %v1324
    %1326 = vperm.xlu0 %1325, %v1237
    %v1327 = vpop.permute.xlu0 %1326
    %v1328 = vlaneseq
    %v1329 = vshrl.u32 %v1328, 7
    %v1330 = vadd.s32 %v1329, 120
    %1331 = vset.pattern.permute.xlu0 %v1330
    %1332 = vperm.xlu0 %1331, %v1237
    %v1333 = vpop.permute.xlu0 %1332
    %v1334 = vperm.slane %v72, 5
    %v1335 = vlaneseq
    %v1336 = vshrl.u32 %v1335, 7
    %1338 = vset.pattern.permute.xlu0 %v1336
    %1339 = vperm.xlu0 %1338, %v1334
    %v1340 = vpop.permute.xlu0 %1339
    %v1341 = vlaneseq
    %v1342 = vshrl.u32 %v1341, 7
    %v1343 = vadd.s32 %v1342, 8
    %1344 = vset.pattern.permute.xlu0 %v1343
    %1345 = vperm.xlu0 %1344, %v1334
    %v1346 = vpop.permute.xlu0 %1345
    %v1347 = vlaneseq
    %v1348 = vshrl.u32 %v1347, 7
    %v1349 = vadd.s32 %v1348, 16
    %1350 = vset.pattern.permute.xlu0 %v1349
    %1351 = vperm.xlu0 %1350, %v1334
    %v1352 = vpop.permute.xlu0 %1351
    %v1353 = vlaneseq
    %v1354 = vshrl.u32 %v1353, 7
    %v1355 = vadd.s32 %v1354, 24
    %1356 = vset.pattern.permute.xlu0 %v1355
    %1357 = vperm.xlu0 %1356, %v1334
    %v1358 = vpop.permute.xlu0 %1357
    %v1359 = vlaneseq
    %v1360 = vshrl.u32 %v1359, 7
    %v1361 = vadd.s32 %v1360, 32
    %1362 = vset.pattern.permute.xlu0 %v1361
    %1363 = vperm.xlu0 %1362, %v1334
    %v1364 = vpop.permute.xlu0 %1363
    %v1365 = vlaneseq
    %v1366 = vshrl.u32 %v1365, 7
    %v1367 = vadd.s32 %v1366, 40
    %1368 = vset.pattern.permute.xlu0 %v1367
    %1369 = vperm.xlu0 %1368, %v1334
    %v1370 = vpop.permute.xlu0 %1369
    %v1371 = vlaneseq
    %v1372 = vshrl.u32 %v1371, 7
    %v1373 = vadd.s32 %v1372, 48
    %1374 = vset.pattern.permute.xlu0 %v1373
    %1375 = vperm.xlu0 %1374, %v1334
    %v1376 = vpop.permute.xlu0 %1375
    %v1377 = vlaneseq
    %v1378 = vshrl.u32 %v1377, 7
    %v1379 = vadd.s32 %v1378, 56
    %1380 = vset.pattern.permute.xlu0 %v1379
    %1381 = vperm.xlu0 %1380, %v1334
    %v1382 = vpop.permute.xlu0 %1381
    %v1383 = vlaneseq
    %v1384 = vshrl.u32 %v1383, 7
    %v1385 = vadd.s32 %v1384, 64
    %1386 = vset.pattern.permute.xlu0 %v1385
    %1387 = vperm.xlu0 %1386, %v1334
    %v1388 = vpop.permute.xlu0 %1387
    %v1389 = vlaneseq
    %v1390 = vshrl.u32 %v1389, 7
    %v1391 = vadd.s32 %v1390, 72
    %1392 = vset.pattern.permute.xlu0 %v1391
    %1393 = vperm.xlu0 %1392, %v1334
    %v1394 = vpop.permute.xlu0 %1393
    %v1395 = vlaneseq
    %v1396 = vshrl.u32 %v1395, 7
    %v1397 = vadd.s32 %v1396, 80
    %1398 = vset.pattern.permute.xlu0 %v1397
    %1399 = vperm.xlu0 %1398, %v1334
    %v1400 = vpop.permute.xlu0 %1399
    %v1401 = vlaneseq
    %v1402 = vshrl.u32 %v1401, 7
    %v1403 = vadd.s32 %v1402, 88
    %1404 = vset.pattern.permute.xlu0 %v1403
    %1405 = vperm.xlu0 %1404, %v1334
    %v1406 = vpop.permute.xlu0 %1405
    %v1407 = vlaneseq
    %v1408 = vshrl.u32 %v1407, 7
    %v1409 = vadd.s32 %v1408, 96
    %1410 = vset.pattern.permute.xlu0 %v1409
    %1411 = vperm.xlu0 %1410, %v1334
    %v1412 = vpop.permute.xlu0 %1411
    %v1413 = vlaneseq
    %v1414 = vshrl.u32 %v1413, 7
    %v1415 = vadd.s32 %v1414, 104
    %1416 = vset.pattern.permute.xlu0 %v1415
    %1417 = vperm.xlu0 %1416, %v1334
    %v1418 = vpop.permute.xlu0 %1417
    %v1419 = vlaneseq
    %v1420 = vshrl.u32 %v1419, 7
    %v1421 = vadd.s32 %v1420, 112
    %1422 = vset.pattern.permute.xlu0 %v1421
    %1423 = vperm.xlu0 %1422, %v1334
    %v1424 = vpop.permute.xlu0 %1423
    %v1425 = vlaneseq
    %v1426 = vshrl.u32 %v1425, 7
    %v1427 = vadd.s32 %v1426, 120
    %1428 = vset.pattern.permute.xlu0 %v1427
    %1429 = vperm.xlu0 %1428, %v1334
    %v1430 = vpop.permute.xlu0 %1429
    %v1431 = vperm.slane %v72, 6
    %v1432 = vlaneseq
    %v1433 = vshrl.u32 %v1432, 7
    %1435 = vset.pattern.permute.xlu0 %v1433
    %1436 = vperm.xlu0 %1435, %v1431
    %v1437 = vpop.permute.xlu0 %1436
    %v1438 = vlaneseq
    %v1439 = vshrl.u32 %v1438, 7
    %v1440 = vadd.s32 %v1439, 8
    %1441 = vset.pattern.permute.xlu0 %v1440
    %1442 = vperm.xlu0 %1441, %v1431
    %v1443 = vpop.permute.xlu0 %1442
    %v1444 = vlaneseq
    %v1445 = vshrl.u32 %v1444, 7
    %v1446 = vadd.s32 %v1445, 16
    %1447 = vset.pattern.permute.xlu0 %v1446
    %1448 = vperm.xlu0 %1447, %v1431
    %v1449 = vpop.permute.xlu0 %1448
    %v1450 = vlaneseq
    %v1451 = vshrl.u32 %v1450, 7
    %v1452 = vadd.s32 %v1451, 24
    %1453 = vset.pattern.permute.xlu0 %v1452
    %1454 = vperm.xlu0 %1453, %v1431
    %v1455 = vpop.permute.xlu0 %1454
    %v1456 = vlaneseq
    %v1457 = vshrl.u32 %v1456, 7
    %v1458 = vadd.s32 %v1457, 32
    %1459 = vset.pattern.permute.xlu0 %v1458
    %1460 = vperm.xlu0 %1459, %v1431
    %v1461 = vpop.permute.xlu0 %1460
    %v1462 = vlaneseq
    %v1463 = vshrl.u32 %v1462, 7
    %v1464 = vadd.s32 %v1463, 40
    %1465 = vset.pattern.permute.xlu0 %v1464
    %1466 = vperm.xlu0 %1465, %v1431
    %v1467 = vpop.permute.xlu0 %1466
    %v1468 = vlaneseq
    %v1469 = vshrl.u32 %v1468, 7
    %v1470 = vadd.s32 %v1469, 48
    %1471 = vset.pattern.permute.xlu0 %v1470
    %1472 = vperm.xlu0 %1471, %v1431
    %v1473 = vpop.permute.xlu0 %1472
    %v1474 = vlaneseq
    %v1475 = vshrl.u32 %v1474, 7
    %v1476 = vadd.s32 %v1475, 56
    %1477 = vset.pattern.permute.xlu0 %v1476
    %1478 = vperm.xlu0 %1477, %v1431
    %v1479 = vpop.permute.xlu0 %1478
    %v1480 = vlaneseq
    %v1481 = vshrl.u32 %v1480, 7
    %v1482 = vadd.s32 %v1481, 64
    %1483 = vset.pattern.permute.xlu0 %v1482
    %1484 = vperm.xlu0 %1483, %v1431
    %v1485 = vpop.permute.xlu0 %1484
    %v1486 = vlaneseq
    %v1487 = vshrl.u32 %v1486, 7
    %v1488 = vadd.s32 %v1487, 72
    %1489 = vset.pattern.permute.xlu0 %v1488
    %1490 = vperm.xlu0 %1489, %v1431
    %v1491 = vpop.permute.xlu0 %1490
    %v1492 = vlaneseq
    %v1493 = vshrl.u32 %v1492, 7
    %v1494 = vadd.s32 %v1493, 80
    %1495 = vset.pattern.permute.xlu0 %v1494
    %1496 = vperm.xlu0 %1495, %v1431
    %v1497 = vpop.permute.xlu0 %1496
    %v1498 = vlaneseq
    %v1499 = vshrl.u32 %v1498, 7
    %v1500 = vadd.s32 %v1499, 88
    %1501 = vset.pattern.permute.xlu0 %v1500
    %1502 = vperm.xlu0 %1501, %v1431
    %v1503 = vpop.permute.xlu0 %1502
    %v1504 = vlaneseq
    %v1505 = vshrl.u32 %v1504, 7
    %v1506 = vadd.s32 %v1505, 96
    %1507 = vset.pattern.permute.xlu0 %v1506
    %1508 = vperm.xlu0 %1507, %v1431
    %v1509 = vpop.permute.xlu0 %1508
    %v1510 = vlaneseq
    %v1511 = vshrl.u32 %v1510, 7
    %v1512 = vadd.s32 %v1511, 104
    %1513 = vset.pattern.permute.xlu0 %v1512
    %1514 = vperm.xlu0 %1513, %v1431
    %v1515 = vpop.permute.xlu0 %1514
    %v1516 = vlaneseq
    %v1517 = vshrl.u32 %v1516, 7
    %v1518 = vadd.s32 %v1517, 112
    %1519 = vset.pattern.permute.xlu0 %v1518
    %1520 = vperm.xlu0 %1519, %v1431
    %v1521 = vpop.permute.xlu0 %1520
    %v1522 = vlaneseq
    %v1523 = vshrl.u32 %v1522, 7
    %v1524 = vadd.s32 %v1523, 120
    %1525 = vset.pattern.permute.xlu0 %v1524
    %1526 = vperm.xlu0 %1525, %v1431
    %v1527 = vpop.permute.xlu0 %1526
    %v1528 = vperm.slane %v72, 7
    %v1529 = vlaneseq
    %v1530 = vshrl.u32 %v1529, 7
    %1532 = vset.pattern.permute.xlu0 %v1530
    %1533 = vperm.xlu0 %1532, %v1528
    %v1534 = vpop.permute.xlu0 %1533
    %v1535 = vlaneseq
    %v1536 = vshrl.u32 %v1535, 7
    %v1537 = vadd.s32 %v1536, 8
    %1538 = vset.pattern.permute.xlu0 %v1537
    %1539 = vperm.xlu0 %1538, %v1528
    %v1540 = vpop.permute.xlu0 %1539
    %v1541 = vlaneseq
    %v1542 = vshrl.u32 %v1541, 7
    %v1543 = vadd.s32 %v1542, 16
    %1544 = vset.pattern.permute.xlu0 %v1543
    %1545 = vperm.xlu0 %1544, %v1528
    %v1546 = vpop.permute.xlu0 %1545
    %v1547 = vlaneseq
    %v1548 = vshrl.u32 %v1547, 7
    %v1549 = vadd.s32 %v1548, 24
    %1550 = vset.pattern.permute.xlu0 %v1549
    %1551 = vperm.xlu0 %1550, %v1528
    %v1552 = vpop.permute.xlu0 %1551
    %v1553 = vlaneseq
    %v1554 = vshrl.u32 %v1553, 7
    %v1555 = vadd.s32 %v1554, 32
    %1556 = vset.pattern.permute.xlu0 %v1555
    %1557 = vperm.xlu0 %1556, %v1528
    %v1558 = vpop.permute.xlu0 %1557
    %v1559 = vlaneseq
    %v1560 = vshrl.u32 %v1559, 7
    %v1561 = vadd.s32 %v1560, 40
    %1562 = vset.pattern.permute.xlu0 %v1561
    %1563 = vperm.xlu0 %1562, %v1528
    %v1564 = vpop.permute.xlu0 %1563
    %v1565 = vlaneseq
    %v1566 = vshrl.u32 %v1565, 7
    %v1567 = vadd.s32 %v1566, 48
    %1568 = vset.pattern.permute.xlu0 %v1567
    %1569 = vperm.xlu0 %1568, %v1528
    %v1570 = vpop.permute.xlu0 %1569
    %v1571 = vlaneseq
    %v1572 = vshrl.u32 %v1571, 7
    %v1573 = vadd.s32 %v1572, 56
    %1574 = vset.pattern.permute.xlu0 %v1573
    %1575 = vperm.xlu0 %1574, %v1528
    %v1576 = vpop.permute.xlu0 %1575
    %v1577 = vlaneseq
    %v1578 = vshrl.u32 %v1577, 7
    %v1579 = vadd.s32 %v1578, 64
    %1580 = vset.pattern.permute.xlu0 %v1579
    %1581 = vperm.xlu0 %1580, %v1528
    %v1582 = vpop.permute.xlu0 %1581
    %v1583 = vlaneseq
    %v1584 = vshrl.u32 %v1583, 7
    %v1585 = vadd.s32 %v1584, 72
    %1586 = vset.pattern.permute.xlu0 %v1585
    %1587 = vperm.xlu0 %1586, %v1528
    %v1588 = vpop.permute.xlu0 %1587
    %v1589 = vlaneseq
    %v1590 = vshrl.u32 %v1589, 7
    %v1591 = vadd.s32 %v1590, 80
    %1592 = vset.pattern.permute.xlu0 %v1591
    %1593 = vperm.xlu0 %1592, %v1528
    %v1594 = vpop.permute.xlu0 %1593
    %v1595 = vlaneseq
    %v1596 = vshrl.u32 %v1595, 7
    %v1597 = vadd.s32 %v1596, 88
    %1598 = vset.pattern.permute.xlu0 %v1597
    %1599 = vperm.xlu0 %1598, %v1528
    %v1600 = vpop.permute.xlu0 %1599
    %v1601 = vlaneseq
    %v1602 = vshrl.u32 %v1601, 7
    %v1603 = vadd.s32 %v1602, 96
    %1604 = vset.pattern.permute.xlu0 %v1603
    %1605 = vperm.xlu0 %1604, %v1528
    %v1606 = vpop.permute.xlu0 %1605
    %v1607 = vlaneseq
    %v1608 = vshrl.u32 %v1607, 7
    %v1609 = vadd.s32 %v1608, 104
    %1610 = vset.pattern.permute.xlu0 %v1609
    %1611 = vperm.xlu0 %1610, %v1528
    %v1612 = vpop.permute.xlu0 %1611
    %v1613 = vlaneseq
    %v1614 = vshrl.u32 %v1613, 7
    %v1615 = vadd.s32 %v1614, 112
    %1616 = vset.pattern.permute.xlu0 %v1615
    %1617 = vperm.xlu0 %1616, %v1528
    %v1618 = vpop.permute.xlu0 %1617
    %v1619 = vlaneseq
    %v1620 = vshrl.u32 %v1619, 7
    %v1621 = vadd.s32 %v1620, 120
    %1622 = vset.pattern.permute.xlu0 %v1621
    %1623 = vperm.xlu0 %1622, %v1528
    %v1624 = vpop.permute.xlu0 %1623
    %vm1625 = vcmask 7168
    %v1626 = vsel %vm1625, %v79, %v855
    %v1627 = vsel %vm1625, %v85, %v861
    %v1628 = vsel %vm1625, %v91, %v867
    %v1629 = vsel %vm1625, %v97, %v873
    %v1630 = vsel %vm1625, %v103, %v879
    %v1631 = vsel %vm1625, %v109, %v885
    %v1632 = vsel %vm1625, %v115, %v891
    %v1633 = vsel %vm1625, %v121, %v897
    %v1634 = vsel %vm1625, %v127, %v903
    %v1635 = vsel %vm1625, %v133, %v909
    %v1636 = vsel %vm1625, %v139, %v915
    %v1637 = vsel %vm1625, %v145, %v921
    %v1638 = vsel %vm1625, %v151, %v927
    %v1639 = vsel %vm1625, %v157, %v933
    %v1640 = vsel %vm1625, %v163, %v939
    %v1641 = vsel %vm1625, %v169, %v945
    %v1642 = vsel %vm1625, %v176, %v952
    %v1643 = vsel %vm1625, %v182, %v958
    %v1644 = vsel %vm1625, %v188, %v964
    %v1645 = vsel %vm1625, %v194, %v970
    %v1646 = vsel %vm1625, %v200, %v976
    %v1647 = vsel %vm1625, %v206, %v982
    %v1648 = vsel %vm1625, %v212, %v988
    %v1649 = vsel %vm1625, %v218, %v994
    %v1650 = vsel %vm1625, %v224, %v1000
    %v1651 = vsel %vm1625, %v230, %v1006
    %v1652 = vsel %vm1625, %v236, %v1012
    %v1653 = vsel %vm1625, %v242, %v1018
    %v1654 = vsel %vm1625, %v248, %v1024
    %v1655 = vsel %vm1625, %v254, %v1030
    %v1656 = vsel %vm1625, %v260, %v1036
    %v1657 = vsel %vm1625, %v266, %v1042
    %v1658 = vsel %vm1625, %v273, %v1049
    %v1659 = vsel %vm1625, %v279, %v1055
    %v1660 = vsel %vm1625, %v285, %v1061
    %v1661 = vsel %vm1625, %v291, %v1067
    %v1662 = vsel %vm1625, %v297, %v1073
    %v1663 = vsel %vm1625, %v303, %v1079
    %v1664 = vsel %vm1625, %v309, %v1085
    %v1665 = vsel %vm1625, %v315, %v1091
    %v1666 = vsel %vm1625, %v321, %v1097
    %v1667 = vsel %vm1625, %v327, %v1103
    %v1668 = vsel %vm1625, %v333, %v1109
    %v1669 = vsel %vm1625, %v339, %v1115
    %v1670 = vsel %vm1625, %v345, %v1121
    %v1671 = vsel %vm1625, %v351, %v1127
    %v1672 = vsel %vm1625, %v357, %v1133
    %v1673 = vsel %vm1625, %v363, %v1139
    %v1674 = vsel %vm1625, %v370, %v1146
    %v1675 = vsel %vm1625, %v376, %v1152
    %v1676 = vsel %vm1625, %v382, %v1158
    %v1677 = vsel %vm1625, %v388, %v1164
    %v1678 = vsel %vm1625, %v394, %v1170
    %v1679 = vsel %vm1625, %v400, %v1176
    %v1680 = vsel %vm1625, %v406, %v1182
    %v1681 = vsel %vm1625, %v412, %v1188
    %v1682 = vsel %vm1625, %v418, %v1194
    %v1683 = vsel %vm1625, %v424, %v1200
    %v1684 = vsel %vm1625, %v430, %v1206
    %v1685 = vsel %vm1625, %v436, %v1212
    %v1686 = vsel %vm1625, %v442, %v1218
    %v1687 = vsel %vm1625, %v448, %v1224
    %v1688 = vsel %vm1625, %v454, %v1230
    %v1689 = vsel %vm1625, %v460, %v1236
    %v1690 = vsel %vm1625, %v467, %v1243
    %v1691 = vsel %vm1625, %v473, %v1249
    %v1692 = vsel %vm1625, %v479, %v1255
    %v1693 = vsel %vm1625, %v485, %v1261
    %v1694 = vsel %vm1625, %v491, %v1267
    %v1695 = vsel %vm1625, %v497, %v1273
    %v1696 = vsel %vm1625, %v503, %v1279
    %v1697 = vsel %vm1625, %v509, %v1285
    %v1698 = vsel %vm1625, %v515, %v1291
    %v1699 = vsel %vm1625, %v521, %v1297
    %v1700 = vsel %vm1625, %v527, %v1303
    %v1701 = vsel %vm1625, %v533, %v1309
    %v1702 = vsel %vm1625, %v539, %v1315
    %v1703 = vsel %vm1625, %v545, %v1321
    %v1704 = vsel %vm1625, %v551, %v1327
    %v1705 = vsel %vm1625, %v557, %v1333
    %v1706 = vsel %vm1625, %v564, %v1340
    %v1707 = vsel %vm1625, %v570, %v1346
    %v1708 = vsel %vm1625, %v576, %v1352
    %v1709 = vsel %vm1625, %v582, %v1358
    %v1710 = vsel %vm1625, %v588, %v1364
    %v1711 = vsel %vm1625, %v594, %v1370
    %v1712 = vsel %vm1625, %v600, %v1376
    %v1713 = vsel %vm1625, %v606, %v1382
    %v1714 = vsel %vm1625, %v612, %v1388
    %v1715 = vsel %vm1625, %v618, %v1394
    %v1716 = vsel %vm1625, %v624, %v1400
    %v1717 = vsel %vm1625, %v630, %v1406
    %v1718 = vsel %vm1625, %v636, %v1412
    %v1719 = vsel %vm1625, %v642, %v1418
    %v1720 = vsel %vm1625, %v648, %v1424
    %v1721 = vsel %vm1625, %v654, %v1430
    %v1722 = vsel %vm1625, %v661, %v1437
    %v1723 = vsel %vm1625, %v667, %v1443
    %v1724 = vsel %vm1625, %v673, %v1449
    %v1725 = vsel %vm1625, %v679, %v1455
    %v1726 = vsel %vm1625, %v685, %v1461
    %v1727 = vsel %vm1625, %v691, %v1467
    %v1728 = vsel %vm1625, %v697, %v1473
    %v1729 = vsel %vm1625, %v703, %v1479
    %v1730 = vsel %vm1625, %v709, %v1485
    %v1731 = vsel %vm1625, %v715, %v1491
    %v1732 = vsel %vm1625, %v721, %v1497
    %v1733 = vsel %vm1625, %v727, %v1503
    %v1734 = vsel %vm1625, %v733, %v1509
    %v1735 = vsel %vm1625, %v739, %v1515
    %v1736 = vsel %vm1625, %v745, %v1521
    %v1737 = vsel %vm1625, %v751, %v1527
    %v1738 = vsel %vm1625, %v758, %v1534
    %v1739 = vsel %vm1625, %v764, %v1540
    %v1740 = vsel %vm1625, %v770, %v1546
    %v1741 = vsel %vm1625, %v776, %v1552
    %v1742 = vsel %vm1625, %v782, %v1558
    %v1743 = vsel %vm1625, %v788, %v1564
    %v1744 = vsel %vm1625, %v794, %v1570
    %v1745 = vsel %vm1625, %v800, %v1576
    %v1746 = vsel %vm1625, %v806, %v1582
    %v1747 = vsel %vm1625, %v812, %v1588
    %v1748 = vsel %vm1625, %v818, %v1594
    %v1749 = vsel %vm1625, %v824, %v1600
    %v1750 = vsel %vm1625, %v830, %v1606
    %v1751 = vsel %vm1625, %v836, %v1612
    %v1752 = vsel %vm1625, %v842, %v1618
    %v1753 = vsel %vm1625, %v848, %v1624
    %v1754 = vrot.slane %v1658, 4
    %vm1755 = vcmask 1047556
    %v1756 = vsel %vm1755, %v1754, %v1626
    %v1757 = vrot.slane %v1626, 4
    %v1758 = vsel %vm1755, %v1658, %v1757
    %v1760 = vunpack.c.l.s4 1983009808
    %v1761 = vunpack.c.0.s8 %v1760
    %v1762 = vperm.slane %v1756, %v1761
    %v1764 = vunpack.c.l.s4 1983009808
    %v1765 = vunpack.c.0.s8 %v1764
    %v1766 = vperm.slane %v1758, %v1765
    %v1767 = vrot.slane %v1674, 4
    %v1768 = vsel %vm1755, %v1767, %v1642
    %v1769 = vrot.slane %v1642, 4
    %v1770 = vsel %vm1755, %v1674, %v1769
    %v1772 = vunpack.c.l.s4 1983009808
    %v1773 = vunpack.c.0.s8 %v1772
    %v1774 = vperm.slane %v1768, %v1773
    %v1776 = vunpack.c.l.s4 1983009808
    %v1777 = vunpack.c.0.s8 %v1776
    %v1778 = vperm.slane %v1770, %v1777
    %v1779 = vrot.slane %v1722, 4
    %v1780 = vsel %vm1755, %v1779, %v1690
    %v1781 = vrot.slane %v1690, 4
    %v1782 = vsel %vm1755, %v1722, %v1781
    %v1784 = vunpack.c.l.s4 1983009808
    %v1785 = vunpack.c.0.s8 %v1784
    %v1786 = vperm.slane %v1780, %v1785
    %v1788 = vunpack.c.l.s4 1983009808
    %v1789 = vunpack.c.0.s8 %v1788
    %v1790 = vperm.slane %v1782, %v1789
    %v1791 = vrot.slane %v1738, 4
    %v1792 = vsel %vm1755, %v1791, %v1706
    %v1793 = vrot.slane %v1706, 4
    %v1794 = vsel %vm1755, %v1738, %v1793
    %v1796 = vunpack.c.l.s4 1983009808
    %v1797 = vunpack.c.0.s8 %v1796
    %v1798 = vperm.slane %v1792, %v1797
    %v1800 = vunpack.c.l.s4 1983009808
    %v1801 = vunpack.c.0.s8 %v1800
    %v1802 = vperm.slane %v1794, %v1801
    %v1803 = vrot.slane %v1774, 4
    %v1804 = vsel %vm1755, %v1803, %v1762
    %v1805 = vrot.slane %v1762, 4
    %v1806 = vsel %vm1755, %v1774, %v1805
    %v1808 = vunpack.c.l.s4 1934713408
    %v1809 = vunpack.c.0.s8 %v1808
    %v1810 = vperm.slane %v1804, %v1809
    %v1812 = vunpack.c.l.s4 1934713408
    %v1813 = vunpack.c.0.s8 %v1812
    %v1814 = vperm.slane %v1806, %v1813
    %v1815 = vrot.slane %v1778, 4
    %v1816 = vsel %vm1755, %v1815, %v1766
    %v1817 = vrot.slane %v1766, 4
    %v1818 = vsel %vm1755, %v1778, %v1817
    %v1820 = vunpack.c.l.s4 1934713408
    %v1821 = vunpack.c.0.s8 %v1820
    %v1822 = vperm.slane %v1816, %v1821
    %v1824 = vunpack.c.l.s4 1934713408
    %v1825 = vunpack.c.0.s8 %v1824
    %v1826 = vperm.slane %v1818, %v1825
    %v1827 = vrot.slane %v1798, 4
    %v1828 = vsel %vm1755, %v1827, %v1786
    %v1829 = vrot.slane %v1786, 4
    %v1830 = vsel %vm1755, %v1798, %v1829
    %v1832 = vunpack.c.l.s4 1934713408
    %v1833 = vunpack.c.0.s8 %v1832
    %v1834 = vperm.slane %v1828, %v1833
    %v1836 = vunpack.c.l.s4 1934713408
    %v1837 = vunpack.c.0.s8 %v1836
    %v1838 = vperm.slane %v1830, %v1837
    %v1839 = vrot.slane %v1802, 4
    %v1840 = vsel %vm1755, %v1839, %v1790
    %v1841 = vrot.slane %v1790, 4
    %v1842 = vsel %vm1755, %v1802, %v1841
    %v1844 = vunpack.c.l.s4 1934713408
    %v1845 = vunpack.c.0.s8 %v1844
    %v1846 = vperm.slane %v1840, %v1845
    %v1848 = vunpack.c.l.s4 1934713408
    %v1849 = vunpack.c.0.s8 %v1848
    %v1850 = vperm.slane %v1842, %v1849
    %v1851 = vrot.slane %v1834, 4
    %v1852 = vsel %vm1755, %v1851, %v1810
    %v1853 = vrot.slane %v1810, 4
    %v1854 = vsel %vm1755, %v1834, %v1853
    %v1855 = vrot.slane %v1838, 4
    %v1856 = vsel %vm1755, %v1855, %v1814
    %v1857 = vrot.slane %v1814, 4
    %v1858 = vsel %vm1755, %v1838, %v1857
    %v1859 = vrot.slane %v1846, 4
    %v1860 = vsel %vm1755, %v1859, %v1822
    %v1861 = vrot.slane %v1822, 4
    %v1862 = vsel %vm1755, %v1846, %v1861
    %v1863 = vrot.slane %v1850, 4
    %v1864 = vsel %vm1755, %v1863, %v1826
    %v1865 = vrot.slane %v1826, 4
    %v1866 = vsel %vm1755, %v1850, %v1865
    %v1867 = vrot.slane %v1659, 4
    %v1868 = vsel %vm1755, %v1867, %v1627
    %v1869 = vrot.slane %v1627, 4
    %v1870 = vsel %vm1755, %v1659, %v1869
    %v1872 = vunpack.c.l.s4 1983009808
    %v1873 = vunpack.c.0.s8 %v1872
    %v1874 = vperm.slane %v1868, %v1873
    %v1876 = vunpack.c.l.s4 1983009808
    %v1877 = vunpack.c.0.s8 %v1876
    %v1878 = vperm.slane %v1870, %v1877
    %v1879 = vrot.slane %v1675, 4
    %v1880 = vsel %vm1755, %v1879, %v1643
    %v1881 = vrot.slane %v1643, 4
    %v1882 = vsel %vm1755, %v1675, %v1881
    %v1884 = vunpack.c.l.s4 1983009808
    %v1885 = vunpack.c.0.s8 %v1884
    %v1886 = vperm.slane %v1880, %v1885
    %v1888 = vunpack.c.l.s4 1983009808
    %v1889 = vunpack.c.0.s8 %v1888
    %v1890 = vperm.slane %v1882, %v1889
    %v1891 = vrot.slane %v1723, 4
    %v1892 = vsel %vm1755, %v1891, %v1691
    %v1893 = vrot.slane %v1691, 4
    %v1894 = vsel %vm1755, %v1723, %v1893
    %v1896 = vunpack.c.l.s4 1983009808
    %v1897 = vunpack.c.0.s8 %v1896
    %v1898 = vperm.slane %v1892, %v1897
    %v1900 = vunpack.c.l.s4 1983009808
    %v1901 = vunpack.c.0.s8 %v1900
    %v1902 = vperm.slane %v1894, %v1901
    %v1903 = vrot.slane %v1739, 4
    %v1904 = vsel %vm1755, %v1903, %v1707
    %v1905 = vrot.slane %v1707, 4
    %v1906 = vsel %vm1755, %v1739, %v1905
    %v1908 = vunpack.c.l.s4 1983009808
    %v1909 = vunpack.c.0.s8 %v1908
    %v1910 = vperm.slane %v1904, %v1909
    %v1912 = vunpack.c.l.s4 1983009808
    %v1913 = vunpack.c.0.s8 %v1912
    %v1914 = vperm.slane %v1906, %v1913
    %v1915 = vrot.slane %v1886, 4
    %v1916 = vsel %vm1755, %v1915, %v1874
    %v1917 = vrot.slane %v1874, 4
    %v1918 = vsel %vm1755, %v1886, %v1917
    %v1920 = vunpack.c.l.s4 1934713408
    %v1921 = vunpack.c.0.s8 %v1920
    %v1922 = vperm.slane %v1916, %v1921
    %v1924 = vunpack.c.l.s4 1934713408
    %v1925 = vunpack.c.0.s8 %v1924
    %v1926 = vperm.slane %v1918, %v1925
    %v1927 = vrot.slane %v1890, 4
    %v1928 = vsel %vm1755, %v1927, %v1878
    %v1929 = vrot.slane %v1878, 4
    %v1930 = vsel %vm1755, %v1890, %v1929
    %v1932 = vunpack.c.l.s4 1934713408
    %v1933 = vunpack.c.0.s8 %v1932
    %v1934 = vperm.slane %v1928, %v1933
    %v1936 = vunpack.c.l.s4 1934713408
    %v1937 = vunpack.c.0.s8 %v1936
    %v1938 = vperm.slane %v1930, %v1937
    %v1939 = vrot.slane %v1910, 4
    %v1940 = vsel %vm1755, %v1939, %v1898
    %v1941 = vrot.slane %v1898, 4
    %v1942 = vsel %vm1755, %v1910, %v1941
    %v1944 = vunpack.c.l.s4 1934713408
    %v1945 = vunpack.c.0.s8 %v1944
    %v1946 = vperm.slane %v1940, %v1945
    %v1948 = vunpack.c.l.s4 1934713408
    %v1949 = vunpack.c.0.s8 %v1948
    %v1950 = vperm.slane %v1942, %v1949
    %v1951 = vrot.slane %v1914, 4
    %v1952 = vsel %vm1755, %v1951, %v1902
    %v1953 = vrot.slane %v1902, 4
    %v1954 = vsel %vm1755, %v1914, %v1953
    %v1956 = vunpack.c.l.s4 1934713408
    %v1957 = vunpack.c.0.s8 %v1956
    %v1958 = vperm.slane %v1952, %v1957
    %v1960 = vunpack.c.l.s4 1934713408
    %v1961 = vunpack.c.0.s8 %v1960
    %v1962 = vperm.slane %v1954, %v1961
    %v1963 = vrot.slane %v1946, 4
    %v1964 = vsel %vm1755, %v1963, %v1922
    %v1965 = vrot.slane %v1922, 4
    %v1966 = vsel %vm1755, %v1946, %v1965
    %v1967 = vrot.slane %v1950, 4
    %v1968 = vsel %vm1755, %v1967, %v1926
    %v1969 = vrot.slane %v1926, 4
    %v1970 = vsel %vm1755, %v1950, %v1969
    %v1971 = vrot.slane %v1958, 4
    %v1972 = vsel %vm1755, %v1971, %v1934
    %v1973 = vrot.slane %v1934, 4
    %v1974 = vsel %vm1755, %v1958, %v1973
    %v1975 = vrot.slane %v1962, 4
    %v1976 = vsel %vm1755, %v1975, %v1938
    %v1977 = vrot.slane %v1938, 4
    %v1978 = vsel %vm1755, %v1962, %v1977
    %v1979 = vrot.slane %v1660, 4
    %v1980 = vsel %vm1755, %v1979, %v1628
    %v1981 = vrot.slane %v1628, 4
    %v1982 = vsel %vm1755, %v1660, %v1981
    %v1984 = vunpack.c.l.s4 1983009808
    %v1985 = vunpack.c.0.s8 %v1984
    %v1986 = vperm.slane %v1980, %v1985
    %v1988 = vunpack.c.l.s4 1983009808
    %v1989 = vunpack.c.0.s8 %v1988
    %v1990 = vperm.slane %v1982, %v1989
    %v1991 = vrot.slane %v1676, 4
    %v1992 = vsel %vm1755, %v1991, %v1644
    %v1993 = vrot.slane %v1644, 4
    %v1994 = vsel %vm1755, %v1676, %v1993
    %v1996 = vunpack.c.l.s4 1983009808
    %v1997 = vunpack.c.0.s8 %v1996
    %v1998 = vperm.slane %v1992, %v1997
    %v2000 = vunpack.c.l.s4 1983009808
    %v2001 = vunpack.c.0.s8 %v2000
    %v2002 = vperm.slane %v1994, %v2001
    %v2003 = vrot.slane %v1724, 4
    %v2004 = vsel %vm1755, %v2003, %v1692
    %v2005 = vrot.slane %v1692, 4
    %v2006 = vsel %vm1755, %v1724, %v2005
    %v2008 = vunpack.c.l.s4 1983009808
    %v2009 = vunpack.c.0.s8 %v2008
    %v2010 = vperm.slane %v2004, %v2009
    %v2012 = vunpack.c.l.s4 1983009808
    %v2013 = vunpack.c.0.s8 %v2012
    %v2014 = vperm.slane %v2006, %v2013
    %v2015 = vrot.slane %v1740, 4
    %v2016 = vsel %vm1755, %v2015, %v1708
    %v2017 = vrot.slane %v1708, 4
    %v2018 = vsel %vm1755, %v1740, %v2017
    %v2020 = vunpack.c.l.s4 1983009808
    %v2021 = vunpack.c.0.s8 %v2020
    %v2022 = vperm.slane %v2016, %v2021
    %v2024 = vunpack.c.l.s4 1983009808
    %v2025 = vunpack.c.0.s8 %v2024
    %v2026 = vperm.slane %v2018, %v2025
    %v2027 = vrot.slane %v1998, 4
    %v2028 = vsel %vm1755, %v2027, %v1986
    %v2029 = vrot.slane %v1986, 4
    %v2030 = vsel %vm1755, %v1998, %v2029
    %v2032 = vunpack.c.l.s4 1934713408
    %v2033 = vunpack.c.0.s8 %v2032
    %v2034 = vperm.slane %v2028, %v2033
    %v2036 = vunpack.c.l.s4 1934713408
    %v2037 = vunpack.c.0.s8 %v2036
    %v2038 = vperm.slane %v2030, %v2037
    %v2039 = vrot.slane %v2002, 4
    %v2040 = vsel %vm1755, %v2039, %v1990
    %v2041 = vrot.slane %v1990, 4
    %v2042 = vsel %vm1755, %v2002, %v2041
    %v2044 = vunpack.c.l.s4 1934713408
    %v2045 = vunpack.c.0.s8 %v2044
    %v2046 = vperm.slane %v2040, %v2045
    %v2048 = vunpack.c.l.s4 1934713408
    %v2049 = vunpack.c.0.s8 %v2048
    %v2050 = vperm.slane %v2042, %v2049
    %v2051 = vrot.slane %v2022, 4
    %v2052 = vsel %vm1755, %v2051, %v2010
    %v2053 = vrot.slane %v2010, 4
    %v2054 = vsel %vm1755, %v2022, %v2053
    %v2056 = vunpack.c.l.s4 1934713408
    %v2057 = vunpack.c.0.s8 %v2056
    %v2058 = vperm.slane %v2052, %v2057
    %v2060 = vunpack.c.l.s4 1934713408
    %v2061 = vunpack.c.0.s8 %v2060
    %v2062 = vperm.slane %v2054, %v2061
    %v2063 = vrot.slane %v2026, 4
    %v2064 = vsel %vm1755, %v2063, %v2014
    %v2065 = vrot.slane %v2014, 4
    %v2066 = vsel %vm1755, %v2026, %v2065
    %v2068 = vunpack.c.l.s4 1934713408
    %v2069 = vunpack.c.0.s8 %v2068
    %v2070 = vperm.slane %v2064, %v2069
    %v2072 = vunpack.c.l.s4 1934713408
    %v2073 = vunpack.c.0.s8 %v2072
    %v2074 = vperm.slane %v2066, %v2073
    %v2075 = vrot.slane %v2058, 4
    %v2076 = vsel %vm1755, %v2075, %v2034
    %v2077 = vrot.slane %v2034, 4
    %v2078 = vsel %vm1755, %v2058, %v2077
    %v2079 = vrot.slane %v2062, 4
    %v2080 = vsel %vm1755, %v2079, %v2038
    %v2081 = vrot.slane %v2038, 4
    %v2082 = vsel %vm1755, %v2062, %v2081
    %v2083 = vrot.slane %v2070, 4
    %v2084 = vsel %vm1755, %v2083, %v2046
    %v2085 = vrot.slane %v2046, 4
    %v2086 = vsel %vm1755, %v2070, %v2085
    %v2087 = vrot.slane %v2074, 4
    %v2088 = vsel %vm1755, %v2087, %v2050
    %v2089 = vrot.slane %v2050, 4
    %v2090 = vsel %vm1755, %v2074, %v2089
    %v2091 = vrot.slane %v1661, 4
    %v2092 = vsel %vm1755, %v2091, %v1629
    %v2093 = vrot.slane %v1629, 4
    %v2094 = vsel %vm1755, %v1661, %v2093
    %v2096 = vunpack.c.l.s4 1983009808
    %v2097 = vunpack.c.0.s8 %v2096
    %v2098 = vperm.slane %v2092, %v2097
    %v2100 = vunpack.c.l.s4 1983009808
    %v2101 = vunpack.c.0.s8 %v2100
    %v2102 = vperm.slane %v2094, %v2101
    %v2103 = vrot.slane %v1677, 4
    %v2104 = vsel %vm1755, %v2103, %v1645
    %v2105 = vrot.slane %v1645, 4
    %v2106 = vsel %vm1755, %v1677, %v2105
    %v2108 = vunpack.c.l.s4 1983009808
    %v2109 = vunpack.c.0.s8 %v2108
    %v2110 = vperm.slane %v2104, %v2109
    %v2112 = vunpack.c.l.s4 1983009808
    %v2113 = vunpack.c.0.s8 %v2112
    %v2114 = vperm.slane %v2106, %v2113
    %v2115 = vrot.slane %v1725, 4
    %v2116 = vsel %vm1755, %v2115, %v1693
    %v2117 = vrot.slane %v1693, 4
    %v2118 = vsel %vm1755, %v1725, %v2117
    %v2120 = vunpack.c.l.s4 1983009808
    %v2121 = vunpack.c.0.s8 %v2120
    %v2122 = vperm.slane %v2116, %v2121
    %v2124 = vunpack.c.l.s4 1983009808
    %v2125 = vunpack.c.0.s8 %v2124
    %v2126 = vperm.slane %v2118, %v2125
    %v2127 = vrot.slane %v1741, 4
    %v2128 = vsel %vm1755, %v2127, %v1709
    %v2129 = vrot.slane %v1709, 4
    %v2130 = vsel %vm1755, %v1741, %v2129
    %v2132 = vunpack.c.l.s4 1983009808
    %v2133 = vunpack.c.0.s8 %v2132
    %v2134 = vperm.slane %v2128, %v2133
    %v2136 = vunpack.c.l.s4 1983009808
    %v2137 = vunpack.c.0.s8 %v2136
    %v2138 = vperm.slane %v2130, %v2137
    %v2139 = vrot.slane %v2110, 4
    %v2140 = vsel %vm1755, %v2139, %v2098
    %v2141 = vrot.slane %v2098, 4
    %v2142 = vsel %vm1755, %v2110, %v2141
    %v2144 = vunpack.c.l.s4 1934713408
    %v2145 = vunpack.c.0.s8 %v2144
    %v2146 = vperm.slane %v2140, %v2145
    %v2148 = vunpack.c.l.s4 1934713408
    %v2149 = vunpack.c.0.s8 %v2148
    %v2150 = vperm.slane %v2142, %v2149
    %v2151 = vrot.slane %v2114, 4
    %v2152 = vsel %vm1755, %v2151, %v2102
    %v2153 = vrot.slane %v2102, 4
    %v2154 = vsel %vm1755, %v2114, %v2153
    %v2156 = vunpack.c.l.s4 1934713408
    %v2157 = vunpack.c.0.s8 %v2156
    %v2158 = vperm.slane %v2152, %v2157
    %v2160 = vunpack.c.l.s4 1934713408
    %v2161 = vunpack.c.0.s8 %v2160
    %v2162 = vperm.slane %v2154, %v2161
    %v2163 = vrot.slane %v2134, 4
    %v2164 = vsel %vm1755, %v2163, %v2122
    %v2165 = vrot.slane %v2122, 4
    %v2166 = vsel %vm1755, %v2134, %v2165
    %v2168 = vunpack.c.l.s4 1934713408
    %v2169 = vunpack.c.0.s8 %v2168
    %v2170 = vperm.slane %v2164, %v2169
    %v2172 = vunpack.c.l.s4 1934713408
    %v2173 = vunpack.c.0.s8 %v2172
    %v2174 = vperm.slane %v2166, %v2173
    %v2175 = vrot.slane %v2138, 4
    %v2176 = vsel %vm1755, %v2175, %v2126
    %v2177 = vrot.slane %v2126, 4
    %v2178 = vsel %vm1755, %v2138, %v2177
    %v2180 = vunpack.c.l.s4 1934713408
    %v2181 = vunpack.c.0.s8 %v2180
    %v2182 = vperm.slane %v2176, %v2181
    %v2184 = vunpack.c.l.s4 1934713408
    %v2185 = vunpack.c.0.s8 %v2184
    %v2186 = vperm.slane %v2178, %v2185
    %v2187 = vrot.slane %v2170, 4
    %v2188 = vsel %vm1755, %v2187, %v2146
    %v2189 = vrot.slane %v2146, 4
    %v2190 = vsel %vm1755, %v2170, %v2189
    %v2191 = vrot.slane %v2174, 4
    %v2192 = vsel %vm1755, %v2191, %v2150
    %v2193 = vrot.slane %v2150, 4
    %v2194 = vsel %vm1755, %v2174, %v2193
    %v2195 = vrot.slane %v2182, 4
    %v2196 = vsel %vm1755, %v2195, %v2158
    %v2197 = vrot.slane %v2158, 4
    %v2198 = vsel %vm1755, %v2182, %v2197
    %v2199 = vrot.slane %v2186, 4
    %v2200 = vsel %vm1755, %v2199, %v2162
    %v2201 = vrot.slane %v2162, 4
    %v2202 = vsel %vm1755, %v2186, %v2201
    %v2203 = vrot.slane %v1662, 4
    %v2204 = vsel %vm1755, %v2203, %v1630
    %v2205 = vrot.slane %v1630, 4
    %v2206 = vsel %vm1755, %v1662, %v2205
    %v2208 = vunpack.c.l.s4 1983009808
    %v2209 = vunpack.c.0.s8 %v2208
    %v2210 = vperm.slane %v2204, %v2209
    %v2212 = vunpack.c.l.s4 1983009808
    %v2213 = vunpack.c.0.s8 %v2212
    %v2214 = vperm.slane %v2206, %v2213
    %v2215 = vrot.slane %v1678, 4
    %v2216 = vsel %vm1755, %v2215, %v1646
    %v2217 = vrot.slane %v1646, 4
    %v2218 = vsel %vm1755, %v1678, %v2217
    %v2220 = vunpack.c.l.s4 1983009808
    %v2221 = vunpack.c.0.s8 %v2220
    %v2222 = vperm.slane %v2216, %v2221
    %v2224 = vunpack.c.l.s4 1983009808
    %v2225 = vunpack.c.0.s8 %v2224
    %v2226 = vperm.slane %v2218, %v2225
    %v2227 = vrot.slane %v1726, 4
    %v2228 = vsel %vm1755, %v2227, %v1694
    %v2229 = vrot.slane %v1694, 4
    %v2230 = vsel %vm1755, %v1726, %v2229
    %v2232 = vunpack.c.l.s4 1983009808
    %v2233 = vunpack.c.0.s8 %v2232
    %v2234 = vperm.slane %v2228, %v2233
    %v2236 = vunpack.c.l.s4 1983009808
    %v2237 = vunpack.c.0.s8 %v2236
    %v2238 = vperm.slane %v2230, %v2237
    %v2239 = vrot.slane %v1742, 4
    %v2240 = vsel %vm1755, %v2239, %v1710
    %v2241 = vrot.slane %v1710, 4
    %v2242 = vsel %vm1755, %v1742, %v2241
    %v2244 = vunpack.c.l.s4 1983009808
    %v2245 = vunpack.c.0.s8 %v2244
    %v2246 = vperm.slane %v2240, %v2245
    %v2248 = vunpack.c.l.s4 1983009808
    %v2249 = vunpack.c.0.s8 %v2248
    %v2250 = vperm.slane %v2242, %v2249
    %v2251 = vrot.slane %v2222, 4
    %v2252 = vsel %vm1755, %v2251, %v2210
    %v2253 = vrot.slane %v2210, 4
    %v2254 = vsel %vm1755, %v2222, %v2253
    %v2256 = vunpack.c.l.s4 1934713408
    %v2257 = vunpack.c.0.s8 %v2256
    %v2258 = vperm.slane %v2252, %v2257
    %v2260 = vunpack.c.l.s4 1934713408
    %v2261 = vunpack.c.0.s8 %v2260
    %v2262 = vperm.slane %v2254, %v2261
    %v2263 = vrot.slane %v2226, 4
    %v2264 = vsel %vm1755, %v2263, %v2214
    %v2265 = vrot.slane %v2214, 4
    %v2266 = vsel %vm1755, %v2226, %v2265
    %v2268 = vunpack.c.l.s4 1934713408
    %v2269 = vunpack.c.0.s8 %v2268
    %v2270 = vperm.slane %v2264, %v2269
    %v2272 = vunpack.c.l.s4 1934713408
    %v2273 = vunpack.c.0.s8 %v2272
    %v2274 = vperm.slane %v2266, %v2273
    %v2275 = vrot.slane %v2246, 4
    %v2276 = vsel %vm1755, %v2275, %v2234
    %v2277 = vrot.slane %v2234, 4
    %v2278 = vsel %vm1755, %v2246, %v2277
    %v2280 = vunpack.c.l.s4 1934713408
    %v2281 = vunpack.c.0.s8 %v2280
    %v2282 = vperm.slane %v2276, %v2281
    %v2284 = vunpack.c.l.s4 1934713408
    %v2285 = vunpack.c.0.s8 %v2284
    %v2286 = vperm.slane %v2278, %v2285
    %v2287 = vrot.slane %v2250, 4
    %v2288 = vsel %vm1755, %v2287, %v2238
    %v2289 = vrot.slane %v2238, 4
    %v2290 = vsel %vm1755, %v2250, %v2289
    %v2292 = vunpack.c.l.s4 1934713408
    %v2293 = vunpack.c.0.s8 %v2292
    %v2294 = vperm.slane %v2288, %v2293
    %v2296 = vunpack.c.l.s4 1934713408
    %v2297 = vunpack.c.0.s8 %v2296
    %v2298 = vperm.slane %v2290, %v2297
    %v2299 = vrot.slane %v2282, 4
    %v2300 = vsel %vm1755, %v2299, %v2258
    %v2301 = vrot.slane %v2258, 4
    %v2302 = vsel %vm1755, %v2282, %v2301
    %v2303 = vrot.slane %v2286, 4
    %v2304 = vsel %vm1755, %v2303, %v2262
    %v2305 = vrot.slane %v2262, 4
    %v2306 = vsel %vm1755, %v2286, %v2305
    %v2307 = vrot.slane %v2294, 4
    %v2308 = vsel %vm1755, %v2307, %v2270
    %v2309 = vrot.slane %v2270, 4
    %v2310 = vsel %vm1755, %v2294, %v2309
    %v2311 = vrot.slane %v2298, 4
    %v2312 = vsel %vm1755, %v2311, %v2274
    %v2313 = vrot.slane %v2274, 4
    %v2314 = vsel %vm1755, %v2298, %v2313
    %v2315 = vrot.slane %v1663, 4
    %v2316 = vsel %vm1755, %v2315, %v1631
    %v2317 = vrot.slane %v1631, 4
    %v2318 = vsel %vm1755, %v1663, %v2317
    %v2320 = vunpack.c.l.s4 1983009808
    %v2321 = vunpack.c.0.s8 %v2320
    %v2322 = vperm.slane %v2316, %v2321
    %v2324 = vunpack.c.l.s4 1983009808
    %v2325 = vunpack.c.0.s8 %v2324
    %v2326 = vperm.slane %v2318, %v2325
    %v2327 = vrot.slane %v1679, 4
    %v2328 = vsel %vm1755, %v2327, %v1647
    %v2329 = vrot.slane %v1647, 4
    %v2330 = vsel %vm1755, %v1679, %v2329
    %v2332 = vunpack.c.l.s4 1983009808
    %v2333 = vunpack.c.0.s8 %v2332
    %v2334 = vperm.slane %v2328, %v2333
    %v2336 = vunpack.c.l.s4 1983009808
    %v2337 = vunpack.c.0.s8 %v2336
    %v2338 = vperm.slane %v2330, %v2337
    %v2339 = vrot.slane %v1727, 4
    %v2340 = vsel %vm1755, %v2339, %v1695
    %v2341 = vrot.slane %v1695, 4
    %v2342 = vsel %vm1755, %v1727, %v2341
    %v2344 = vunpack.c.l.s4 1983009808
    %v2345 = vunpack.c.0.s8 %v2344
    %v2346 = vperm.slane %v2340, %v2345
    %v2348 = vunpack.c.l.s4 1983009808
    %v2349 = vunpack.c.0.s8 %v2348
    %v2350 = vperm.slane %v2342, %v2349
    %v2351 = vrot.slane %v1743, 4
    %v2352 = vsel %vm1755, %v2351, %v1711
    %v2353 = vrot.slane %v1711, 4
    %v2354 = vsel %vm1755, %v1743, %v2353
    %v2356 = vunpack.c.l.s4 1983009808
    %v2357 = vunpack.c.0.s8 %v2356
    %v2358 = vperm.slane %v2352, %v2357
    %v2360 = vunpack.c.l.s4 1983009808
    %v2361 = vunpack.c.0.s8 %v2360
    %v2362 = vperm.slane %v2354, %v2361
    %v2363 = vrot.slane %v2334, 4
    %v2364 = vsel %vm1755, %v2363, %v2322
    %v2365 = vrot.slane %v2322, 4
    %v2366 = vsel %vm1755, %v2334, %v2365
    %v2368 = vunpack.c.l.s4 1934713408
    %v2369 = vunpack.c.0.s8 %v2368
    %v2370 = vperm.slane %v2364, %v2369
    %v2372 = vunpack.c.l.s4 1934713408
    %v2373 = vunpack.c.0.s8 %v2372
    %v2374 = vperm.slane %v2366, %v2373
    %v2375 = vrot.slane %v2338, 4
    %v2376 = vsel %vm1755, %v2375, %v2326
    %v2377 = vrot.slane %v2326, 4
    %v2378 = vsel %vm1755, %v2338, %v2377
    %v2380 = vunpack.c.l.s4 1934713408
    %v2381 = vunpack.c.0.s8 %v2380
    %v2382 = vperm.slane %v2376, %v2381
    %v2384 = vunpack.c.l.s4 1934713408
    %v2385 = vunpack.c.0.s8 %v2384
    %v2386 = vperm.slane %v2378, %v2385
    %v2387 = vrot.slane %v2358, 4
    %v2388 = vsel %vm1755, %v2387, %v2346
    %v2389 = vrot.slane %v2346, 4
    %v2390 = vsel %vm1755, %v2358, %v2389
    %v2392 = vunpack.c.l.s4 1934713408
    %v2393 = vunpack.c.0.s8 %v2392
    %v2394 = vperm.slane %v2388, %v2393
    %v2396 = vunpack.c.l.s4 1934713408
    %v2397 = vunpack.c.0.s8 %v2396
    %v2398 = vperm.slane %v2390, %v2397
    %v2399 = vrot.slane %v2362, 4
    %v2400 = vsel %vm1755, %v2399, %v2350
    %v2401 = vrot.slane %v2350, 4
    %v2402 = vsel %vm1755, %v2362, %v2401
    %v2404 = vunpack.c.l.s4 1934713408
    %v2405 = vunpack.c.0.s8 %v2404
    %v2406 = vperm.slane %v2400, %v2405
    %v2408 = vunpack.c.l.s4 1934713408
    %v2409 = vunpack.c.0.s8 %v2408
    %v2410 = vperm.slane %v2402, %v2409
    %v2411 = vrot.slane %v2394, 4
    %v2412 = vsel %vm1755, %v2411, %v2370
    %v2413 = vrot.slane %v2370, 4
    %v2414 = vsel %vm1755, %v2394, %v2413
    %v2415 = vrot.slane %v2398, 4
    %v2416 = vsel %vm1755, %v2415, %v2374
    %v2417 = vrot.slane %v2374, 4
    %v2418 = vsel %vm1755, %v2398, %v2417
    %v2419 = vrot.slane %v2406, 4
    %v2420 = vsel %vm1755, %v2419, %v2382
    %v2421 = vrot.slane %v2382, 4
    %v2422 = vsel %vm1755, %v2406, %v2421
    %v2423 = vrot.slane %v2410, 4
    %v2424 = vsel %vm1755, %v2423, %v2386
    %v2425 = vrot.slane %v2386, 4
    %v2426 = vsel %vm1755, %v2410, %v2425
    %v2427 = vrot.slane %v1664, 4
    %v2428 = vsel %vm1755, %v2427, %v1632
    %v2429 = vrot.slane %v1632, 4
    %v2430 = vsel %vm1755, %v1664, %v2429
    %v2432 = vunpack.c.l.s4 1983009808
    %v2433 = vunpack.c.0.s8 %v2432
    %v2434 = vperm.slane %v2428, %v2433
    %v2436 = vunpack.c.l.s4 1983009808
    %v2437 = vunpack.c.0.s8 %v2436
    %v2438 = vperm.slane %v2430, %v2437
    %v2439 = vrot.slane %v1680, 4
    %v2440 = vsel %vm1755, %v2439, %v1648
    %v2441 = vrot.slane %v1648, 4
    %v2442 = vsel %vm1755, %v1680, %v2441
    %v2444 = vunpack.c.l.s4 1983009808
    %v2445 = vunpack.c.0.s8 %v2444
    %v2446 = vperm.slane %v2440, %v2445
    %v2448 = vunpack.c.l.s4 1983009808
    %v2449 = vunpack.c.0.s8 %v2448
    %v2450 = vperm.slane %v2442, %v2449
    %v2451 = vrot.slane %v1728, 4
    %v2452 = vsel %vm1755, %v2451, %v1696
    %v2453 = vrot.slane %v1696, 4
    %v2454 = vsel %vm1755, %v1728, %v2453
    %v2456 = vunpack.c.l.s4 1983009808
    %v2457 = vunpack.c.0.s8 %v2456
    %v2458 = vperm.slane %v2452, %v2457
    %v2460 = vunpack.c.l.s4 1983009808
    %v2461 = vunpack.c.0.s8 %v2460
    %v2462 = vperm.slane %v2454, %v2461
    %v2463 = vrot.slane %v1744, 4
    %v2464 = vsel %vm1755, %v2463, %v1712
    %v2465 = vrot.slane %v1712, 4
    %v2466 = vsel %vm1755, %v1744, %v2465
    %v2468 = vunpack.c.l.s4 1983009808
    %v2469 = vunpack.c.0.s8 %v2468
    %v2470 = vperm.slane %v2464, %v2469
    %v2472 = vunpack.c.l.s4 1983009808
    %v2473 = vunpack.c.0.s8 %v2472
    %v2474 = vperm.slane %v2466, %v2473
    %v2475 = vrot.slane %v2446, 4
    %v2476 = vsel %vm1755, %v2475, %v2434
    %v2477 = vrot.slane %v2434, 4
    %v2478 = vsel %vm1755, %v2446, %v2477
    %v2480 = vunpack.c.l.s4 1934713408
    %v2481 = vunpack.c.0.s8 %v2480
    %v2482 = vperm.slane %v2476, %v2481
    %v2484 = vunpack.c.l.s4 1934713408
    %v2485 = vunpack.c.0.s8 %v2484
    %v2486 = vperm.slane %v2478, %v2485
    %v2487 = vrot.slane %v2450, 4
    %v2488 = vsel %vm1755, %v2487, %v2438
    %v2489 = vrot.slane %v2438, 4
    %v2490 = vsel %vm1755, %v2450, %v2489
    %v2492 = vunpack.c.l.s4 1934713408
    %v2493 = vunpack.c.0.s8 %v2492
    %v2494 = vperm.slane %v2488, %v2493
    %v2496 = vunpack.c.l.s4 1934713408
    %v2497 = vunpack.c.0.s8 %v2496
    %v2498 = vperm.slane %v2490, %v2497
    %v2499 = vrot.slane %v2470, 4
    %v2500 = vsel %vm1755, %v2499, %v2458
    %v2501 = vrot.slane %v2458, 4
    %v2502 = vsel %vm1755, %v2470, %v2501
    %v2504 = vunpack.c.l.s4 1934713408
    %v2505 = vunpack.c.0.s8 %v2504
    %v2506 = vperm.slane %v2500, %v2505
    %v2508 = vunpack.c.l.s4 1934713408
    %v2509 = vunpack.c.0.s8 %v2508
    %v2510 = vperm.slane %v2502, %v2509
    %v2511 = vrot.slane %v2474, 4
    %v2512 = vsel %vm1755, %v2511, %v2462
    %v2513 = vrot.slane %v2462, 4
    %v2514 = vsel %vm1755, %v2474, %v2513
    %v2516 = vunpack.c.l.s4 1934713408
    %v2517 = vunpack.c.0.s8 %v2516
    %v2518 = vperm.slane %v2512, %v2517
    %v2520 = vunpack.c.l.s4 1934713408
    %v2521 = vunpack.c.0.s8 %v2520
    %v2522 = vperm.slane %v2514, %v2521
    %v2523 = vrot.slane %v2506, 4
    %v2524 = vsel %vm1755, %v2523, %v2482
    %v2525 = vrot.slane %v2482, 4
    %v2526 = vsel %vm1755, %v2506, %v2525
    %v2527 = vrot.slane %v2510, 4
    %v2528 = vsel %vm1755, %v2527, %v2486
    %v2529 = vrot.slane %v2486, 4
    %v2530 = vsel %vm1755, %v2510, %v2529
    %v2531 = vrot.slane %v2518, 4
    %v2532 = vsel %vm1755, %v2531, %v2494
    %v2533 = vrot.slane %v2494, 4
    %v2534 = vsel %vm1755, %v2518, %v2533
    %v2535 = vrot.slane %v2522, 4
    %v2536 = vsel %vm1755, %v2535, %v2498
    %v2537 = vrot.slane %v2498, 4
    %v2538 = vsel %vm1755, %v2522, %v2537
    %v2539 = vrot.slane %v1665, 4
    %v2540 = vsel %vm1755, %v2539, %v1633
    %v2541 = vrot.slane %v1633, 4
    %v2542 = vsel %vm1755, %v1665, %v2541
    %v2544 = vunpack.c.l.s4 1983009808
    %v2545 = vunpack.c.0.s8 %v2544
    %v2546 = vperm.slane %v2540, %v2545
    %v2548 = vunpack.c.l.s4 1983009808
    %v2549 = vunpack.c.0.s8 %v2548
    %v2550 = vperm.slane %v2542, %v2549
    %v2551 = vrot.slane %v1681, 4
    %v2552 = vsel %vm1755, %v2551, %v1649
    %v2553 = vrot.slane %v1649, 4
    %v2554 = vsel %vm1755, %v1681, %v2553
    %v2556 = vunpack.c.l.s4 1983009808
    %v2557 = vunpack.c.0.s8 %v2556
    %v2558 = vperm.slane %v2552, %v2557
    %v2560 = vunpack.c.l.s4 1983009808
    %v2561 = vunpack.c.0.s8 %v2560
    %v2562 = vperm.slane %v2554, %v2561
    %v2563 = vrot.slane %v1729, 4
    %v2564 = vsel %vm1755, %v2563, %v1697
    %v2565 = vrot.slane %v1697, 4
    %v2566 = vsel %vm1755, %v1729, %v2565
    %v2568 = vunpack.c.l.s4 1983009808
    %v2569 = vunpack.c.0.s8 %v2568
    %v2570 = vperm.slane %v2564, %v2569
    %v2572 = vunpack.c.l.s4 1983009808
    %v2573 = vunpack.c.0.s8 %v2572
    %v2574 = vperm.slane %v2566, %v2573
    %v2575 = vrot.slane %v1745, 4
    %v2576 = vsel %vm1755, %v2575, %v1713
    %v2577 = vrot.slane %v1713, 4
    %v2578 = vsel %vm1755, %v1745, %v2577
    %v2580 = vunpack.c.l.s4 1983009808
    %v2581 = vunpack.c.0.s8 %v2580
    %v2582 = vperm.slane %v2576, %v2581
    %v2584 = vunpack.c.l.s4 1983009808
    %v2585 = vunpack.c.0.s8 %v2584
    %v2586 = vperm.slane %v2578, %v2585
    %v2587 = vrot.slane %v2558, 4
    %v2588 = vsel %vm1755, %v2587, %v2546
    %v2589 = vrot.slane %v2546, 4
    %v2590 = vsel %vm1755, %v2558, %v2589
    %v2592 = vunpack.c.l.s4 1934713408
    %v2593 = vunpack.c.0.s8 %v2592
    %v2594 = vperm.slane %v2588, %v2593
    %v2596 = vunpack.c.l.s4 1934713408
    %v2597 = vunpack.c.0.s8 %v2596
    %v2598 = vperm.slane %v2590, %v2597
    %v2599 = vrot.slane %v2562, 4
    %v2600 = vsel %vm1755, %v2599, %v2550
    %v2601 = vrot.slane %v2550, 4
    %v2602 = vsel %vm1755, %v2562, %v2601
    %v2604 = vunpack.c.l.s4 1934713408
    %v2605 = vunpack.c.0.s8 %v2604
    %v2606 = vperm.slane %v2600, %v2605
    %v2608 = vunpack.c.l.s4 1934713408
    %v2609 = vunpack.c.0.s8 %v2608
    %v2610 = vperm.slane %v2602, %v2609
    %v2611 = vrot.slane %v2582, 4
    %v2612 = vsel %vm1755, %v2611, %v2570
    %v2613 = vrot.slane %v2570, 4
    %v2614 = vsel %vm1755, %v2582, %v2613
    %v2616 = vunpack.c.l.s4 1934713408
    %v2617 = vunpack.c.0.s8 %v2616
    %v2618 = vperm.slane %v2612, %v2617
    %v2620 = vunpack.c.l.s4 1934713408
    %v2621 = vunpack.c.0.s8 %v2620
    %v2622 = vperm.slane %v2614, %v2621
    %v2623 = vrot.slane %v2586, 4
    %v2624 = vsel %vm1755, %v2623, %v2574
    %v2625 = vrot.slane %v2574, 4
    %v2626 = vsel %vm1755, %v2586, %v2625
    %v2628 = vunpack.c.l.s4 1934713408
    %v2629 = vunpack.c.0.s8 %v2628
    %v2630 = vperm.slane %v2624, %v2629
    %v2632 = vunpack.c.l.s4 1934713408
    %v2633 = vunpack.c.0.s8 %v2632
    %v2634 = vperm.slane %v2626, %v2633
    %v2635 = vrot.slane %v2618, 4
    %v2636 = vsel %vm1755, %v2635, %v2594
    %v2637 = vrot.slane %v2594, 4
    %v2638 = vsel %vm1755, %v2618, %v2637
    %v2639 = vrot.slane %v2622, 4
    %v2640 = vsel %vm1755, %v2639, %v2598
    %v2641 = vrot.slane %v2598, 4
    %v2642 = vsel %vm1755, %v2622, %v2641
    %v2643 = vrot.slane %v2630, 4
    %v2644 = vsel %vm1755, %v2643, %v2606
    %v2645 = vrot.slane %v2606, 4
    %v2646 = vsel %vm1755, %v2630, %v2645
    %v2647 = vrot.slane %v2634, 4
    %v2648 = vsel %vm1755, %v2647, %v2610
    %v2649 = vrot.slane %v2610, 4
    %v2650 = vsel %vm1755, %v2634, %v2649
    %v2651 = vrot.slane %v1666, 4
    %v2652 = vsel %vm1755, %v2651, %v1634
    %v2653 = vrot.slane %v1634, 4
    %v2654 = vsel %vm1755, %v1666, %v2653
    %v2656 = vunpack.c.l.s4 1983009808
    %v2657 = vunpack.c.0.s8 %v2656
    %v2658 = vperm.slane %v2652, %v2657
    %v2660 = vunpack.c.l.s4 1983009808
    %v2661 = vunpack.c.0.s8 %v2660
    %v2662 = vperm.slane %v2654, %v2661
    %v2663 = vrot.slane %v1682, 4
    %v2664 = vsel %vm1755, %v2663, %v1650
    %v2665 = vrot.slane %v1650, 4
    %v2666 = vsel %vm1755, %v1682, %v2665
    %v2668 = vunpack.c.l.s4 1983009808
    %v2669 = vunpack.c.0.s8 %v2668
    %v2670 = vperm.slane %v2664, %v2669
    %v2672 = vunpack.c.l.s4 1983009808
    %v2673 = vunpack.c.0.s8 %v2672
    %v2674 = vperm.slane %v2666, %v2673
    %v2675 = vrot.slane %v1730, 4
    %v2676 = vsel %vm1755, %v2675, %v1698
    %v2677 = vrot.slane %v1698, 4
    %v2678 = vsel %vm1755, %v1730, %v2677
    %v2680 = vunpack.c.l.s4 1983009808
    %v2681 = vunpack.c.0.s8 %v2680
    %v2682 = vperm.slane %v2676, %v2681
    %v2684 = vunpack.c.l.s4 1983009808
    %v2685 = vunpack.c.0.s8 %v2684
    %v2686 = vperm.slane %v2678, %v2685
    %v2687 = vrot.slane %v1746, 4
    %v2688 = vsel %vm1755, %v2687, %v1714
    %v2689 = vrot.slane %v1714, 4
    %v2690 = vsel %vm1755, %v1746, %v2689
    %v2692 = vunpack.c.l.s4 1983009808
    %v2693 = vunpack.c.0.s8 %v2692
    %v2694 = vperm.slane %v2688, %v2693
    %v2696 = vunpack.c.l.s4 1983009808
    %v2697 = vunpack.c.0.s8 %v2696
    %v2698 = vperm.slane %v2690, %v2697
    %v2699 = vrot.slane %v2670, 4
    %v2700 = vsel %vm1755, %v2699, %v2658
    %v2701 = vrot.slane %v2658, 4
    %v2702 = vsel %vm1755, %v2670, %v2701
    %v2704 = vunpack.c.l.s4 1934713408
    %v2705 = vunpack.c.0.s8 %v2704
    %v2706 = vperm.slane %v2700, %v2705
    %v2708 = vunpack.c.l.s4 1934713408
    %v2709 = vunpack.c.0.s8 %v2708
    %v2710 = vperm.slane %v2702, %v2709
    %v2711 = vrot.slane %v2674, 4
    %v2712 = vsel %vm1755, %v2711, %v2662
    %v2713 = vrot.slane %v2662, 4
    %v2714 = vsel %vm1755, %v2674, %v2713
    %v2716 = vunpack.c.l.s4 1934713408
    %v2717 = vunpack.c.0.s8 %v2716
    %v2718 = vperm.slane %v2712, %v2717
    %v2720 = vunpack.c.l.s4 1934713408
    %v2721 = vunpack.c.0.s8 %v2720
    %v2722 = vperm.slane %v2714, %v2721
    %v2723 = vrot.slane %v2694, 4
    %v2724 = vsel %vm1755, %v2723, %v2682
    %v2725 = vrot.slane %v2682, 4
    %v2726 = vsel %vm1755, %v2694, %v2725
    %v2728 = vunpack.c.l.s4 1934713408
    %v2729 = vunpack.c.0.s8 %v2728
    %v2730 = vperm.slane %v2724, %v2729
    %v2732 = vunpack.c.l.s4 1934713408
    %v2733 = vunpack.c.0.s8 %v2732
    %v2734 = vperm.slane %v2726, %v2733
    %v2735 = vrot.slane %v2698, 4
    %v2736 = vsel %vm1755, %v2735, %v2686
    %v2737 = vrot.slane %v2686, 4
    %v2738 = vsel %vm1755, %v2698, %v2737
    %v2740 = vunpack.c.l.s4 1934713408
    %v2741 = vunpack.c.0.s8 %v2740
    %v2742 = vperm.slane %v2736, %v2741
    %v2744 = vunpack.c.l.s4 1934713408
    %v2745 = vunpack.c.0.s8 %v2744
    %v2746 = vperm.slane %v2738, %v2745
    %v2747 = vrot.slane %v2730, 4
    %v2748 = vsel %vm1755, %v2747, %v2706
    %v2749 = vrot.slane %v2706, 4
    %v2750 = vsel %vm1755, %v2730, %v2749
    %v2751 = vrot.slane %v2734, 4
    %v2752 = vsel %vm1755, %v2751, %v2710
    %v2753 = vrot.slane %v2710, 4
    %v2754 = vsel %vm1755, %v2734, %v2753
    %v2755 = vrot.slane %v2742, 4
    %v2756 = vsel %vm1755, %v2755, %v2718
    %v2757 = vrot.slane %v2718, 4
    %v2758 = vsel %vm1755, %v2742, %v2757
    %v2759 = vrot.slane %v2746, 4
    %v2760 = vsel %vm1755, %v2759, %v2722
    %v2761 = vrot.slane %v2722, 4
    %v2762 = vsel %vm1755, %v2746, %v2761
    %v2763 = vrot.slane %v1667, 4
    %v2764 = vsel %vm1755, %v2763, %v1635
    %v2765 = vrot.slane %v1635, 4
    %v2766 = vsel %vm1755, %v1667, %v2765
    %v2768 = vunpack.c.l.s4 1983009808
    %v2769 = vunpack.c.0.s8 %v2768
    %v2770 = vperm.slane %v2764, %v2769
    %v2772 = vunpack.c.l.s4 1983009808
    %v2773 = vunpack.c.0.s8 %v2772
    %v2774 = vperm.slane %v2766, %v2773
    %v2775 = vrot.slane %v1683, 4
    %v2776 = vsel %vm1755, %v2775, %v1651
    %v2777 = vrot.slane %v1651, 4
    %v2778 = vsel %vm1755, %v1683, %v2777
    %v2780 = vunpack.c.l.s4 1983009808
    %v2781 = vunpack.c.0.s8 %v2780
    %v2782 = vperm.slane %v2776, %v2781
    %v2784 = vunpack.c.l.s4 1983009808
    %v2785 = vunpack.c.0.s8 %v2784
    %v2786 = vperm.slane %v2778, %v2785
    %v2787 = vrot.slane %v1731, 4
    %v2788 = vsel %vm1755, %v2787, %v1699
    %v2789 = vrot.slane %v1699, 4
    %v2790 = vsel %vm1755, %v1731, %v2789
    %v2792 = vunpack.c.l.s4 1983009808
    %v2793 = vunpack.c.0.s8 %v2792
    %v2794 = vperm.slane %v2788, %v2793
    %v2796 = vunpack.c.l.s4 1983009808
    %v2797 = vunpack.c.0.s8 %v2796
    %v2798 = vperm.slane %v2790, %v2797
    %v2799 = vrot.slane %v1747, 4
    %v2800 = vsel %vm1755, %v2799, %v1715
    %v2801 = vrot.slane %v1715, 4
    %v2802 = vsel %vm1755, %v1747, %v2801
    %v2804 = vunpack.c.l.s4 1983009808
    %v2805 = vunpack.c.0.s8 %v2804
    %v2806 = vperm.slane %v2800, %v2805
    %v2808 = vunpack.c.l.s4 1983009808
    %v2809 = vunpack.c.0.s8 %v2808
    %v2810 = vperm.slane %v2802, %v2809
    %v2811 = vrot.slane %v2782, 4
    %v2812 = vsel %vm1755, %v2811, %v2770
    %v2813 = vrot.slane %v2770, 4
    %v2814 = vsel %vm1755, %v2782, %v2813
    %v2816 = vunpack.c.l.s4 1934713408
    %v2817 = vunpack.c.0.s8 %v2816
    %v2818 = vperm.slane %v2812, %v2817
    %v2820 = vunpack.c.l.s4 1934713408
    %v2821 = vunpack.c.0.s8 %v2820
    %v2822 = vperm.slane %v2814, %v2821
    %v2823 = vrot.slane %v2786, 4
    %v2824 = vsel %vm1755, %v2823, %v2774
    %v2825 = vrot.slane %v2774, 4
    %v2826 = vsel %vm1755, %v2786, %v2825
    %v2828 = vunpack.c.l.s4 1934713408
    %v2829 = vunpack.c.0.s8 %v2828
    %v2830 = vperm.slane %v2824, %v2829
    %v2832 = vunpack.c.l.s4 1934713408
    %v2833 = vunpack.c.0.s8 %v2832
    %v2834 = vperm.slane %v2826, %v2833
    %v2835 = vrot.slane %v2806, 4
    %v2836 = vsel %vm1755, %v2835, %v2794
    %v2837 = vrot.slane %v2794, 4
    %v2838 = vsel %vm1755, %v2806, %v2837
    %v2840 = vunpack.c.l.s4 1934713408
    %v2841 = vunpack.c.0.s8 %v2840
    %v2842 = vperm.slane %v2836, %v2841
    %v2844 = vunpack.c.l.s4 1934713408
    %v2845 = vunpack.c.0.s8 %v2844
    %v2846 = vperm.slane %v2838, %v2845
    %v2847 = vrot.slane %v2810, 4
    %v2848 = vsel %vm1755, %v2847, %v2798
    %v2849 = vrot.slane %v2798, 4
    %v2850 = vsel %vm1755, %v2810, %v2849
    %v2852 = vunpack.c.l.s4 1934713408
    %v2853 = vunpack.c.0.s8 %v2852
    %v2854 = vperm.slane %v2848, %v2853
    %v2856 = vunpack.c.l.s4 1934713408
    %v2857 = vunpack.c.0.s8 %v2856
    %v2858 = vperm.slane %v2850, %v2857
    %v2859 = vrot.slane %v2842, 4
    %v2860 = vsel %vm1755, %v2859, %v2818
    %v2861 = vrot.slane %v2818, 4
    %v2862 = vsel %vm1755, %v2842, %v2861
    %v2863 = vrot.slane %v2846, 4
    %v2864 = vsel %vm1755, %v2863, %v2822
    %v2865 = vrot.slane %v2822, 4
    %v2866 = vsel %vm1755, %v2846, %v2865
    %v2867 = vrot.slane %v2854, 4
    %v2868 = vsel %vm1755, %v2867, %v2830
    %v2869 = vrot.slane %v2830, 4
    %v2870 = vsel %vm1755, %v2854, %v2869
    %v2871 = vrot.slane %v2858, 4
    %v2872 = vsel %vm1755, %v2871, %v2834
    %v2873 = vrot.slane %v2834, 4
    %v2874 = vsel %vm1755, %v2858, %v2873
    %v2875 = vrot.slane %v1668, 4
    %v2876 = vsel %vm1755, %v2875, %v1636
    %v2877 = vrot.slane %v1636, 4
    %v2878 = vsel %vm1755, %v1668, %v2877
    %v2880 = vunpack.c.l.s4 1983009808
    %v2881 = vunpack.c.0.s8 %v2880
    %v2882 = vperm.slane %v2876, %v2881
    %v2884 = vunpack.c.l.s4 1983009808
    %v2885 = vunpack.c.0.s8 %v2884
    %v2886 = vperm.slane %v2878, %v2885
    %v2887 = vrot.slane %v1684, 4
    %v2888 = vsel %vm1755, %v2887, %v1652
    %v2889 = vrot.slane %v1652, 4
    %v2890 = vsel %vm1755, %v1684, %v2889
    %v2892 = vunpack.c.l.s4 1983009808
    %v2893 = vunpack.c.0.s8 %v2892
    %v2894 = vperm.slane %v2888, %v2893
    %v2896 = vunpack.c.l.s4 1983009808
    %v2897 = vunpack.c.0.s8 %v2896
    %v2898 = vperm.slane %v2890, %v2897
    %v2899 = vrot.slane %v1732, 4
    %v2900 = vsel %vm1755, %v2899, %v1700
    %v2901 = vrot.slane %v1700, 4
    %v2902 = vsel %vm1755, %v1732, %v2901
    %v2904 = vunpack.c.l.s4 1983009808
    %v2905 = vunpack.c.0.s8 %v2904
    %v2906 = vperm.slane %v2900, %v2905
    %v2908 = vunpack.c.l.s4 1983009808
    %v2909 = vunpack.c.0.s8 %v2908
    %v2910 = vperm.slane %v2902, %v2909
    %v2911 = vrot.slane %v1748, 4
    %v2912 = vsel %vm1755, %v2911, %v1716
    %v2913 = vrot.slane %v1716, 4
    %v2914 = vsel %vm1755, %v1748, %v2913
    %v2916 = vunpack.c.l.s4 1983009808
    %v2917 = vunpack.c.0.s8 %v2916
    %v2918 = vperm.slane %v2912, %v2917
    %v2920 = vunpack.c.l.s4 1983009808
    %v2921 = vunpack.c.0.s8 %v2920
    %v2922 = vperm.slane %v2914, %v2921
    %v2923 = vrot.slane %v2894, 4
    %v2924 = vsel %vm1755, %v2923, %v2882
    %v2925 = vrot.slane %v2882, 4
    %v2926 = vsel %vm1755, %v2894, %v2925
    %v2928 = vunpack.c.l.s4 1934713408
    %v2929 = vunpack.c.0.s8 %v2928
    %v2930 = vperm.slane %v2924, %v2929
    %v2932 = vunpack.c.l.s4 1934713408
    %v2933 = vunpack.c.0.s8 %v2932
    %v2934 = vperm.slane %v2926, %v2933
    %v2935 = vrot.slane %v2898, 4
    %v2936 = vsel %vm1755, %v2935, %v2886
    %v2937 = vrot.slane %v2886, 4
    %v2938 = vsel %vm1755, %v2898, %v2937
    %v2940 = vunpack.c.l.s4 1934713408
    %v2941 = vunpack.c.0.s8 %v2940
    %v2942 = vperm.slane %v2936, %v2941
    %v2944 = vunpack.c.l.s4 1934713408
    %v2945 = vunpack.c.0.s8 %v2944
    %v2946 = vperm.slane %v2938, %v2945
    %v2947 = vrot.slane %v2918, 4
    %v2948 = vsel %vm1755, %v2947, %v2906
    %v2949 = vrot.slane %v2906, 4
    %v2950 = vsel %vm1755, %v2918, %v2949
    %v2952 = vunpack.c.l.s4 1934713408
    %v2953 = vunpack.c.0.s8 %v2952
    %v2954 = vperm.slane %v2948, %v2953
    %v2956 = vunpack.c.l.s4 1934713408
    %v2957 = vunpack.c.0.s8 %v2956
    %v2958 = vperm.slane %v2950, %v2957
    %v2959 = vrot.slane %v2922, 4
    %v2960 = vsel %vm1755, %v2959, %v2910
    %v2961 = vrot.slane %v2910, 4
    %v2962 = vsel %vm1755, %v2922, %v2961
    %v2964 = vunpack.c.l.s4 1934713408
    %v2965 = vunpack.c.0.s8 %v2964
    %v2966 = vperm.slane %v2960, %v2965
    %v2968 = vunpack.c.l.s4 1934713408
    %v2969 = vunpack.c.0.s8 %v2968
    %v2970 = vperm.slane %v2962, %v2969
    %v2971 = vrot.slane %v2954, 4
    %v2972 = vsel %vm1755, %v2971, %v2930
    %v2973 = vrot.slane %v2930, 4
    %v2974 = vsel %vm1755, %v2954, %v2973
    %v2975 = vrot.slane %v2958, 4
    %v2976 = vsel %vm1755, %v2975, %v2934
    %v2977 = vrot.slane %v2934, 4
    %v2978 = vsel %vm1755, %v2958, %v2977
    %v2979 = vrot.slane %v2966, 4
    %v2980 = vsel %vm1755, %v2979, %v2942
    %v2981 = vrot.slane %v2942, 4
    %v2982 = vsel %vm1755, %v2966, %v2981
    %v2983 = vrot.slane %v2970, 4
    %v2984 = vsel %vm1755, %v2983, %v2946
    %v2985 = vrot.slane %v2946, 4
    %v2986 = vsel %vm1755, %v2970, %v2985
    %v2987 = vrot.slane %v1669, 4
    %v2988 = vsel %vm1755, %v2987, %v1637
    %v2989 = vrot.slane %v1637, 4
    %v2990 = vsel %vm1755, %v1669, %v2989
    %v2992 = vunpack.c.l.s4 1983009808
    %v2993 = vunpack.c.0.s8 %v2992
    %v2994 = vperm.slane %v2988, %v2993
    %v2996 = vunpack.c.l.s4 1983009808
    %v2997 = vunpack.c.0.s8 %v2996
    %v2998 = vperm.slane %v2990, %v2997
    %v2999 = vrot.slane %v1685, 4
    %v3000 = vsel %vm1755, %v2999, %v1653
    %v3001 = vrot.slane %v1653, 4
    %v3002 = vsel %vm1755, %v1685, %v3001
    %v3004 = vunpack.c.l.s4 1983009808
    %v3005 = vunpack.c.0.s8 %v3004
    %v3006 = vperm.slane %v3000, %v3005
    %v3008 = vunpack.c.l.s4 1983009808
    %v3009 = vunpack.c.0.s8 %v3008
    %v3010 = vperm.slane %v3002, %v3009
    %v3011 = vrot.slane %v1733, 4
    %v3012 = vsel %vm1755, %v3011, %v1701
    %v3013 = vrot.slane %v1701, 4
    %v3014 = vsel %vm1755, %v1733, %v3013
    %v3016 = vunpack.c.l.s4 1983009808
    %v3017 = vunpack.c.0.s8 %v3016
    %v3018 = vperm.slane %v3012, %v3017
    %v3020 = vunpack.c.l.s4 1983009808
    %v3021 = vunpack.c.0.s8 %v3020
    %v3022 = vperm.slane %v3014, %v3021
    %v3023 = vrot.slane %v1749, 4
    %v3024 = vsel %vm1755, %v3023, %v1717
    %v3025 = vrot.slane %v1717, 4
    %v3026 = vsel %vm1755, %v1749, %v3025
    %v3028 = vunpack.c.l.s4 1983009808
    %v3029 = vunpack.c.0.s8 %v3028
    %v3030 = vperm.slane %v3024, %v3029
    %v3032 = vunpack.c.l.s4 1983009808
    %v3033 = vunpack.c.0.s8 %v3032
    %v3034 = vperm.slane %v3026, %v3033
    %v3035 = vrot.slane %v3006, 4
    %v3036 = vsel %vm1755, %v3035, %v2994
    %v3037 = vrot.slane %v2994, 4
    %v3038 = vsel %vm1755, %v3006, %v3037
    %v3040 = vunpack.c.l.s4 1934713408
    %v3041 = vunpack.c.0.s8 %v3040
    %v3042 = vperm.slane %v3036, %v3041
    %v3044 = vunpack.c.l.s4 1934713408
    %v3045 = vunpack.c.0.s8 %v3044
    %v3046 = vperm.slane %v3038, %v3045
    %v3047 = vrot.slane %v3010, 4
    %v3048 = vsel %vm1755, %v3047, %v2998
    %v3049 = vrot.slane %v2998, 4
    %v3050 = vsel %vm1755, %v3010, %v3049
    %v3052 = vunpack.c.l.s4 1934713408
    %v3053 = vunpack.c.0.s8 %v3052
    %v3054 = vperm.slane %v3048, %v3053
    %v3056 = vunpack.c.l.s4 1934713408
    %v3057 = vunpack.c.0.s8 %v3056
    %v3058 = vperm.slane %v3050, %v3057
    %v3059 = vrot.slane %v3030, 4
    %v3060 = vsel %vm1755, %v3059, %v3018
    %v3061 = vrot.slane %v3018, 4
    %v3062 = vsel %vm1755, %v3030, %v3061
    %v3064 = vunpack.c.l.s4 1934713408
    %v3065 = vunpack.c.0.s8 %v3064
    %v3066 = vperm.slane %v3060, %v3065
    %v3068 = vunpack.c.l.s4 1934713408
    %v3069 = vunpack.c.0.s8 %v3068
    %v3070 = vperm.slane %v3062, %v3069
    %v3071 = vrot.slane %v3034, 4
    %v3072 = vsel %vm1755, %v3071, %v3022
    %v3073 = vrot.slane %v3022, 4
    %v3074 = vsel %vm1755, %v3034, %v3073
    %v3076 = vunpack.c.l.s4 1934713408
    %v3077 = vunpack.c.0.s8 %v3076
    %v3078 = vperm.slane %v3072, %v3077
    %v3080 = vunpack.c.l.s4 1934713408
    %v3081 = vunpack.c.0.s8 %v3080
    %v3082 = vperm.slane %v3074, %v3081
    %v3083 = vrot.slane %v3066, 4
    %v3084 = vsel %vm1755, %v3083, %v3042
    %v3085 = vrot.slane %v3042, 4
    %v3086 = vsel %vm1755, %v3066, %v3085
    %v3087 = vrot.slane %v3070, 4
    %v3088 = vsel %vm1755, %v3087, %v3046
    %v3089 = vrot.slane %v3046, 4
    %v3090 = vsel %vm1755, %v3070, %v3089
    %v3091 = vrot.slane %v3078, 4
    %v3092 = vsel %vm1755, %v3091, %v3054
    %v3093 = vrot.slane %v3054, 4
    %v3094 = vsel %vm1755, %v3078, %v3093
    %v3095 = vrot.slane %v3082, 4
    %v3096 = vsel %vm1755, %v3095, %v3058
    %v3097 = vrot.slane %v3058, 4
    %v3098 = vsel %vm1755, %v3082, %v3097
    %v3099 = vrot.slane %v1670, 4
    %v3100 = vsel %vm1755, %v3099, %v1638
    %v3101 = vrot.slane %v1638, 4
    %v3102 = vsel %vm1755, %v1670, %v3101
    %v3104 = vunpack.c.l.s4 1983009808
    %v3105 = vunpack.c.0.s8 %v3104
    %v3106 = vperm.slane %v3100, %v3105
    %v3108 = vunpack.c.l.s4 1983009808
    %v3109 = vunpack.c.0.s8 %v3108
    %v3110 = vperm.slane %v3102, %v3109
    %v3111 = vrot.slane %v1686, 4
    %v3112 = vsel %vm1755, %v3111, %v1654
    %v3113 = vrot.slane %v1654, 4
    %v3114 = vsel %vm1755, %v1686, %v3113
    %v3116 = vunpack.c.l.s4 1983009808
    %v3117 = vunpack.c.0.s8 %v3116
    %v3118 = vperm.slane %v3112, %v3117
    %v3120 = vunpack.c.l.s4 1983009808
    %v3121 = vunpack.c.0.s8 %v3120
    %v3122 = vperm.slane %v3114, %v3121
    %v3123 = vrot.slane %v1734, 4
    %v3124 = vsel %vm1755, %v3123, %v1702
    %v3125 = vrot.slane %v1702, 4
    %v3126 = vsel %vm1755, %v1734, %v3125
    %v3128 = vunpack.c.l.s4 1983009808
    %v3129 = vunpack.c.0.s8 %v3128
    %v3130 = vperm.slane %v3124, %v3129
    %v3132 = vunpack.c.l.s4 1983009808
    %v3133 = vunpack.c.0.s8 %v3132
    %v3134 = vperm.slane %v3126, %v3133
    %v3135 = vrot.slane %v1750, 4
    %v3136 = vsel %vm1755, %v3135, %v1718
    %v3137 = vrot.slane %v1718, 4
    %v3138 = vsel %vm1755, %v1750, %v3137
    %v3140 = vunpack.c.l.s4 1983009808
    %v3141 = vunpack.c.0.s8 %v3140
    %v3142 = vperm.slane %v3136, %v3141
    %v3144 = vunpack.c.l.s4 1983009808
    %v3145 = vunpack.c.0.s8 %v3144
    %v3146 = vperm.slane %v3138, %v3145
    %v3147 = vrot.slane %v3118, 4
    %v3148 = vsel %vm1755, %v3147, %v3106
    %v3149 = vrot.slane %v3106, 4
    %v3150 = vsel %vm1755, %v3118, %v3149
    %v3152 = vunpack.c.l.s4 1934713408
    %v3153 = vunpack.c.0.s8 %v3152
    %v3154 = vperm.slane %v3148, %v3153
    %v3156 = vunpack.c.l.s4 1934713408
    %v3157 = vunpack.c.0.s8 %v3156
    %v3158 = vperm.slane %v3150, %v3157
    %v3159 = vrot.slane %v3122, 4
    %v3160 = vsel %vm1755, %v3159, %v3110
    %v3161 = vrot.slane %v3110, 4
    %v3162 = vsel %vm1755, %v3122, %v3161
    %v3164 = vunpack.c.l.s4 1934713408
    %v3165 = vunpack.c.0.s8 %v3164
    %v3166 = vperm.slane %v3160, %v3165
    %v3168 = vunpack.c.l.s4 1934713408
    %v3169 = vunpack.c.0.s8 %v3168
    %v3170 = vperm.slane %v3162, %v3169
    %v3171 = vrot.slane %v3142, 4
    %v3172 = vsel %vm1755, %v3171, %v3130
    %v3173 = vrot.slane %v3130, 4
    %v3174 = vsel %vm1755, %v3142, %v3173
    %v3176 = vunpack.c.l.s4 1934713408
    %v3177 = vunpack.c.0.s8 %v3176
    %v3178 = vperm.slane %v3172, %v3177
    %v3180 = vunpack.c.l.s4 1934713408
    %v3181 = vunpack.c.0.s8 %v3180
    %v3182 = vperm.slane %v3174, %v3181
    %v3183 = vrot.slane %v3146, 4
    %v3184 = vsel %vm1755, %v3183, %v3134
    %v3185 = vrot.slane %v3134, 4
    %v3186 = vsel %vm1755, %v3146, %v3185
    %v3188 = vunpack.c.l.s4 1934713408
    %v3189 = vunpack.c.0.s8 %v3188
    %v3190 = vperm.slane %v3184, %v3189
    %v3192 = vunpack.c.l.s4 1934713408
    %v3193 = vunpack.c.0.s8 %v3192
    %v3194 = vperm.slane %v3186, %v3193
    %v3195 = vrot.slane %v3178, 4
    %v3196 = vsel %vm1755, %v3195, %v3154
    %v3197 = vrot.slane %v3154, 4
    %v3198 = vsel %vm1755, %v3178, %v3197
    %v3199 = vrot.slane %v3182, 4
    %v3200 = vsel %vm1755, %v3199, %v3158
    %v3201 = vrot.slane %v3158, 4
    %v3202 = vsel %vm1755, %v3182, %v3201
    %v3203 = vrot.slane %v3190, 4
    %v3204 = vsel %vm1755, %v3203, %v3166
    %v3205 = vrot.slane %v3166, 4
    %v3206 = vsel %vm1755, %v3190, %v3205
    %v3207 = vrot.slane %v3194, 4
    %v3208 = vsel %vm1755, %v3207, %v3170
    %v3209 = vrot.slane %v3170, 4
    %v3210 = vsel %vm1755, %v3194, %v3209
    %v3211 = vrot.slane %v1671, 4
    %v3212 = vsel %vm1755, %v3211, %v1639
    %v3213 = vrot.slane %v1639, 4
    %v3214 = vsel %vm1755, %v1671, %v3213
    %v3216 = vunpack.c.l.s4 1983009808
    %v3217 = vunpack.c.0.s8 %v3216
    %v3218 = vperm.slane %v3212, %v3217
    %v3220 = vunpack.c.l.s4 1983009808
    %v3221 = vunpack.c.0.s8 %v3220
    %v3222 = vperm.slane %v3214, %v3221
    %v3223 = vrot.slane %v1687, 4
    %v3224 = vsel %vm1755, %v3223, %v1655
    %v3225 = vrot.slane %v1655, 4
    %v3226 = vsel %vm1755, %v1687, %v3225
    %v3228 = vunpack.c.l.s4 1983009808
    %v3229 = vunpack.c.0.s8 %v3228
    %v3230 = vperm.slane %v3224, %v3229
    %v3232 = vunpack.c.l.s4 1983009808
    %v3233 = vunpack.c.0.s8 %v3232
    %v3234 = vperm.slane %v3226, %v3233
    %v3235 = vrot.slane %v1735, 4
    %v3236 = vsel %vm1755, %v3235, %v1703
    %v3237 = vrot.slane %v1703, 4
    %v3238 = vsel %vm1755, %v1735, %v3237
    %v3240 = vunpack.c.l.s4 1983009808
    %v3241 = vunpack.c.0.s8 %v3240
    %v3242 = vperm.slane %v3236, %v3241
    %v3244 = vunpack.c.l.s4 1983009808
    %v3245 = vunpack.c.0.s8 %v3244
    %v3246 = vperm.slane %v3238, %v3245
    %v3247 = vrot.slane %v1751, 4
    %v3248 = vsel %vm1755, %v3247, %v1719
    %v3249 = vrot.slane %v1719, 4
    %v3250 = vsel %vm1755, %v1751, %v3249
    %v3252 = vunpack.c.l.s4 1983009808
    %v3253 = vunpack.c.0.s8 %v3252
    %v3254 = vperm.slane %v3248, %v3253
    %v3256 = vunpack.c.l.s4 1983009808
    %v3257 = vunpack.c.0.s8 %v3256
    %v3258 = vperm.slane %v3250, %v3257
    %v3259 = vrot.slane %v3230, 4
    %v3260 = vsel %vm1755, %v3259, %v3218
    %v3261 = vrot.slane %v3218, 4
    %v3262 = vsel %vm1755, %v3230, %v3261
    %v3264 = vunpack.c.l.s4 1934713408
    %v3265 = vunpack.c.0.s8 %v3264
    %v3266 = vperm.slane %v3260, %v3265
    %v3268 = vunpack.c.l.s4 1934713408
    %v3269 = vunpack.c.0.s8 %v3268
    %v3270 = vperm.slane %v3262, %v3269
    %v3271 = vrot.slane %v3234, 4
    %v3272 = vsel %vm1755, %v3271, %v3222
    %v3273 = vrot.slane %v3222, 4
    %v3274 = vsel %vm1755, %v3234, %v3273
    %v3276 = vunpack.c.l.s4 1934713408
    %v3277 = vunpack.c.0.s8 %v3276
    %v3278 = vperm.slane %v3272, %v3277
    %v3280 = vunpack.c.l.s4 1934713408
    %v3281 = vunpack.c.0.s8 %v3280
    %v3282 = vperm.slane %v3274, %v3281
    %v3283 = vrot.slane %v3254, 4
    %v3284 = vsel %vm1755, %v3283, %v3242
    %v3285 = vrot.slane %v3242, 4
    %v3286 = vsel %vm1755, %v3254, %v3285
    %v3288 = vunpack.c.l.s4 1934713408
    %v3289 = vunpack.c.0.s8 %v3288
    %v3290 = vperm.slane %v3284, %v3289
    %v3292 = vunpack.c.l.s4 1934713408
    %v3293 = vunpack.c.0.s8 %v3292
    %v3294 = vperm.slane %v3286, %v3293
    %v3295 = vrot.slane %v3258, 4
    %v3296 = vsel %vm1755, %v3295, %v3246
    %v3297 = vrot.slane %v3246, 4
    %v3298 = vsel %vm1755, %v3258, %v3297
    %v3300 = vunpack.c.l.s4 1934713408
    %v3301 = vunpack.c.0.s8 %v3300
    %v3302 = vperm.slane %v3296, %v3301
    %v3304 = vunpack.c.l.s4 1934713408
    %v3305 = vunpack.c.0.s8 %v3304
    %v3306 = vperm.slane %v3298, %v3305
    %v3307 = vrot.slane %v3290, 4
    %v3308 = vsel %vm1755, %v3307, %v3266
    %v3309 = vrot.slane %v3266, 4
    %v3310 = vsel %vm1755, %v3290, %v3309
    %v3311 = vrot.slane %v3294, 4
    %v3312 = vsel %vm1755, %v3311, %v3270
    %v3313 = vrot.slane %v3270, 4
    %v3314 = vsel %vm1755, %v3294, %v3313
    %v3315 = vrot.slane %v3302, 4
    %v3316 = vsel %vm1755, %v3315, %v3278
    %v3317 = vrot.slane %v3278, 4
    %v3318 = vsel %vm1755, %v3302, %v3317
    %v3319 = vrot.slane %v3306, 4
    %v3320 = vsel %vm1755, %v3319, %v3282
    %v3321 = vrot.slane %v3282, 4
    %v3322 = vsel %vm1755, %v3306, %v3321
    %v3323 = vrot.slane %v1672, 4
    %v3324 = vsel %vm1755, %v3323, %v1640
    %v3325 = vrot.slane %v1640, 4
    %v3326 = vsel %vm1755, %v1672, %v3325
    %v3328 = vunpack.c.l.s4 1983009808
    %v3329 = vunpack.c.0.s8 %v3328
    %v3330 = vperm.slane %v3324, %v3329
    %v3332 = vunpack.c.l.s4 1983009808
    %v3333 = vunpack.c.0.s8 %v3332
    %v3334 = vperm.slane %v3326, %v3333
    %v3335 = vrot.slane %v1688, 4
    %v3336 = vsel %vm1755, %v3335, %v1656
    %v3337 = vrot.slane %v1656, 4
    %v3338 = vsel %vm1755, %v1688, %v3337
    %v3340 = vunpack.c.l.s4 1983009808
    %v3341 = vunpack.c.0.s8 %v3340
    %v3342 = vperm.slane %v3336, %v3341
    %v3344 = vunpack.c.l.s4 1983009808
    %v3345 = vunpack.c.0.s8 %v3344
    %v3346 = vperm.slane %v3338, %v3345
    %v3347 = vrot.slane %v1736, 4
    %v3348 = vsel %vm1755, %v3347, %v1704
    %v3349 = vrot.slane %v1704, 4
    %v3350 = vsel %vm1755, %v1736, %v3349
    %v3352 = vunpack.c.l.s4 1983009808
    %v3353 = vunpack.c.0.s8 %v3352
    %v3354 = vperm.slane %v3348, %v3353
    %v3356 = vunpack.c.l.s4 1983009808
    %v3357 = vunpack.c.0.s8 %v3356
    %v3358 = vperm.slane %v3350, %v3357
    %v3359 = vrot.slane %v1752, 4
    %v3360 = vsel %vm1755, %v3359, %v1720
    %v3361 = vrot.slane %v1720, 4
    %v3362 = vsel %vm1755, %v1752, %v3361
    %v3364 = vunpack.c.l.s4 1983009808
    %v3365 = vunpack.c.0.s8 %v3364
    %v3366 = vperm.slane %v3360, %v3365
    %v3368 = vunpack.c.l.s4 1983009808
    %v3369 = vunpack.c.0.s8 %v3368
    %v3370 = vperm.slane %v3362, %v3369
    %v3371 = vrot.slane %v3342, 4
    %v3372 = vsel %vm1755, %v3371, %v3330
    %v3373 = vrot.slane %v3330, 4
    %v3374 = vsel %vm1755, %v3342, %v3373
    %v3376 = vunpack.c.l.s4 1934713408
    %v3377 = vunpack.c.0.s8 %v3376
    %v3378 = vperm.slane %v3372, %v3377
    %v3380 = vunpack.c.l.s4 1934713408
    %v3381 = vunpack.c.0.s8 %v3380
    %v3382 = vperm.slane %v3374, %v3381
    %v3383 = vrot.slane %v3346, 4
    %v3384 = vsel %vm1755, %v3383, %v3334
    %v3385 = vrot.slane %v3334, 4
    %v3386 = vsel %vm1755, %v3346, %v3385
    %v3388 = vunpack.c.l.s4 1934713408
    %v3389 = vunpack.c.0.s8 %v3388
    %v3390 = vperm.slane %v3384, %v3389
    %v3392 = vunpack.c.l.s4 1934713408
    %v3393 = vunpack.c.0.s8 %v3392
    %v3394 = vperm.slane %v3386, %v3393
    %v3395 = vrot.slane %v3366, 4
    %v3396 = vsel %vm1755, %v3395, %v3354
    %v3397 = vrot.slane %v3354, 4
    %v3398 = vsel %vm1755, %v3366, %v3397
    %v3400 = vunpack.c.l.s4 1934713408
    %v3401 = vunpack.c.0.s8 %v3400
    %v3402 = vperm.slane %v3396, %v3401
    %v3404 = vunpack.c.l.s4 1934713408
    %v3405 = vunpack.c.0.s8 %v3404
    %v3406 = vperm.slane %v3398, %v3405
    %v3407 = vrot.slane %v3370, 4
    %v3408 = vsel %vm1755, %v3407, %v3358
    %v3409 = vrot.slane %v3358, 4
    %v3410 = vsel %vm1755, %v3370, %v3409
    %v3412 = vunpack.c.l.s4 1934713408
    %v3413 = vunpack.c.0.s8 %v3412
    %v3414 = vperm.slane %v3408, %v3413
    %v3416 = vunpack.c.l.s4 1934713408
    %v3417 = vunpack.c.0.s8 %v3416
    %v3418 = vperm.slane %v3410, %v3417
    %v3419 = vrot.slane %v3402, 4
    %v3420 = vsel %vm1755, %v3419, %v3378
    %v3421 = vrot.slane %v3378, 4
    %v3422 = vsel %vm1755, %v3402, %v3421
    %v3423 = vrot.slane %v3406, 4
    %v3424 = vsel %vm1755, %v3423, %v3382
    %v3425 = vrot.slane %v3382, 4
    %v3426 = vsel %vm1755, %v3406, %v3425
    %v3427 = vrot.slane %v3414, 4
    %v3428 = vsel %vm1755, %v3427, %v3390
    %v3429 = vrot.slane %v3390, 4
    %v3430 = vsel %vm1755, %v3414, %v3429
    %v3431 = vrot.slane %v3418, 4
    %v3432 = vsel %vm1755, %v3431, %v3394
    %v3433 = vrot.slane %v3394, 4
    %v3434 = vsel %vm1755, %v3418, %v3433
    %v3435 = vrot.slane %v1673, 4
    %v3436 = vsel %vm1755, %v3435, %v1641
    %v3437 = vrot.slane %v1641, 4
    %v3438 = vsel %vm1755, %v1673, %v3437
    %v3440 = vunpack.c.l.s4 1983009808
    %v3441 = vunpack.c.0.s8 %v3440
    %v3442 = vperm.slane %v3436, %v3441
    %v3444 = vunpack.c.l.s4 1983009808
    %v3445 = vunpack.c.0.s8 %v3444
    %v3446 = vperm.slane %v3438, %v3445
    %v3447 = vrot.slane %v1689, 4
    %v3448 = vsel %vm1755, %v3447, %v1657
    %v3449 = vrot.slane %v1657, 4
    %v3450 = vsel %vm1755, %v1689, %v3449
    %v3452 = vunpack.c.l.s4 1983009808
    %v3453 = vunpack.c.0.s8 %v3452
    %v3454 = vperm.slane %v3448, %v3453
    %v3456 = vunpack.c.l.s4 1983009808
    %v3457 = vunpack.c.0.s8 %v3456
    %v3458 = vperm.slane %v3450, %v3457
    %v3459 = vrot.slane %v1737, 4
    %v3460 = vsel %vm1755, %v3459, %v1705
    %v3461 = vrot.slane %v1705, 4
    %v3462 = vsel %vm1755, %v1737, %v3461
    %v3464 = vunpack.c.l.s4 1983009808
    %v3465 = vunpack.c.0.s8 %v3464
    %v3466 = vperm.slane %v3460, %v3465
    %v3468 = vunpack.c.l.s4 1983009808
    %v3469 = vunpack.c.0.s8 %v3468
    %v3470 = vperm.slane %v3462, %v3469
    %v3471 = vrot.slane %v1753, 4
    %v3472 = vsel %vm1755, %v3471, %v1721
    %v3473 = vrot.slane %v1721, 4
    %v3474 = vsel %vm1755, %v1753, %v3473
    %v3476 = vunpack.c.l.s4 1983009808
    %v3477 = vunpack.c.0.s8 %v3476
    %v3478 = vperm.slane %v3472, %v3477
    %v3480 = vunpack.c.l.s4 1983009808
    %v3481 = vunpack.c.0.s8 %v3480
    %v3482 = vperm.slane %v3474, %v3481
    %v3483 = vrot.slane %v3454, 4
    %v3484 = vsel %vm1755, %v3483, %v3442
    %v3485 = vrot.slane %v3442, 4
    %v3486 = vsel %vm1755, %v3454, %v3485
    %v3488 = vunpack.c.l.s4 1934713408
    %v3489 = vunpack.c.0.s8 %v3488
    %v3490 = vperm.slane %v3484, %v3489
    %v3492 = vunpack.c.l.s4 1934713408
    %v3493 = vunpack.c.0.s8 %v3492
    %v3494 = vperm.slane %v3486, %v3493
    %v3495 = vrot.slane %v3458, 4
    %v3496 = vsel %vm1755, %v3495, %v3446
    %v3497 = vrot.slane %v3446, 4
    %v3498 = vsel %vm1755, %v3458, %v3497
    %v3500 = vunpack.c.l.s4 1934713408
    %v3501 = vunpack.c.0.s8 %v3500
    %v3502 = vperm.slane %v3496, %v3501
    %v3504 = vunpack.c.l.s4 1934713408
    %v3505 = vunpack.c.0.s8 %v3504
    %v3506 = vperm.slane %v3498, %v3505
    %v3507 = vrot.slane %v3478, 4
    %v3508 = vsel %vm1755, %v3507, %v3466
    %v3509 = vrot.slane %v3466, 4
    %v3510 = vsel %vm1755, %v3478, %v3509
    %v3512 = vunpack.c.l.s4 1934713408
    %v3513 = vunpack.c.0.s8 %v3512
    %v3514 = vperm.slane %v3508, %v3513
    %v3516 = vunpack.c.l.s4 1934713408
    %v3517 = vunpack.c.0.s8 %v3516
    %v3518 = vperm.slane %v3510, %v3517
    %v3519 = vrot.slane %v3482, 4
    %v3520 = vsel %vm1755, %v3519, %v3470
    %v3521 = vrot.slane %v3470, 4
    %v3522 = vsel %vm1755, %v3482, %v3521
    %v3524 = vunpack.c.l.s4 1934713408
    %v3525 = vunpack.c.0.s8 %v3524
    %v3526 = vperm.slane %v3520, %v3525
    %v3528 = vunpack.c.l.s4 1934713408
    %v3529 = vunpack.c.0.s8 %v3528
    %v3530 = vperm.slane %v3522, %v3529
    %v3531 = vrot.slane %v3514, 4
    %v3532 = vsel %vm1755, %v3531, %v3490
    %v3533 = vrot.slane %v3490, 4
    %v3534 = vsel %vm1755, %v3514, %v3533
    %v3535 = vrot.slane %v3518, 4
    %v3536 = vsel %vm1755, %v3535, %v3494
    %v3537 = vrot.slane %v3494, 4
    %v3538 = vsel %vm1755, %v3518, %v3537
    %v3539 = vrot.slane %v3526, 4
    %v3540 = vsel %vm1755, %v3539, %v3502
    %v3541 = vrot.slane %v3502, 4
    %v3542 = vsel %vm1755, %v3526, %v3541
    %v3543 = vrot.slane %v3530, 4
    %v3544 = vsel %vm1755, %v3543, %v3506
    %v3545 = vrot.slane %v3506, 4
    %v3546 = vsel %vm1755, %v3530, %v3545
    %3548 = vrot.lane.b32.xlu0 %v1854, 2
    %v3549 = vpop.permute.xlu0 %3548
    %3552 = vrot.lane.b32.xlu0 %v1856, 4
    %v3553 = vpop.permute.xlu0 %3552
    %3556 = vrot.lane.b32.xlu0 %v1858, 6
    %v3557 = vpop.permute.xlu0 %3556
    %3560 = vrot.lane.b32.xlu0 %v1860, 8
    %v3561 = vpop.permute.xlu0 %3560
    %3564 = vrot.lane.b32.xlu0 %v1862, 10
    %v3565 = vpop.permute.xlu0 %3564
    %3568 = vrot.lane.b32.xlu0 %v1864, 12
    %v3569 = vpop.permute.xlu0 %3568
    %3572 = vrot.lane.b32.xlu0 %v1866, 14
    %v3573 = vpop.permute.xlu0 %3572
    %3576 = vrot.lane.b32.xlu0 %v1964, 16
    %v3577 = vpop.permute.xlu0 %3576
    %3580 = vrot.lane.b32.xlu0 %v1966, 18
    %v3581 = vpop.permute.xlu0 %3580
    %3584 = vrot.lane.b32.xlu0 %v1968, 20
    %v3585 = vpop.permute.xlu0 %3584
    %3588 = vrot.lane.b32.xlu0 %v1970, 22
    %v3589 = vpop.permute.xlu0 %3588
    %3592 = vrot.lane.b32.xlu0 %v1972, 24
    %v3593 = vpop.permute.xlu0 %3592
    %3596 = vrot.lane.b32.xlu0 %v1974, 26
    %v3597 = vpop.permute.xlu0 %3596
    %3600 = vrot.lane.b32.xlu0 %v1976, 28
    %v3601 = vpop.permute.xlu0 %3600
    %3604 = vrot.lane.b32.xlu0 %v1978, 30
    %v3605 = vpop.permute.xlu0 %3604
    %3608 = vrot.lane.b32.xlu0 %v2076, 32
    %v3609 = vpop.permute.xlu0 %3608
    %3612 = vrot.lane.b32.xlu0 %v2078, 34
    %v3613 = vpop.permute.xlu0 %3612
    %3616 = vrot.lane.b32.xlu0 %v2080, 36
    %v3617 = vpop.permute.xlu0 %3616
    %3620 = vrot.lane.b32.xlu0 %v2082, 38
    %v3621 = vpop.permute.xlu0 %3620
    %3624 = vrot.lane.b32.xlu0 %v2084, 40
    %v3625 = vpop.permute.xlu0 %3624
    %3628 = vrot.lane.b32.xlu0 %v2086, 42
    %v3629 = vpop.permute.xlu0 %3628
    %3632 = vrot.lane.b32.xlu0 %v2088, 44
    %v3633 = vpop.permute.xlu0 %3632
    %3636 = vrot.lane.b32.xlu0 %v2090, 46
    %v3637 = vpop.permute.xlu0 %3636
    %3640 = vrot.lane.b32.xlu0 %v2188, 48
    %v3641 = vpop.permute.xlu0 %3640
    %3644 = vrot.lane.b32.xlu0 %v2190, 50
    %v3645 = vpop.permute.xlu0 %3644
    %3648 = vrot.lane.b32.xlu0 %v2192, 52
    %v3649 = vpop.permute.xlu0 %3648
    %3652 = vrot.lane.b32.xlu0 %v2194, 54
    %v3653 = vpop.permute.xlu0 %3652
    %3656 = vrot.lane.b32.xlu0 %v2196, 56
    %v3657 = vpop.permute.xlu0 %3656
    %3660 = vrot.lane.b32.xlu0 %v2198, 58
    %v3661 = vpop.permute.xlu0 %3660
    %3664 = vrot.lane.b32.xlu0 %v2200, 60
    %v3665 = vpop.permute.xlu0 %3664
    %3668 = vrot.lane.b32.xlu0 %v2202, 62
    %v3669 = vpop.permute.xlu0 %3668
    %3672 = vrot.lane.b32.xlu0 %v2300, 64
    %v3673 = vpop.permute.xlu0 %3672
    %3676 = vrot.lane.b32.xlu0 %v2302, 66
    %v3677 = vpop.permute.xlu0 %3676
    %3680 = vrot.lane.b32.xlu0 %v2304, 68
    %v3681 = vpop.permute.xlu0 %3680
    %3684 = vrot.lane.b32.xlu0 %v2306, 70
    %v3685 = vpop.permute.xlu0 %3684
    %3688 = vrot.lane.b32.xlu0 %v2308, 72
    %v3689 = vpop.permute.xlu0 %3688
    %3692 = vrot.lane.b32.xlu0 %v2310, 74
    %v3693 = vpop.permute.xlu0 %3692
    %3696 = vrot.lane.b32.xlu0 %v2312, 76
    %v3697 = vpop.permute.xlu0 %3696
    %3700 = vrot.lane.b32.xlu0 %v2314, 78
    %v3701 = vpop.permute.xlu0 %3700
    %3704 = vrot.lane.b32.xlu0 %v2412, 80
    %v3705 = vpop.permute.xlu0 %3704
    %3708 = vrot.lane.b32.xlu0 %v2414, 82
    %v3709 = vpop.permute.xlu0 %3708
    %3712 = vrot.lane.b32.xlu0 %v2416, 84
    %v3713 = vpop.permute.xlu0 %3712
    %3716 = vrot.lane.b32.xlu0 %v2418, 86
    %v3717 = vpop.permute.xlu0 %3716
    %3720 = vrot.lane.b32.xlu0 %v2420, 88
    %v3721 = vpop.permute.xlu0 %3720
    %3724 = vrot.lane.b32.xlu0 %v2422, 90
    %v3725 = vpop.permute.xlu0 %3724
    %3728 = vrot.lane.b32.xlu0 %v2424, 92
    %v3729 = vpop.permute.xlu0 %3728
    %3732 = vrot.lane.b32.xlu0 %v2426, 94
    %v3733 = vpop.permute.xlu0 %3732
    %3736 = vrot.lane.b32.xlu0 %v2524, 96
    %v3737 = vpop.permute.xlu0 %3736
    %3740 = vrot.lane.b32.xlu0 %v2526, 98
    %v3741 = vpop.permute.xlu0 %3740
    %3744 = vrot.lane.b32.xlu0 %v2528, 100
    %v3745 = vpop.permute.xlu0 %3744
    %3748 = vrot.lane.b32.xlu0 %v2530, 102
    %v3749 = vpop.permute.xlu0 %3748
    %3752 = vrot.lane.b32.xlu0 %v2532, 104
    %v3753 = vpop.permute.xlu0 %3752
    %3756 = vrot.lane.b32.xlu0 %v2534, 106
    %v3757 = vpop.permute.xlu0 %3756
    %3760 = vrot.lane.b32.xlu0 %v2536, 108
    %v3761 = vpop.permute.xlu0 %3760
    %3764 = vrot.lane.b32.xlu0 %v2538, 110
    %v3765 = vpop.permute.xlu0 %3764
    %3768 = vrot.lane.b32.xlu0 %v2636, 112
    %v3769 = vpop.permute.xlu0 %3768
    %3772 = vrot.lane.b32.xlu0 %v2638, 114
    %v3773 = vpop.permute.xlu0 %3772
    %3776 = vrot.lane.b32.xlu0 %v2640, 116
    %v3777 = vpop.permute.xlu0 %3776
    %3780 = vrot.lane.b32.xlu0 %v2642, 118
    %v3781 = vpop.permute.xlu0 %3780
    %3784 = vrot.lane.b32.xlu0 %v2644, 120
    %v3785 = vpop.permute.xlu0 %3784
    %3788 = vrot.lane.b32.xlu0 %v2646, 122
    %v3789 = vpop.permute.xlu0 %3788
    %3792 = vrot.lane.b32.xlu0 %v2648, 124
    %v3793 = vpop.permute.xlu0 %3792
    %3796 = vrot.lane.b32.xlu0 %v2650, 126
    %v3797 = vpop.permute.xlu0 %3796
    %3800 = vrot.lane.b32.xlu0 %v2750, 2
    %v3801 = vpop.permute.xlu0 %3800
    %3804 = vrot.lane.b32.xlu0 %v2752, 4
    %v3805 = vpop.permute.xlu0 %3804
    %3808 = vrot.lane.b32.xlu0 %v2754, 6
    %v3809 = vpop.permute.xlu0 %3808
    %3812 = vrot.lane.b32.xlu0 %v2756, 8
    %v3813 = vpop.permute.xlu0 %3812
    %3816 = vrot.lane.b32.xlu0 %v2758, 10
    %v3817 = vpop.permute.xlu0 %3816
    %3820 = vrot.lane.b32.xlu0 %v2760, 12
    %v3821 = vpop.permute.xlu0 %3820
    %3824 = vrot.lane.b32.xlu0 %v2762, 14
    %v3825 = vpop.permute.xlu0 %3824
    %3828 = vrot.lane.b32.xlu0 %v2860, 16
    %v3829 = vpop.permute.xlu0 %3828
    %3832 = vrot.lane.b32.xlu0 %v2862, 18
    %v3833 = vpop.permute.xlu0 %3832
    %3836 = vrot.lane.b32.xlu0 %v2864, 20
    %v3837 = vpop.permute.xlu0 %3836
    %3840 = vrot.lane.b32.xlu0 %v2866, 22
    %v3841 = vpop.permute.xlu0 %3840
    %3844 = vrot.lane.b32.xlu0 %v2868, 24
    %v3845 = vpop.permute.xlu0 %3844
    %3848 = vrot.lane.b32.xlu0 %v2870, 26
    %v3849 = vpop.permute.xlu0 %3848
    %3852 = vrot.lane.b32.xlu0 %v2872, 28
    %v3853 = vpop.permute.xlu0 %3852
    %3856 = vrot.lane.b32.xlu0 %v2874, 30
    %v3857 = vpop.permute.xlu0 %3856
    %3860 = vrot.lane.b32.xlu0 %v2972, 32
    %v3861 = vpop.permute.xlu0 %3860
    %3864 = vrot.lane.b32.xlu0 %v2974, 34
    %v3865 = vpop.permute.xlu0 %3864
    %3868 = vrot.lane.b32.xlu0 %v2976, 36
    %v3869 = vpop.permute.xlu0 %3868
    %3872 = vrot.lane.b32.xlu0 %v2978, 38
    %v3873 = vpop.permute.xlu0 %3872
    %3876 = vrot.lane.b32.xlu0 %v2980, 40
    %v3877 = vpop.permute.xlu0 %3876
    %3880 = vrot.lane.b32.xlu0 %v2982, 42
    %v3881 = vpop.permute.xlu0 %3880
    %3884 = vrot.lane.b32.xlu0 %v2984, 44
    %v3885 = vpop.permute.xlu0 %3884
    %3888 = vrot.lane.b32.xlu0 %v2986, 46
    %v3889 = vpop.permute.xlu0 %3888
    %3892 = vrot.lane.b32.xlu0 %v3084, 48
    %v3893 = vpop.permute.xlu0 %3892
    %3896 = vrot.lane.b32.xlu0 %v3086, 50
    %v3897 = vpop.permute.xlu0 %3896
    %3900 = vrot.lane.b32.xlu0 %v3088, 52
    %v3901 = vpop.permute.xlu0 %3900
    %3904 = vrot.lane.b32.xlu0 %v3090, 54
    %v3905 = vpop.permute.xlu0 %3904
    %3908 = vrot.lane.b32.xlu0 %v3092, 56
    %v3909 = vpop.permute.xlu0 %3908
    %3912 = vrot.lane.b32.xlu0 %v3094, 58
    %v3913 = vpop.permute.xlu0 %3912
    %3916 = vrot.lane.b32.xlu0 %v3096, 60
    %v3917 = vpop.permute.xlu0 %3916
    %3920 = vrot.lane.b32.xlu0 %v3098, 62
    %v3921 = vpop.permute.xlu0 %3920
    %3924 = vrot.lane.b32.xlu0 %v3196, 64
    %v3925 = vpop.permute.xlu0 %3924
    %3928 = vrot.lane.b32.xlu0 %v3198, 66
    %v3929 = vpop.permute.xlu0 %3928
    %3932 = vrot.lane.b32.xlu0 %v3200, 68
    %v3933 = vpop.permute.xlu0 %3932
    %3936 = vrot.lane.b32.xlu0 %v3202, 70
    %v3937 = vpop.permute.xlu0 %3936
    %3940 = vrot.lane.b32.xlu0 %v3204, 72
    %v3941 = vpop.permute.xlu0 %3940
    %3944 = vrot.lane.b32.xlu0 %v3206, 74
    %v3945 = vpop.permute.xlu0 %3944
    %3948 = vrot.lane.b32.xlu0 %v3208, 76
    %v3949 = vpop.permute.xlu0 %3948
    %3952 = vrot.lane.b32.xlu0 %v3210, 78
    %v3953 = vpop.permute.xlu0 %3952
    %3956 = vrot.lane.b32.xlu0 %v3308, 80
    %v3957 = vpop.permute.xlu0 %3956
    %3960 = vrot.lane.b32.xlu0 %v3310, 82
    %v3961 = vpop.permute.xlu0 %3960
    %3964 = vrot.lane.b32.xlu0 %v3312, 84
    %v3965 = vpop.permute.xlu0 %3964
    %3968 = vrot.lane.b32.xlu0 %v3314, 86
    %v3969 = vpop.permute.xlu0 %3968
    %3972 = vrot.lane.b32.xlu0 %v3316, 88
    %v3973 = vpop.permute.xlu0 %3972
    %3976 = vrot.lane.b32.xlu0 %v3318, 90
    %v3977 = vpop.permute.xlu0 %3976
    %3980 = vrot.lane.b32.xlu0 %v3320, 92
    %v3981 = vpop.permute.xlu0 %3980
    %3984 = vrot.lane.b32.xlu0 %v3322, 94
    %v3985 = vpop.permute.xlu0 %3984
    %3988 = vrot.lane.b32.xlu0 %v3420, 96
    %v3989 = vpop.permute.xlu0 %3988
    %3992 = vrot.lane.b32.xlu0 %v3422, 98
    %v3993 = vpop.permute.xlu0 %3992
    %3996 = vrot.lane.b32.xlu0 %v3424, 100
    %v3997 = vpop.permute.xlu0 %3996
    %4000 = vrot.lane.b32.xlu0 %v3426, 102
    %v4001 = vpop.permute.xlu0 %4000
    %4004 = vrot.lane.b32.xlu0 %v3428, 104
    %v4005 = vpop.permute.xlu0 %4004
    %4008 = vrot.lane.b32.xlu0 %v3430, 106
    %v4009 = vpop.permute.xlu0 %4008
    %4012 = vrot.lane.b32.xlu0 %v3432, 108
    %v4013 = vpop.permute.xlu0 %4012
    %4016 = vrot.lane.b32.xlu0 %v3434, 110
    %v4017 = vpop.permute.xlu0 %4016
    %4020 = vrot.lane.b32.xlu0 %v3532, 112
    %v4021 = vpop.permute.xlu0 %4020
    %4024 = vrot.lane.b32.xlu0 %v3534, 114
    %v4025 = vpop.permute.xlu0 %4024
    %4028 = vrot.lane.b32.xlu0 %v3536, 116
    %v4029 = vpop.permute.xlu0 %4028
    %4032 = vrot.lane.b32.xlu0 %v3538, 118
    %v4033 = vpop.permute.xlu0 %4032
    %4036 = vrot.lane.b32.xlu0 %v3540, 120
    %v4037 = vpop.permute.xlu0 %4036
    %4040 = vrot.lane.b32.xlu0 %v3542, 122
    %v4041 = vpop.permute.xlu0 %4040
    %4044 = vrot.lane.b32.xlu0 %v3544, 124
    %v4045 = vpop.permute.xlu0 %4044
    %4048 = vrot.lane.b32.xlu0 %v3546, 126
    %v4049 = vpop.permute.xlu0 %4048
    %vm4051 = vcmask 15360
    %v4052 = vsel %vm4051, %v1852, %v3549
    %vm4053 = vcmask 31744
    %v4054 = vsel %vm4053, %v4052, %v3553
    %vm4055 = vcmask 48128
    %v4056 = vsel %vm4055, %v4054, %v3557
    %vm4057 = vcmask 64512
    %v4058 = vsel %vm4057, %v4056, %v3561
    %vm4059 = vcmask 80896
    %v4060 = vsel %vm4059, %v4058, %v3565
    %vm4061 = vcmask 97280
    %v4062 = vsel %vm4061, %v4060, %v3569
    %vm4063 = vcmask 113664
    %v4064 = vsel %vm4063, %v4062, %v3573
    %vm4065 = vcmask 130048
    %v4066 = vsel %vm4065, %v4064, %v3577
    %vm4067 = vcmask 146432
    %v4068 = vsel %vm4067, %v4066, %v3581
    %vm4069 = vcmask 162816
    %v4070 = vsel %vm4069, %v4068, %v3585
    %vm4071 = vcmask 179200
    %v4072 = vsel %vm4071, %v4070, %v3589
    %vm4073 = vcmask 195584
    %v4074 = vsel %vm4073, %v4072, %v3593
    %vm4075 = vcmask 211968
    %v4076 = vsel %vm4075, %v4074, %v3597
    %vm4077 = vcmask 228352
    %v4078 = vsel %vm4077, %v4076, %v3601
    %vm4079 = vcmask 244736
    %v4080 = vsel %vm4079, %v4078, %v3605
    %vm4081 = vcmask 261120
    %v4082 = vsel %vm4081, %v4080, %v3609
    %vm4083 = vcmask 277504
    %v4084 = vsel %vm4083, %v4082, %v3613
    %vm4085 = vcmask 293888
    %v4086 = vsel %vm4085, %v4084, %v3617
    %vm4087 = vcmask 310272
    %v4088 = vsel %vm4087, %v4086, %v3621
    %vm4089 = vcmask 326656
    %v4090 = vsel %vm4089, %v4088, %v3625
    %vm4091 = vcmask 343040
    %v4092 = vsel %vm4091, %v4090, %v3629
    %vm4093 = vcmask 359424
    %v4094 = vsel %vm4093, %v4092, %v3633
    %vm4095 = vcmask 375808
    %v4096 = vsel %vm4095, %v4094, %v3637
    %vm4097 = vcmask 392192
    %v4098 = vsel %vm4097, %v4096, %v3641
    %vm4099 = vcmask 408576
    %v4100 = vsel %vm4099, %v4098, %v3645
    %vm4101 = vcmask 424960
    %v4102 = vsel %vm4101, %v4100, %v3649
    %vm4103 = vcmask 441344
    %v4104 = vsel %vm4103, %v4102, %v3653
    %vm4105 = vcmask 457728
    %v4106 = vsel %vm4105, %v4104, %v3657
    %vm4107 = vcmask 474112
    %v4108 = vsel %vm4107, %v4106, %v3661
    %vm4109 = vcmask 490496
    %v4110 = vsel %vm4109, %v4108, %v3665
    %vm4111 = vcmask 506880
    %v4112 = vsel %vm4111, %v4110, %v3669
    %vm4113 = vcmask 523264
    %v4114 = vsel %vm4113, %v4112, %v3673
    %vm4115 = vcmask 539648
    %v4116 = vsel %vm4115, %v4114, %v3677
    %vm4117 = vcmask 556032
    %v4118 = vsel %vm4117, %v4116, %v3681
    %vm4119 = vcmask 572416
    %v4120 = vsel %vm4119, %v4118, %v3685
    %vm4121 = vcmask 588800
    %v4122 = vsel %vm4121, %v4120, %v3689
    %vm4123 = vcmask 605184
    %v4124 = vsel %vm4123, %v4122, %v3693
    %vm4125 = vcmask 621568
    %v4126 = vsel %vm4125, %v4124, %v3697
    %vm4127 = vcmask 637952
    %v4128 = vsel %vm4127, %v4126, %v3701
    %vm4129 = vcmask 654336
    %v4130 = vsel %vm4129, %v4128, %v3705
    %vm4131 = vcmask 670720
    %v4132 = vsel %vm4131, %v4130, %v3709
    %vm4133 = vcmask 687104
    %v4134 = vsel %vm4133, %v4132, %v3713
    %vm4135 = vcmask 703488
    %v4136 = vsel %vm4135, %v4134, %v3717
    %vm4137 = vcmask 719872
    %v4138 = vsel %vm4137, %v4136, %v3721
    %vm4139 = vcmask 736256
    %v4140 = vsel %vm4139, %v4138, %v3725
    %vm4141 = vcmask 752640
    %v4142 = vsel %vm4141, %v4140, %v3729
    %vm4143 = vcmask 769024
    %v4144 = vsel %vm4143, %v4142, %v3733
    %vm4145 = vcmask 785408
    %v4146 = vsel %vm4145, %v4144, %v3737
    %vm4147 = vcmask 801792
    %v4148 = vsel %vm4147, %v4146, %v3741
    %vm4149 = vcmask 818176
    %v4150 = vsel %vm4149, %v4148, %v3745
    %vm4151 = vcmask 834560
    %v4152 = vsel %vm4151, %v4150, %v3749
    %vm4153 = vcmask 850944
    %v4154 = vsel %vm4153, %v4152, %v3753
    %vm4155 = vcmask 867328
    %v4156 = vsel %vm4155, %v4154, %v3757
    %vm4157 = vcmask 883712
    %v4158 = vsel %vm4157, %v4156, %v3761
    %vm4159 = vcmask 900096
    %v4160 = vsel %vm4159, %v4158, %v3765
    %vm4161 = vcmask 916480
    %v4162 = vsel %vm4161, %v4160, %v3769
    %vm4163 = vcmask 932864
    %v4164 = vsel %vm4163, %v4162, %v3773
    %vm4165 = vcmask 949248
    %v4166 = vsel %vm4165, %v4164, %v3777
    %vm4167 = vcmask 965632
    %v4168 = vsel %vm4167, %v4166, %v3781
    %vm4169 = vcmask 982016
    %v4170 = vsel %vm4169, %v4168, %v3785
    %vm4171 = vcmask 998400
    %v4172 = vsel %vm4171, %v4170, %v3789
    %vm4173 = vcmask 1014784
    %v4174 = vsel %vm4173, %v4172, %v3793
    %vm4175 = vcmask 1031168
    %v4176 = vsel %vm4175, %v4174, %v3797
    %v4177 = vsel %vm4051, %v2748, %v3801
    %v4178 = vsel %vm4053, %v4177, %v3805
    %v4179 = vsel %vm4055, %v4178, %v3809
    %v4180 = vsel %vm4057, %v4179, %v3813
    %v4181 = vsel %vm4059, %v4180, %v3817
    %v4182 = vsel %vm4061, %v4181, %v3821
    %v4183 = vsel %vm4063, %v4182, %v3825
    %v4184 = vsel %vm4065, %v4183, %v3829
    %v4185 = vsel %vm4067, %v4184, %v3833
    %v4186 = vsel %vm4069, %v4185, %v3837
    %v4187 = vsel %vm4071, %v4186, %v3841
    %v4188 = vsel %vm4073, %v4187, %v3845
    %v4189 = vsel %vm4075, %v4188, %v3849
    %v4190 = vsel %vm4077, %v4189, %v3853
    %v4191 = vsel %vm4079, %v4190, %v3857
    %v4192 = vsel %vm4081, %v4191, %v3861
    %v4193 = vsel %vm4083, %v4192, %v3865
    %v4194 = vsel %vm4085, %v4193, %v3869
    %v4195 = vsel %vm4087, %v4194, %v3873
    %v4196 = vsel %vm4089, %v4195, %v3877
    %v4197 = vsel %vm4091, %v4196, %v3881
    %v4198 = vsel %vm4093, %v4197, %v3885
    %v4199 = vsel %vm4095, %v4198, %v3889
    %v4200 = vsel %vm4097, %v4199, %v3893
    %v4201 = vsel %vm4099, %v4200, %v3897
    %v4202 = vsel %vm4101, %v4201, %v3901
    %v4203 = vsel %vm4103, %v4202, %v3905
    %v4204 = vsel %vm4105, %v4203, %v3909
    %v4205 = vsel %vm4107, %v4204, %v3913
    %v4206 = vsel %vm4109, %v4205, %v3917
    %v4207 = vsel %vm4111, %v4206, %v3921
    %v4208 = vsel %vm4113, %v4207, %v3925
    %v4209 = vsel %vm4115, %v4208, %v3929
    %v4210 = vsel %vm4117, %v4209, %v3933
    %v4211 = vsel %vm4119, %v4210, %v3937
    %v4212 = vsel %vm4121, %v4211, %v3941
    %v4213 = vsel %vm4123, %v4212, %v3945
    %v4214 = vsel %vm4125, %v4213, %v3949
    %v4215 = vsel %vm4127, %v4214, %v3953
    %v4216 = vsel %vm4129, %v4215, %v3957
    %v4217 = vsel %vm4131, %v4216, %v3961
    %v4218 = vsel %vm4133, %v4217, %v3965
    %v4219 = vsel %vm4135, %v4218, %v3969
    %v4220 = vsel %vm4137, %v4219, %v3973
    %v4221 = vsel %vm4139, %v4220, %v3977
    %v4222 = vsel %vm4141, %v4221, %v3981
    %v4223 = vsel %vm4143, %v4222, %v3985
    %v4224 = vsel %vm4145, %v4223, %v3989
    %v4225 = vsel %vm4147, %v4224, %v3993
    %v4226 = vsel %vm4149, %v4225, %v3997
    %v4227 = vsel %vm4151, %v4226, %v4001
    %v4228 = vsel %vm4153, %v4227, %v4005
    %v4229 = vsel %vm4155, %v4228, %v4009
    %v4230 = vsel %vm4157, %v4229, %v4013
    %v4231 = vsel %vm4159, %v4230, %v4017
    %v4232 = vsel %vm4161, %v4231, %v4021
    %v4233 = vsel %vm4163, %v4232, %v4025
    %v4234 = vsel %vm4165, %v4233, %v4029
    %v4235 = vsel %vm4167, %v4234, %v4033
    %v4236 = vsel %vm4169, %v4235, %v4037
    %v4237 = vsel %vm4171, %v4236, %v4041
    %v4238 = vsel %vm4173, %v4237, %v4045
    %v4239 = vsel %vm4175, %v4238, %v4049
    %4240 = vst [vmem:[#allocation7] sm:$0xff] %v4176
    %4241 = vst [vmem:[#allocation7 + $0x8] sm:$0xff] %v4239
    // Predicated region
    $region22: #{tpu_custom_call.1} parent=1 // pred_check
      _
    $region23: #{tpu_custom_call.1} parent=1 // pred_check_branch
      %4243 = sbr.rel (0) target = $region25
    $region24: #{tpu_custom_call.1} parent=1 // pred_region
      %4245 = vsyncadd [#allocation4], 0
      %s4247 = sshll.u32 [#allocation7], 4
      %s4248 = int_to_ptr.vmem [resolvable:$true] %s4247
      %s4249 = sshll.u32 %s3, 4
      %s4250 = int_to_ptr.hbm [resolvable:$true] %s4249
      %4252 = dma.vmem_to_hbm [thread:$0]  %s4248, 256, %s4250, [#allocation4]
    $region25: #{tpu_custom_call.1} parent=1 // pred_fallthru
      _
    // Predicated region
    $region26: #{tpu_custom_call.1} parent=1 // pred_check
      _
    $region27: #{tpu_custom_call.1} parent=1 // pred_check_branch
      %4254 = sbr.rel (0) target = $region29
    $region28: #{tpu_custom_call.1} parent=1 // pred_region
      %4256 = dma.done [#allocation4], 256
    $region29: #{tpu_custom_call.1} parent=1 // pred_fallthru
      _
    %4257 = vsyncpa [#allocation3], 1
    %4258 = vsyncpa [#allocation6], 1
    %4259 = vsyncpa [#allocation4], 1

</llo_original>
